<compile_context>
chip_gen: v7x
topology: tpu7x:2x2x1
jax: 0.10.0
libtpu: 0.0.40
codegen_flags: <defaults>
</compile_context>

<pallas_src>
import math

import jax
import jax.numpy as jnp
from jax.experimental import pallas as pl
from jax.experimental.pallas import tpu as pltpu


# ----------------------------------------------------------------------------
# Pallas kernel.  One grid step handles one row tile of the flattened point
# set: q projection, fused K/V projection of the streamed 'diff' neighbors,
# multi-head neighbor attention, residual + BN1, feed-forward
# (1x1 conv -> LeakyReLU -> 1x1 conv), residual + BN2.
# ----------------------------------------------------------------------------
def _n2p_kernel(x_ref, nbr_ref, wq_ref, wkv_ref, pool_ref, poolT_ref,
                wff1_ref, wff2_ref, bn1s_ref, bn1b_ref, bn2s_ref, bn2b_ref,
                out_ref):
    Mt, C = x_ref.shape                    # rows handled by this grid step
    K = nbr_ref.shape[0] // Mt             # neighbors per point
    H = pool_ref.shape[1]                  # num_heads

    xc = x_ref[...]                                                # (Mt, C) f32 centers

    # q projection (1/sqrt(dq) pre-folded into Wq): bf16 MXU, f32 accumulation.
    q = jnp.dot(xc.astype(jnp.bfloat16), wq_ref[...],
                preferred_element_type=jnp.float32)                # (Mt, C)

    # Fused K/V projection of the streamed bf16 'diff' neighbors:
    # one (Mt*K, C) x (C, 2C) bf16 matmul, then lane-slice.
    kv = jnp.dot(nbr_ref[...], wkv_ref[...],
                 preferred_element_type=jnp.float32)               # (Mt*K, 2C)
    k3 = kv[:, :C].reshape(Mt, K, C)
    v3 = kv[:, C:].reshape(Mt, K, C)

    # energy[n, k, h] = sum_d q[n, h*dq+d] * k[n, k, h*dq+d]; head pooling via
    # the 0/1 (C, H) matrix so it runs on the MXU (bf16 pool values are exact).
    prod = q[:, None, :] * k3                                      # (Mt, K, C) f32
    energy = jnp.dot(prod.reshape(Mt * K, C).astype(jnp.bfloat16), pool_ref[...],
                     preferred_element_type=jnp.float32)           # (Mt*K, H)
    energy = energy.reshape(Mt, K, H)
    # TODO(synk): pack energy/exp/attn lane-dense ((Mt, K*H)) once the
    #             (Mt*K, H) -> (Mt, K*H) relayout is verified; H=8 underfills lanes.

    # softmax over the K (neighbor) axis; divide via EUP approx reciprocal.
    m = jnp.max(energy, axis=1, keepdims=True)                     # (Mt, 1, H)
    e = jnp.exp(energy - m)
    attn = e * pl.reciprocal(jnp.sum(e, axis=1, keepdims=True), approx=True)

    # out[n, h*dq+d] = sum_k attn[n, k, h] * v[n, k, h*dq+d]
    attn_full = jnp.dot(attn.reshape(Mt * K, H).astype(jnp.bfloat16), poolT_ref[...],
                        preferred_element_type=jnp.float32).reshape(Mt, K, C)
    attn_out = jnp.sum(attn_full * v3, axis=1)                     # (Mt, C)
    # TODO(synk): for K >> 32 chunk the K axis (online softmax) to bound the
    #             live (Mt*K, C) intermediates.

    # residual + BatchNorm1 (eval: per-channel affine), all f32.
    x1 = (xc + attn_out) * bn1s_ref[...] + bn1b_ref[...]           # (Mt, C)

    # feed-forward: conv1d -> LeakyReLU(0.2) -> conv1d (bf16 matmuls, f32 acc).
    h = jnp.dot(x1.astype(jnp.bfloat16), wff1_ref[...],
                preferred_element_type=jnp.float32)                # (Mt, F)
    h = jnp.where(h > 0, h, 0.2 * h)
    ff = jnp.dot(h.astype(jnp.bfloat16), wff2_ref[...],
                 preferred_element_type=jnp.float32)               # (Mt, C)

    # residual + BatchNorm2.
    x2 = (x1 + ff) * bn2s_ref[...] + bn2b_ref[...]
    # TODO(synk): lane-dense (or bf16) output packing when C < 128.
    out_ref[...] = x2.astype(out_ref.dtype)


# ----------------------------------------------------------------------------
# Generation-dependent limits and tiling.
# ----------------------------------------------------------------------------
def _tpu_limits():
    """Returns (vmem_limit_bytes, row_tile_cap) for the detected TPU generation."""
    try:
        phys = pltpu.get_tpu_info().vmem_capacity_bytes
    except Exception:
        phys = 64 * 1024 * 1024             # conservative (v7x-sized) fallback
    limit = max(32 * 1024 * 1024, min(int(phys * 3 // 4), 100 * 1024 * 1024))
    cap = 512 if phys >= 96 * 1024 * 1024 else 256
    return limit, cap


def _pick_row_tile(M, cap):
    # Largest power-of-two tile (>=8) that divides M while keeping >=2 grid
    # steps (so both v7x TensorCores get work).
    mt = cap
    while mt >= 8:
        if M % mt == 0 and M // mt >= 2:
            return mt
        mt //= 2
    return M


def _n2p_pallas(x_flat, nbr_flat, params, K):
    """x_flat: (M, C) f32 centers; nbr_flat: (M*K, C) bf16 'diff' neighbors."""
    M, C = x_flat.shape
    H = params["pool"].shape[1]
    F = params["wff1"].shape[1]
    dq = C // H
    vmem_limit, cap = _tpu_limits()
    Mt = _pick_row_tile(M, cap)
    grid = (M // Mt,)

    # bf16 weights for the MXU; softmax scale folded into Wq; K/V fused.
    wq = (params["wq"] / math.sqrt(dq)).astype(jnp.bfloat16)
    wkv = jnp.concatenate([params["wk"], params["wv"]], axis=1).astype(jnp.bfloat16)
    pool = params["pool"].astype(jnp.bfloat16)       # exact 0/1 values
    poolT = params["poolT"].astype(jnp.bfloat16)
    wff1 = params["wff1"].astype(jnp.bfloat16)
    wff2 = params["wff2"].astype(jnp.bfloat16)
    bn1s = params["bn1_scale"].reshape(1, C)
    bn1b = params["bn1_shift"].reshape(1, C)
    bn2s = params["bn2_scale"].reshape(1, C)
    bn2b = params["bn2_shift"].reshape(1, C)

    def run(single_buffer_weights):
        def const_spec(shape):
            if single_buffer_weights:
                return pl.BlockSpec(shape, lambda t: (0, 0),
                                    pipeline_mode=pl.Buffered(1))
            return pl.BlockSpec(shape, lambda t: (0, 0))

        return pl.pallas_call(
            _n2p_kernel,
            out_shape=jax.ShapeDtypeStruct((M, C), jnp.float32),
            grid=grid,
            in_specs=[
                pl.BlockSpec((Mt, C), lambda t: (t, 0)),       # centers (tiled, f32)
                pl.BlockSpec((Mt * K, C), lambda t: (t, 0)),   # diff neighbors (tiled, bf16)
                const_spec((C, C)),                            # Wq (scale folded, bf16)
                const_spec((C, 2 * C)),                        # fused Wk|Wv (bf16)
                const_spec((C, H)),                            # head-pool P (bf16)
                const_spec((H, C)),                            # P^T (bf16)
                const_spec((C, F)),                            # W_ff1 (bf16)
                const_spec((F, C)),                            # W_ff2 (bf16)
                const_spec((1, C)),                            # bn1 scale (f32)
                const_spec((1, C)),                            # bn1 shift (f32)
                const_spec((1, C)),                            # bn2 scale (f32)
                const_spec((1, C)),                            # bn2 shift (f32)
            ],
            out_specs=pl.BlockSpec((Mt, C), lambda t: (t, 0)),
            compiler_params=pltpu.CompilerParams(
                dimension_semantics=("parallel",),
                vmem_limit_bytes=vmem_limit),
        )(x_flat, nbr_flat, wq, wkv, pool, poolT, wff1, wff2,
          bn1s, bn1b, bn2s, bn2b)

    try:
        return run(True)
    except Exception:
        # TODO(synk): pl.Buffered(1) single-buffering rejected by this JAX build;
        #             falling back to default double buffering (weights are small).
        return run(False)


# ----------------------------------------------------------------------------
# Glue: feature-space kNN + 'diff' grouping (the ops.group equivalent) kept in
# plain JAX, plus layout plumbing around the kernel.
# ----------------------------------------------------------------------------
def knn_indices(xt, K):
    """xt: (B, N, C) -> (B, N, K) int32 nearest-neighbor indices in feature space."""
    sq = jnp.sum(xt * xt, axis=-1)                            # (B, N)
    inner = jnp.einsum("bnc,bmc->bnm", xt, xt)                # (B, N, N)
    dist = sq[:, :, None] - 2.0 * inner + sq[:, None, :]      # squared feature dist
    _, idx = jax.lax.top_k(-dist, K)                          # (B, N, K), incl. self
    return idx.astype(jnp.int32)


def group_diff(xt, idx):
    """ops.group equivalent: gather neighbor features and 'diff'-group them."""
    gathered = jax.vmap(lambda feats, ind: feats[ind])(xt, idx)   # (B, N, K, C)
    return gathered - xt[:, :, None, :]


def neighbor2point_attention(x_bcn, coordinate, params, K=8):
    """Full module forward. x_bcn: (B, C, N); coordinate: (B, 3, N) (unused for
    neighbor_selection_method='feature'). Returns (B, C, N) like PyTorch."""
    del coordinate                       # 'feature' neighbor selection uses x itself
    B, C, N = x_bcn.shape
    xt = jnp.transpose(x_bcn, (0, 2, 1))                      # (B, N, C)
    idx = knn_indices(xt, K)                                  # (B, N, K)
    # TODO(synk): exact ops.group source is not in the provided module; standard
    #             feature-kNN + 'diff' grouping is reproduced here in plain JAX.
    diff = group_diff(xt, idx)                                # (B, N, K, C)
    x_flat = xt.reshape(B * N, C)
    nbr_flat = diff.reshape(B * N * K, C).astype(jnp.bfloat16)
    out_flat = _n2p_pallas(x_flat, nbr_flat, params, K)       # (B*N, C)
    return jnp.transpose(out_flat.reshape(B, N, C), (0, 2, 1))


# ----------------------------------------------------------------------------
# Pure-JAX f32 reference mirroring the PyTorch NCHW code path exactly.
# ----------------------------------------------------------------------------
def reference(x_bcn, nb_bnkc, params):
    B, C, N = x_bcn.shape
    K = nb_bnkc.shape[2]
    H = params["pool"].shape[1]
    dq = C // H
    nb = jnp.transpose(nb_bnkc, (0, 3, 1, 2))                 # (B, C, N, K) like PyTorch

    q = jnp.einsum("bcn,cd->bdn", x_bcn, params["wq"])        # (B, C, N)
    k = jnp.einsum("bcnk,cd->bdnk", nb, params["wk"])
    v = jnp.einsum("bcnk,cd->bdnk", nb, params["wv"])

    qh = q.reshape(B, H, dq, N)[..., None].transpose(0, 1, 3, 4, 2)   # (B,H,N,1,dq)
    kh = k.reshape(B, H, dq, N, K).transpose(0, 1, 3, 4, 2)           # (B,H,N,K,dq)
    vh = v.reshape(B, H, dq, N, K).transpose(0, 1, 3, 4, 2)

    energy = jnp.einsum("bhnqd,bhnkd->bhnqk", qh, kh)
    attn = jax.nn.softmax(energy / math.sqrt(dq), axis=-1)
    out = jnp.einsum("bhnqk,bhnkd->bhnqd", attn, vh)[:, :, :, 0, :]   # (B,H,N,dq)
    out = out.transpose(0, 2, 1, 3).reshape(B, N, H * dq).transpose(0, 2, 1)

    x1 = (x_bcn + out) * params["bn1_scale"][None, :, None] + params["bn1_shift"][None, :, None]
    h = jnp.einsum("bcn,cf->bfn", x1, params["wff1"])
    h = jnp.where(h > 0, h, 0.2 * h)
    ff = jnp.einsum("bfn,fc->bcn", h, params["wff2"])
    x2 = (x1 + ff) * params["bn2_scale"][None, :, None] + params["bn2_shift"][None, :, None]
    return x2


# ----------------------------------------------------------------------------
# Parameter construction (deterministic, shapes per module __init__).
# ----------------------------------------------------------------------------
def make_params(key, C, H, F):
    dq = C // H
    ks = jax.random.split(key, 5)
    # 1x1 conv weights stored as (C_in, C_out) so the kernel computes x @ W
    wq = 0.1 * jax.random.normal(ks[0], (C, C), jnp.float32)
    wk = 0.1 * jax.random.normal(ks[1], (C, C), jnp.float32)
    wv = 0.1 * jax.random.normal(ks[2], (C, C), jnp.float32)
    wff1 = 0.1 * jax.random.normal(ks[3], (C, F), jnp.float32)
    wff2 = 0.1 * jax.random.normal(ks[4], (F, C), jnp.float32)
    # head-pooling matrix: P[c, h] = 1 if c // dq == h
    pool = (jnp.arange(C)[:, None] // dq == jnp.arange(H)[None, :]).astype(jnp.float32)
    # BatchNorm1d eval-mode (default init): gamma=1, beta=0, mean=0, var=1
    eps = 1e-5
    gamma = jnp.ones((C,), jnp.float32)
    beta = jnp.zeros((C,), jnp.float32)
    run_mean = jnp.zeros((C,), jnp.float32)
    run_var = jnp.ones((C,), jnp.float32)
    bn_scale = gamma / jnp.sqrt(run_var + eps)
    bn_shift = beta - run_mean * bn_scale
    return {
        "wq": wq, "wk": wk, "wv": wv,
        "wff1": wff1, "wff2": wff2,
        "pool": pool, "poolT": pool.T,
        "bn1_scale": bn_scale, "bn1_shift": bn_shift,
        "bn2_scale": bn_scale, "bn2_shift": bn_shift,
    }


if __name__ == "__main__":
    # Small shapes consistent with the module:
    # q_in=q_out=k_in=k_out=v_in=v_out=C=32, num_heads=8, K=8 neighbors,
    # ff channels 32 -> 64 -> 32, B=2 point clouds of N=16 points.
    B, C, N, K, H, F = 2, 32, 16, 8, 8, 64

    key = jax.random.PRNGKey(0)
    kx, kc, kp = jax.random.split(key, 3)
    x = jax.random.normal(kx, (B, C, N), jnp.float32)            # features (B, C, N)
    coordinate = jax.random.normal(kc, (B, 3, N), jnp.float32)   # xyz (unused: 'feature' kNN)
    params = make_params(kp, C, H, F)

    out = neighbor2point_attention(x, coordinate, params, K=K)
    out = jax.block_until_ready(out)
    assert out.shape == (B, C, N)

    # correctness check against a pure-JAX f32 reference of the PyTorch forward
    # (tolerance accounts for the kernel's bf16 MXU operands + approx reciprocal)
    xt = jnp.transpose(x, (0, 2, 1))
    nb = group_diff(xt, knn_indices(xt, K))                      # (B, N, K, C)
    ref = jax.block_until_ready(reference(x, nb, params))
    max_err = float(jnp.max(jnp.abs(out - ref)))
    assert jnp.allclose(out, ref, atol=5e-2, rtol=5e-2), max_err

    print("KERNEL_OK")
</pallas_src>

<mosaic_0001>
module attributes {stable_mosaic.version = 11 : i64} {
  func.func @_n2p_kernel(%arg0: i32, %arg1: memref<16x32xf32, #tpu.memory_space<vmem>>, %arg2: memref<128x32xbf16, #tpu.memory_space<vmem>>, %arg3: memref<32x32xbf16, #tpu.memory_space<vmem>>, %arg4: memref<32x64xbf16, #tpu.memory_space<vmem>>, %arg5: memref<32x8xbf16, #tpu.memory_space<vmem>>, %arg6: memref<8x32xbf16, #tpu.memory_space<vmem>>, %arg7: memref<32x64xbf16, #tpu.memory_space<vmem>>, %arg8: memref<64x32xbf16, #tpu.memory_space<vmem>>, %arg9: memref<1x32xf32, #tpu.memory_space<vmem>>, %arg10: memref<1x32xf32, #tpu.memory_space<vmem>>, %arg11: memref<1x32xf32, #tpu.memory_space<vmem>>, %arg12: memref<1x32xf32, #tpu.memory_space<vmem>>, %arg13: memref<16x32xf32, #tpu.memory_space<vmem>>) attributes {dimension_semantics = [#tpu.dimension_semantics<parallel>], iteration_bounds = array<i64: 2>, scalar_prefetch = 0 : i64, scratch_operands = 0 : i64, tpu.core_type = #tpu.core_type<tc>, window_params = [{transform_indices = @transform_0, window_bounds = array<i64: 16, 32>}, {transform_indices = @transform_1, window_bounds = array<i64: 128, 32>}, {pipeline_mode = #tpu.pipeline_mode<synchronous>, transform_indices = @transform_2, window_bounds = array<i64: 32, 32>}, {pipeline_mode = #tpu.pipeline_mode<synchronous>, transform_indices = @transform_3, window_bounds = array<i64: 32, 64>}, {pipeline_mode = #tpu.pipeline_mode<synchronous>, transform_indices = @transform_4, window_bounds = array<i64: 32, 8>}, {pipeline_mode = #tpu.pipeline_mode<synchronous>, transform_indices = @transform_5, window_bounds = array<i64: 8, 32>}, {pipeline_mode = #tpu.pipeline_mode<synchronous>, transform_indices = @transform_6, window_bounds = array<i64: 32, 64>}, {pipeline_mode = #tpu.pipeline_mode<synchronous>, transform_indices = @transform_7, window_bounds = array<i64: 64, 32>}, {pipeline_mode = #tpu.pipeline_mode<synchronous>, transform_indices = @transform_8, window_bounds = array<i64: 1, 32>}, {pipeline_mode = #tpu.pipeline_mode<synchronous>, transform_indices = @transform_9, window_bounds = array<i64: 1, 32>}, {pipeline_mode = #tpu.pipeline_mode<synchronous>, transform_indices = @transform_10, window_bounds = array<i64: 1, 32>}, {pipeline_mode = #tpu.pipeline_mode<synchronous>, transform_indices = @transform_11, window_bounds = array<i64: 1, 32>}, {transform_indices = @transform_12, window_bounds = array<i64: 16, 32>}]} {
    %c0 = arith.constant 0 : index
    %c0_0 = arith.constant 0 : index
    %0 = vector.load %arg1[%c0, %c0_0] : memref<16x32xf32, #tpu.memory_space<vmem>>, vector<16x32xf32>
    %1 = arith.truncf %0 : vector<16x32xf32> to vector<16x32xbf16>
    %c0_1 = arith.constant 0 : index
    %c0_2 = arith.constant 0 : index
    %2 = vector.load %arg3[%c0_1, %c0_2] : memref<32x32xbf16, #tpu.memory_space<vmem>>, vector<32x32xbf16>
    %cst = arith.constant dense<0.000000e+00> : vector<16x32xf32>
    %3 = tpu.matmul %1, %2, %cst {dimension_numbers = #tpu.dot_dimension_numbers<[1], [0], [0], [1], [0, 0, 1, 1], [], []>} : vector<16x32xbf16>, vector<32x32xbf16>, vector<16x32xf32> -> vector<16x32xf32>
    %c0_3 = arith.constant 0 : index
    %c0_4 = arith.constant 0 : index
    %4 = vector.load %arg2[%c0_3, %c0_4] : memref<128x32xbf16, #tpu.memory_space<vmem>>, vector<128x32xbf16>
    %c0_5 = arith.constant 0 : index
    %c0_6 = arith.constant 0 : index
    %5 = vector.load %arg4[%c0_5, %c0_6] : memref<32x64xbf16, #tpu.memory_space<vmem>>, vector<32x64xbf16>
    %cst_7 = arith.constant dense<0.000000e+00> : vector<128x64xf32>
    %6 = tpu.matmul %4, %5, %cst_7 {dimension_numbers = #tpu.dot_dimension_numbers<[1], [0], [0], [1], [0, 0, 1, 1], [], []>} : vector<128x32xbf16>, vector<32x64xbf16>, vector<128x64xf32> -> vector<128x64xf32>
    %7 = vector.extract_strided_slice %6 {offsets = [0, 0], sizes = [128, 32], strides = [1, 1]} : vector<128x64xf32> to vector<128x32xf32>
    %8 = vector.shape_cast %7 : vector<128x32xf32> to vector<16x8x32xf32>
    %9 = vector.extract_strided_slice %6 {offsets = [0, 32], sizes = [128, 32], strides = [1, 1]} : vector<128x64xf32> to vector<128x32xf32>
    %10 = vector.shape_cast %9 : vector<128x32xf32> to vector<16x8x32xf32>
    %11 = vector.shape_cast %3 : vector<16x32xf32> to vector<16x1x32xf32>
    %12 = vector.broadcast %11 : vector<16x1x32xf32> to vector<16x8x32xf32>
    %13 = arith.mulf %12, %8 : vector<16x8x32xf32>
    %14 = vector.shape_cast %13 : vector<16x8x32xf32> to vector<128x32xf32>
    %15 = arith.truncf %14 : vector<128x32xf32> to vector<128x32xbf16>
    %c0_8 = arith.constant 0 : index
    %c0_9 = arith.constant 0 : index
    %16 = vector.load %arg5[%c0_8, %c0_9] : memref<32x8xbf16, #tpu.memory_space<vmem>>, vector<32x8xbf16>
    %cst_10 = arith.constant dense<0.000000e+00> : vector<128x8xf32>
    %17 = tpu.matmul %15, %16, %cst_10 {dimension_numbers = #tpu.dot_dimension_numbers<[1], [0], [0], [1], [0, 0, 1, 1], [], []>} : vector<128x32xbf16>, vector<32x8xbf16>, vector<128x8xf32> -> vector<128x8xf32>
    %18 = vector.shape_cast %17 : vector<128x8xf32> to vector<16x8x8xf32>
    %cst_11 = arith.constant dense<0xFF800000> : vector<16x8xf32>
    %19 = vector.multi_reduction <maximumf>, %18, %cst_11 [1] : vector<16x8x8xf32> to vector<16x8xf32>
    %20 = vector.shape_cast %19 : vector<16x8xf32> to vector<16x1x8xf32>
    %21 = vector.broadcast %20 : vector<16x1x8xf32> to vector<16x8x8xf32>
    %22 = arith.subf %18, %21 : vector<16x8x8xf32>
    %23 = math.exp %22 : vector<16x8x8xf32>
    %cst_12 = arith.constant dense<0.000000e+00> : vector<16x8xf32>
    %24 = vector.multi_reduction <add>, %23, %cst_12 [1] : vector<16x8x8xf32> to vector<16x8xf32>
    %25 = vector.shape_cast %24 : vector<16x8xf32> to vector<16x1x8xf32>
    %26 = tpu.reciprocal %25 {approx = true} : vector<16x1x8xf32> -> vector<16x1x8xf32>
    %27 = vector.broadcast %26 : vector<16x1x8xf32> to vector<16x8x8xf32>
    %28 = arith.mulf %23, %27 : vector<16x8x8xf32>
    %29 = vector.shape_cast %28 : vector<16x8x8xf32> to vector<128x8xf32>
    %30 = arith.truncf %29 : vector<128x8xf32> to vector<128x8xbf16>
    %c0_13 = arith.constant 0 : index
    %c0_14 = arith.constant 0 : index
    %31 = vector.load %arg6[%c0_13, %c0_14] : memref<8x32xbf16, #tpu.memory_space<vmem>>, vector<8x32xbf16>
    %cst_15 = arith.constant dense<0.000000e+00> : vector<128x32xf32>
    %32 = tpu.matmul %30, %31, %cst_15 {dimension_numbers = #tpu.dot_dimension_numbers<[1], [0], [0], [1], [0, 0, 1, 1], [], []>} : vector<128x8xbf16>, vector<8x32xbf16>, vector<128x32xf32> -> vector<128x32xf32>
    %33 = vector.shape_cast %32 : vector<128x32xf32> to vector<16x8x32xf32>
    %34 = arith.mulf %33, %10 : vector<16x8x32xf32>
    %cst_16 = arith.constant dense<0.000000e+00> : vector<16x32xf32>
    %35 = vector.multi_reduction <add>, %34, %cst_16 [1] : vector<16x8x32xf32> to vector<16x32xf32>
    %36 = arith.addf %0, %35 : vector<16x32xf32>
    %c0_17 = arith.constant 0 : index
    %c0_18 = arith.constant 0 : index
    %37 = vector.load %arg9[%c0_17, %c0_18] : memref<1x32xf32, #tpu.memory_space<vmem>>, vector<1x32xf32>
    %38 = vector.broadcast %37 : vector<1x32xf32> to vector<16x32xf32>
    %39 = arith.mulf %36, %38 : vector<16x32xf32>
    %c0_19 = arith.constant 0 : index
    %c0_20 = arith.constant 0 : index
    %40 = vector.load %arg10[%c0_19, %c0_20] : memref<1x32xf32, #tpu.memory_space<vmem>>, vector<1x32xf32>
    %41 = vector.broadcast %40 : vector<1x32xf32> to vector<16x32xf32>
    %42 = arith.addf %39, %41 : vector<16x32xf32>
    %43 = arith.truncf %42 : vector<16x32xf32> to vector<16x32xbf16>
    %c0_21 = arith.constant 0 : index
    %c0_22 = arith.constant 0 : index
    %44 = vector.load %arg7[%c0_21, %c0_22] : memref<32x64xbf16, #tpu.memory_space<vmem>>, vector<32x64xbf16>
    %cst_23 = arith.constant dense<0.000000e+00> : vector<16x64xf32>
    %45 = tpu.matmul %43, %44, %cst_23 {dimension_numbers = #tpu.dot_dimension_numbers<[1], [0], [0], [1], [0, 0, 1, 1], [], []>} : vector<16x32xbf16>, vector<32x64xbf16>, vector<16x64xf32> -> vector<16x64xf32>
    %cst_24 = arith.constant 0.000000e+00 : f32
    %46 = vector.broadcast %cst_24 : f32 to vector<16x64xf32>
    %47 = arith.cmpf ogt, %45, %46 : vector<16x64xf32>
    %cst_25 = arith.constant 2.000000e-01 : f32
    %48 = vector.broadcast %cst_25 : f32 to vector<16x64xf32>
    %49 = arith.mulf %48, %45 : vector<16x64xf32>
    %50 = arith.select %47, %45, %49 : vector<16x64xi1>, vector<16x64xf32>
    %51 = arith.truncf %50 : vector<16x64xf32> to vector<16x64xbf16>
    %c0_26 = arith.constant 0 : index
    %c0_27 = arith.constant 0 : index
    %52 = vector.load %arg8[%c0_26, %c0_27] : memref<64x32xbf16, #tpu.memory_space<vmem>>, vector<64x32xbf16>
    %cst_28 = arith.constant dense<0.000000e+00> : vector<16x32xf32>
    %53 = tpu.matmul %51, %52, %cst_28 {dimension_numbers = #tpu.dot_dimension_numbers<[1], [0], [0], [1], [0, 0, 1, 1], [], []>} : vector<16x64xbf16>, vector<64x32xbf16>, vector<16x32xf32> -> vector<16x32xf32>
    %54 = arith.addf %42, %53 : vector<16x32xf32>
    %c0_29 = arith.constant 0 : index
    %c0_30 = arith.constant 0 : index
    %55 = vector.load %arg11[%c0_29, %c0_30] : memref<1x32xf32, #tpu.memory_space<vmem>>, vector<1x32xf32>
    %56 = vector.broadcast %55 : vector<1x32xf32> to vector<16x32xf32>
    %57 = arith.mulf %54, %56 : vector<16x32xf32>
    %c0_31 = arith.constant 0 : index
    %c0_32 = arith.constant 0 : index
    %58 = vector.load %arg12[%c0_31, %c0_32] : memref<1x32xf32, #tpu.memory_space<vmem>>, vector<1x32xf32>
    %59 = vector.broadcast %58 : vector<1x32xf32> to vector<16x32xf32>
    %60 = arith.addf %57, %59 : vector<16x32xf32>
    %c0_33 = arith.constant 0 : index
    %c0_34 = arith.constant 0 : index
    %61 = vector.load %arg13[%c0_33, %c0_34] : memref<16x32xf32, #tpu.memory_space<vmem>>, vector<16x32xf32>
    tpu.vector_store %arg13[%c0_33, %c0_34], %60 {strides = array<i32>} : memref<16x32xf32, #tpu.memory_space<vmem>>, vector<16x32xf32>,
    return
  }
  func.func @transform_0(%arg0: i32) -> (i32, i32) {
    %c0_i32 = arith.constant 0 : i32
    %c0_i32_0 = arith.constant 0 : i32
    return %arg0, %c0_i32 : i32, i32
  }
  func.func @transform_1(%arg0: i32) -> (i32, i32) {
    %c0_i32 = arith.constant 0 : i32
    %c0_i32_0 = arith.constant 0 : i32
    return %arg0, %c0_i32 : i32, i32
  }
  func.func @transform_2(%arg0: i32) -> (i32, i32) {
    %c0_i32 = arith.constant 0 : i32
    %c0_i32_0 = arith.constant 0 : i32
    %c0_i32_1 = arith.constant 0 : i32
    return %c0_i32, %c0_i32_0 : i32, i32
  }
  func.func @transform_3(%arg0: i32) -> (i32, i32) {
    %c0_i32 = arith.constant 0 : i32
    %c0_i32_0 = arith.constant 0 : i32
    %c0_i32_1 = arith.constant 0 : i32
    return %c0_i32, %c0_i32_0 : i32, i32
  }
  func.func @transform_4(%arg0: i32) -> (i32, i32) {
    %c0_i32 = arith.constant 0 : i32
    %c0_i32_0 = arith.constant 0 : i32
    %c0_i32_1 = arith.constant 0 : i32
    return %c0_i32, %c0_i32_0 : i32, i32
  }
  func.func @transform_5(%arg0: i32) -> (i32, i32) {
    %c0_i32 = arith.constant 0 : i32
    %c0_i32_0 = arith.constant 0 : i32
    %c0_i32_1 = arith.constant 0 : i32
    return %c0_i32, %c0_i32_0 : i32, i32
  }
  func.func @transform_6(%arg0: i32) -> (i32, i32) {
    %c0_i32 = arith.constant 0 : i32
    %c0_i32_0 = arith.constant 0 : i32
    %c0_i32_1 = arith.constant 0 : i32
    return %c0_i32, %c0_i32_0 : i32, i32
  }
  func.func @transform_7(%arg0: i32) -> (i32, i32) {
    %c0_i32 = arith.constant 0 : i32
    %c0_i32_0 = arith.constant 0 : i32
    %c0_i32_1 = arith.constant 0 : i32
    return %c0_i32, %c0_i32_0 : i32, i32
  }
  func.func @transform_8(%arg0: i32) -> (i32, i32) {
    %c0_i32 = arith.constant 0 : i32
    %c0_i32_0 = arith.constant 0 : i32
    %c0_i32_1 = arith.constant 0 : i32
    return %c0_i32, %c0_i32_0 : i32, i32
  }
  func.func @transform_9(%arg0: i32) -> (i32, i32) {
    %c0_i32 = arith.constant 0 : i32
    %c0_i32_0 = arith.constant 0 : i32
    %c0_i32_1 = arith.constant 0 : i32
    return %c0_i32, %c0_i32_0 : i32, i32
  }
  func.func @transform_10(%arg0: i32) -> (i32, i32) {
    %c0_i32 = arith.constant 0 : i32
    %c0_i32_0 = arith.constant 0 : i32
    %c0_i32_1 = arith.constant 0 : i32
    return %c0_i32, %c0_i32_0 : i32, i32
  }
  func.func @transform_11(%arg0: i32) -> (i32, i32) {
    %c0_i32 = arith.constant 0 : i32
    %c0_i32_0 = arith.constant 0 : i32
    %c0_i32_1 = arith.constant 0 : i32
    return %c0_i32, %c0_i32_0 : i32, i32
  }
  func.func @transform_12(%arg0: i32) -> (i32, i32) {
    %c0_i32 = arith.constant 0 : i32
    %c0_i32_0 = arith.constant 0 : i32
    return %arg0, %c0_i32 : i32, i32
  }
}

module attributes {stable_mosaic.version = 11 : i64} {
  func.func @_n2p_kernel(%arg0: i32, %arg1: memref<16x32xf32, #tpu.memory_space<vmem>>, %arg2: memref<128x32xbf16, #tpu.memory_space<vmem>>, %arg3: memref<32x32xbf16, #tpu.memory_space<vmem>>, %arg4: memref<32x64xbf16, #tpu.memory_space<vmem>>, %arg5: memref<32x8xbf16, #tpu.memory_space<vmem>>, %arg6: memref<8x32xbf16, #tpu.memory_space<vmem>>, %arg7: memref<32x64xbf16, #tpu.memory_space<vmem>>, %arg8: memref<64x32xbf16, #tpu.memory_space<vmem>>, %arg9: memref<1x32xf32, #tpu.memory_space<vmem>>, %arg10: memref<1x32xf32, #tpu.memory_space<vmem>>, %arg11: memref<1x32xf32, #tpu.memory_space<vmem>>, %arg12: memref<1x32xf32, #tpu.memory_space<vmem>>, %arg13: memref<16x32xf32, #tpu.memory_space<vmem>>) attributes {dimension_semantics = [#tpu.dimension_semantics<parallel>], iteration_bounds = array<i64: 2>, scalar_prefetch = 0 : i64, scratch_operands = 0 : i64, tpu.core_type = #tpu.core_type<tc>, window_params = [{transform_indices = @transform_0, window_bounds = array<i64: 16, 32>}, {transform_indices = @transform_1, window_bounds = array<i64: 128, 32>}, {pipeline_mode = #tpu.pipeline_mode<synchronous>, transform_indices = @transform_2, window_bounds = array<i64: 32, 32>}, {pipeline_mode = #tpu.pipeline_mode<synchronous>, transform_indices = @transform_3, window_bounds = array<i64: 32, 64>}, {pipeline_mode = #tpu.pipeline_mode<synchronous>, transform_indices = @transform_4, window_bounds = array<i64: 32, 8>}, {pipeline_mode = #tpu.pipeline_mode<synchronous>, transform_indices = @transform_5, window_bounds = array<i64: 8, 32>}, {pipeline_mode = #tpu.pipeline_mode<synchronous>, transform_indices = @transform_6, window_bounds = array<i64: 32, 64>}, {pipeline_mode = #tpu.pipeline_mode<synchronous>, transform_indices = @transform_7, window_bounds = array<i64: 64, 32>}, {pipeline_mode = #tpu.pipeline_mode<synchronous>, transform_indices = @transform_8, window_bounds = array<i64: 1, 32>}, {pipeline_mode = #tpu.pipeline_mode<synchronous>, transform_indices = @transform_9, window_bounds = array<i64: 1, 32>}, {pipeline_mode = #tpu.pipeline_mode<synchronous>, transform_indices = @transform_10, window_bounds = array<i64: 1, 32>}, {pipeline_mode = #tpu.pipeline_mode<synchronous>, transform_indices = @transform_11, window_bounds = array<i64: 1, 32>}, {transform_indices = @transform_12, window_bounds = array<i64: 16, 32>}]} {
    %c0 = arith.constant 0 : index
    %c0_0 = arith.constant 0 : index
    %0 = vector.load %arg1[%c0, %c0_0] : memref<16x32xf32, #tpu.memory_space<vmem>>, vector<16x32xf32>
    %1 = arith.truncf %0 : vector<16x32xf32> to vector<16x32xbf16>
    %c0_1 = arith.constant 0 : index
    %c0_2 = arith.constant 0 : index
    %2 = vector.load %arg3[%c0_1, %c0_2] : memref<32x32xbf16, #tpu.memory_space<vmem>>, vector<32x32xbf16>
    %cst = arith.constant dense<0.000000e+00> : vector<16x32xf32>
    %3 = tpu.matmul %1, %2, %cst {dimension_numbers = #tpu.dot_dimension_numbers<[1], [0], [0], [1], [0, 0, 1, 1], [], []>} : vector<16x32xbf16>, vector<32x32xbf16>, vector<16x32xf32> -> vector<16x32xf32>
    %c0_3 = arith.constant 0 : index
    %c0_4 = arith.constant 0 : index
    %4 = vector.load %arg2[%c0_3, %c0_4] : memref<128x32xbf16, #tpu.memory_space<vmem>>, vector<128x32xbf16>
    %c0_5 = arith.constant 0 : index
    %c0_6 = arith.constant 0 : index
    %5 = vector.load %arg4[%c0_5, %c0_6] : memref<32x64xbf16, #tpu.memory_space<vmem>>, vector<32x64xbf16>
    %cst_7 = arith.constant dense<0.000000e+00> : vector<128x64xf32>
    %6 = tpu.matmul %4, %5, %cst_7 {dimension_numbers = #tpu.dot_dimension_numbers<[1], [0], [0], [1], [0, 0, 1, 1], [], []>} : vector<128x32xbf16>, vector<32x64xbf16>, vector<128x64xf32> -> vector<128x64xf32>
    %7 = vector.extract_strided_slice %6 {offsets = [0, 0], sizes = [128, 32], strides = [1, 1]} : vector<128x64xf32> to vector<128x32xf32>
    %8 = vector.shape_cast %7 : vector<128x32xf32> to vector<16x8x32xf32>
    %9 = vector.extract_strided_slice %6 {offsets = [0, 32], sizes = [128, 32], strides = [1, 1]} : vector<128x64xf32> to vector<128x32xf32>
    %10 = vector.shape_cast %9 : vector<128x32xf32> to vector<16x8x32xf32>
    %11 = vector.shape_cast %3 : vector<16x32xf32> to vector<16x1x32xf32>
    %12 = vector.broadcast %11 : vector<16x1x32xf32> to vector<16x8x32xf32>
    %13 = arith.mulf %12, %8 : vector<16x8x32xf32>
    %14 = vector.shape_cast %13 : vector<16x8x32xf32> to vector<128x32xf32>
    %15 = arith.truncf %14 : vector<128x32xf32> to vector<128x32xbf16>
    %c0_8 = arith.constant 0 : index
    %c0_9 = arith.constant 0 : index
    %16 = vector.load %arg5[%c0_8, %c0_9] : memref<32x8xbf16, #tpu.memory_space<vmem>>, vector<32x8xbf16>
    %cst_10 = arith.constant dense<0.000000e+00> : vector<128x8xf32>
    %17 = tpu.matmul %15, %16, %cst_10 {dimension_numbers = #tpu.dot_dimension_numbers<[1], [0], [0], [1], [0, 0, 1, 1], [], []>} : vector<128x32xbf16>, vector<32x8xbf16>, vector<128x8xf32> -> vector<128x8xf32>
    %18 = vector.shape_cast %17 : vector<128x8xf32> to vector<16x8x8xf32>
    %cst_11 = arith.constant dense<0xFF800000> : vector<16x8xf32>
    %19 = vector.multi_reduction <maximumf>, %18, %cst_11 [1] : vector<16x8x8xf32> to vector<16x8xf32>
    %20 = vector.shape_cast %19 : vector<16x8xf32> to vector<16x1x8xf32>
    %21 = vector.broadcast %20 : vector<16x1x8xf32> to vector<16x8x8xf32>
    %22 = arith.subf %18, %21 : vector<16x8x8xf32>
    %23 = math.exp %22 : vector<16x8x8xf32>
    %cst_12 = arith.constant dense<0.000000e+00> : vector<16x8xf32>
    %24 = vector.multi_reduction <add>, %23, %cst_12 [1] : vector<16x8x8xf32> to vector<16x8xf32>
    %25 = vector.shape_cast %24 : vector<16x8xf32> to vector<16x1x8xf32>
    %26 = tpu.reciprocal %25 {approx = true} : vector<16x1x8xf32> -> vector<16x1x8xf32>
    %27 = vector.broadcast %26 : vector<16x1x8xf32> to vector<16x8x8xf32>
    %28 = arith.mulf %23, %27 : vector<16x8x8xf32>
    %29 = vector.shape_cast %28 : vector<16x8x8xf32> to vector<128x8xf32>
    %30 = arith.truncf %29 : vector<128x8xf32> to vector<128x8xbf16>
    %c0_13 = arith.constant 0 : index
    %c0_14 = arith.constant 0 : index
    %31 = vector.load %arg6[%c0_13, %c0_14] : memref<8x32xbf16, #tpu.memory_space<vmem>>, vector<8x32xbf16>
    %cst_15 = arith.constant dense<0.000000e+00> : vector<128x32xf32>
    %32 = tpu.matmul %30, %31, %cst_15 {dimension_numbers = #tpu.dot_dimension_numbers<[1], [0], [0], [1], [0, 0, 1, 1], [], []>} : vector<128x8xbf16>, vector<8x32xbf16>, vector<128x32xf32> -> vector<128x32xf32>
    %33 = vector.shape_cast %32 : vector<128x32xf32> to vector<16x8x32xf32>
    %34 = arith.mulf %33, %10 : vector<16x8x32xf32>
    %cst_16 = arith.constant dense<0.000000e+00> : vector<16x32xf32>
    %35 = vector.multi_reduction <add>, %34, %cst_16 [1] : vector<16x8x32xf32> to vector<16x32xf32>
    %36 = arith.addf %0, %35 : vector<16x32xf32>
    %c0_17 = arith.constant 0 : index
    %c0_18 = arith.constant 0 : index
    %37 = vector.load %arg9[%c0_17, %c0_18] : memref<1x32xf32, #tpu.memory_space<vmem>>, vector<1x32xf32>
    %38 = vector.broadcast %37 : vector<1x32xf32> to vector<16x32xf32>
    %39 = arith.mulf %36, %38 : vector<16x32xf32>
    %c0_19 = arith.constant 0 : index
    %c0_20 = arith.constant 0 : index
    %40 = vector.load %arg10[%c0_19, %c0_20] : memref<1x32xf32, #tpu.memory_space<vmem>>, vector<1x32xf32>
    %41 = vector.broadcast %40 : vector<1x32xf32> to vector<16x32xf32>
    %42 = arith.addf %39, %41 : vector<16x32xf32>
    %43 = arith.truncf %42 : vector<16x32xf32> to vector<16x32xbf16>
    %c0_21 = arith.constant 0 : index
    %c0_22 = arith.constant 0 : index
    %44 = vector.load %arg7[%c0_21, %c0_22] : memref<32x64xbf16, #tpu.memory_space<vmem>>, vector<32x64xbf16>
    %cst_23 = arith.constant dense<0.000000e+00> : vector<16x64xf32>
    %45 = tpu.matmul %43, %44, %cst_23 {dimension_numbers = #tpu.dot_dimension_numbers<[1], [0], [0], [1], [0, 0, 1, 1], [], []>} : vector<16x32xbf16>, vector<32x64xbf16>, vector<16x64xf32> -> vector<16x64xf32>
    %cst_24 = arith.constant 0.000000e+00 : f32
    %46 = vector.broadcast %cst_24 : f32 to vector<16x64xf32>
    %47 = arith.cmpf ogt, %45, %46 : vector<16x64xf32>
    %cst_25 = arith.constant 2.000000e-01 : f32
    %48 = vector.broadcast %cst_25 : f32 to vector<16x64xf32>
    %49 = arith.mulf %48, %45 : vector<16x64xf32>
    %50 = arith.select %47, %45, %49 : vector<16x64xi1>, vector<16x64xf32>
    %51 = arith.truncf %50 : vector<16x64xf32> to vector<16x64xbf16>
    %c0_26 = arith.constant 0 : index
    %c0_27 = arith.constant 0 : index
    %52 = vector.load %arg8[%c0_26, %c0_27] : memref<64x32xbf16, #tpu.memory_space<vmem>>, vector<64x32xbf16>
    %cst_28 = arith.constant dense<0.000000e+00> : vector<16x32xf32>
    %53 = tpu.matmul %51, %52, %cst_28 {dimension_numbers = #tpu.dot_dimension_numbers<[1], [0], [0], [1], [0, 0, 1, 1], [], []>} : vector<16x64xbf16>, vector<64x32xbf16>, vector<16x32xf32> -> vector<16x32xf32>
    %54 = arith.addf %42, %53 : vector<16x32xf32>
    %c0_29 = arith.constant 0 : index
    %c0_30 = arith.constant 0 : index
    %55 = vector.load %arg11[%c0_29, %c0_30] : memref<1x32xf32, #tpu.memory_space<vmem>>, vector<1x32xf32>
    %56 = vector.broadcast %55 : vector<1x32xf32> to vector<16x32xf32>
    %57 = arith.mulf %54, %56 : vector<16x32xf32>
    %c0_31 = arith.constant 0 : index
    %c0_32 = arith.constant 0 : index
    %58 = vector.load %arg12[%c0_31, %c0_32] : memref<1x32xf32, #tpu.memory_space<vmem>>, vector<1x32xf32>
    %59 = vector.broadcast %58 : vector<1x32xf32> to vector<16x32xf32>
    %60 = arith.addf %57, %59 : vector<16x32xf32>
    %c0_33 = arith.constant 0 : index
    %c0_34 = arith.constant 0 : index
    %61 = vector.load %arg13[%c0_33, %c0_34] : memref<16x32xf32, #tpu.memory_space<vmem>>, vector<16x32xf32>
    tpu.vector_store %arg13[%c0_33, %c0_34], %60 {strides = array<i32>} : memref<16x32xf32, #tpu.memory_space<vmem>>, vector<16x32xf32>,
    return
  }
  func.func @transform_0(%arg0: i32) -> (i32, i32) {
    %c0_i32 = arith.constant 0 : i32
    %c0_i32_0 = arith.constant 0 : i32
    return %arg0, %c0_i32 : i32, i32
  }
  func.func @transform_1(%arg0: i32) -> (i32, i32) {
    %c0_i32 = arith.constant 0 : i32
    %c0_i32_0 = arith.constant 0 : i32
    return %arg0, %c0_i32 : i32, i32
  }
  func.func @transform_2(%arg0: i32) -> (i32, i32) {
    %c0_i32 = arith.constant 0 : i32
    %c0_i32_0 = arith.constant 0 : i32
    %c0_i32_1 = arith.constant 0 : i32
    return %c0_i32, %c0_i32_0 : i32, i32
  }
  func.func @transform_3(%arg0: i32) -> (i32, i32) {
    %c0_i32 = arith.constant 0 : i32
    %c0_i32_0 = arith.constant 0 : i32
    %c0_i32_1 = arith.constant 0 : i32
    return %c0_i32, %c0_i32_0 : i32, i32
  }
  func.func @transform_4(%arg0: i32) -> (i32, i32) {
    %c0_i32 = arith.constant 0 : i32
    %c0_i32_0 = arith.constant 0 : i32
    %c0_i32_1 = arith.constant 0 : i32
    return %c0_i32, %c0_i32_0 : i32, i32
  }
  func.func @transform_5(%arg0: i32) -> (i32, i32) {
    %c0_i32 = arith.constant 0 : i32
    %c0_i32_0 = arith.constant 0 : i32
    %c0_i32_1 = arith.constant 0 : i32
    return %c0_i32, %c0_i32_0 : i32, i32
  }
  func.func @transform_6(%arg0: i32) -> (i32, i32) {
    %c0_i32 = arith.constant 0 : i32
    %c0_i32_0 = arith.constant 0 : i32
    %c0_i32_1 = arith.constant 0 : i32
    return %c0_i32, %c0_i32_0 : i32, i32
  }
  func.func @transform_7(%arg0: i32) -> (i32, i32) {
    %c0_i32 = arith.constant 0 : i32
    %c0_i32_0 = arith.constant 0 : i32
    %c0_i32_1 = arith.constant 0 : i32
    return %c0_i32, %c0_i32_0 : i32, i32
  }
  func.func @transform_8(%arg0: i32) -> (i32, i32) {
    %c0_i32 = arith.constant 0 : i32
    %c0_i32_0 = arith.constant 0 : i32
    %c0_i32_1 = arith.constant 0 : i32
    return %c0_i32, %c0_i32_0 : i32, i32
  }
  func.func @transform_9(%arg0: i32) -> (i32, i32) {
    %c0_i32 = arith.constant 0 : i32
    %c0_i32_0 = arith.constant 0 : i32
    %c0_i32_1 = arith.constant 0 : i32
    return %c0_i32, %c0_i32_0 : i32, i32
  }
  func.func @transform_10(%arg0: i32) -> (i32, i32) {
    %c0_i32 = arith.constant 0 : i32
    %c0_i32_0 = arith.constant 0 : i32
    %c0_i32_1 = arith.constant 0 : i32
    return %c0_i32, %c0_i32_0 : i32, i32
  }
  func.func @transform_11(%arg0: i32) -> (i32, i32) {
    %c0_i32 = arith.constant 0 : i32
    %c0_i32_0 = arith.constant 0 : i32
    %c0_i32_1 = arith.constant 0 : i32
    return %c0_i32, %c0_i32_0 : i32, i32
  }
  func.func @transform_12(%arg0: i32) -> (i32, i32) {
    %c0_i32 = arith.constant 0 : i32
    %c0_i32_0 = arith.constant 0 : i32
    return %arg0, %c0_i32 : i32, i32
  }
}

</mosaic_0001>

<llo_original>
// kernel: tpu_custom_call.1
$region0: #{tpu_custom_call.1}
  #allocation0 [shape = 'u32[]', space=smem, size = 0x4, offset = 0x4, fixed_abs, tag = 'smem constant byte address 0x4 - core index']
  #allocation1 [shape = 'u32[144,128]{1,0:T(1,128)}', space=vmem, size = 0x12000, scoped, tag = 'internal scratch']
  %s0 = inlined_call_operand.vmem [shape: f32[32,32], index: 0, kind: input, shape index: {}]
  %s1 = inlined_call_operand.vmem [shape: bf16[256,32], index: 1, kind: input, shape index: {}]
  %s2 = inlined_call_operand.vmem [shape: bf16[32,32], index: 2, kind: input, shape index: {}]
  %s3 = inlined_call_operand.vmem [shape: bf16[32,64], index: 3, kind: input, shape index: {}]
  %s4 = inlined_call_operand.vmem [shape: bf16[32,8], index: 4, kind: input, shape index: {}]
  %s5 = inlined_call_operand.vmem [shape: bf16[8,32], index: 5, kind: input, shape index: {}]
  %s6 = inlined_call_operand.vmem [shape: bf16[32,64], index: 6, kind: input, shape index: {}]
  %s7 = inlined_call_operand.vmem [shape: bf16[64,32], index: 7, kind: input, shape index: {}]
  %s8 = inlined_call_operand.vmem [shape: f32[1,32], index: 8, kind: input, shape index: {}]
  %s9 = inlined_call_operand.vmem [shape: f32[1,32], index: 9, kind: input, shape index: {}]
  %s10 = inlined_call_operand.vmem [shape: f32[1,32], index: 10, kind: input, shape index: {}]
  %s11 = inlined_call_operand.vmem [shape: f32[1,32], index: 11, kind: input, shape index: {}]
  %s12 = inlined_call_operand.hbm [shape: f32[32,32], index: 12, kind: output, shape index: {}]
  %s13 = sld [smem:[#allocation0]]
  $region81: #{tpu_custom_call.1} parent=0
    _
  %s15 = ssub.s32 1, %s13
  %s16 = scalar_select 0, %s15, %s13
  $region1: #{tpu_custom_call.1} parent=0
    #allocation2 [shape = 'u8[16384]{0}', space=vmem, size = 0x4000, scoped, tag = 'output window, operand 0']
    #allocation3 [shape = 's32[2]{0}', space=sflag, size = 0x8, scoped, tag = 'scoped memory for tpu_custom_call.1']
    %17 = vsyncpa [#allocation3], 0
    %s18 = scalar_lea.sflag [#allocation3], 1
    %19 = vsyncpa %s18, 0
    loop: start=0, step=1, limit=4
    $region2: #{tpu_custom_call.1} parent=1 // loop_pre_header
      _
    $region3: #{tpu_custom_call.1} parent=1 // loop_header
      %s21 = sphi 0, %s25
      %p22 = scmp.ge.s32.totalorder %s21, 4
      %s31 = sphi 0, %s33
      %s34 = sphi 0, %s31
      %s35 = sphi 0, %s34
      %s51 = sphi 0, %s35
      %s57 = sphi 0, %s59
      %s60 = sphi 0, %s57
      %s61 = sphi 0, %s60
      %s77 = sphi 0, %s61
      %s81 = sphi 0, %s81
      %s83 = sphi 0, %s81
      %s84 = sphi 0, %s83
      %s98 = sphi 0, %s84
      %s102 = sphi 0, %s102
      %s104 = sphi 0, %s102
      %s105 = sphi 0, %s104
      %s119 = sphi 0, %s105
      %s123 = sphi 0, %s123
      %s125 = sphi 0, %s123
      %s126 = sphi 0, %s125
      %s140 = sphi 0, %s126
      %s144 = sphi 0, %s144
      %s146 = sphi 0, %s144
      %s147 = sphi 0, %s146
      %s161 = sphi 0, %s147
      %s165 = sphi 0, %s165
      %s167 = sphi 0, %s165
      %s168 = sphi 0, %s167
      %s182 = sphi 0, %s168
      %s186 = sphi 0, %s186
      %s188 = sphi 0, %s186
      %s189 = sphi 0, %s188
      %s203 = sphi 0, %s189
      %s207 = sphi 0, %s207
      %s209 = sphi 0, %s207
      %s210 = sphi 0, %s209
      %s224 = sphi 0, %s210
      %s228 = sphi 0, %s228
      %s230 = sphi 0, %s228
      %s231 = sphi 0, %s230
      %s245 = sphi 0, %s231
      %s249 = sphi 0, %s249
      %s251 = sphi 0, %s249
      %s252 = sphi 0, %s251
      %s266 = sphi 0, %s252
      %s270 = sphi 0, %s270
      %s272 = sphi 0, %s270
      %s273 = sphi 0, %s272
      %s287 = sphi 0, %s273
      %s293 = sphi 0, %s295
      %s296 = sphi 0, %s293
      %s297 = sphi 0, %s296
      %s313 = sphi 0, %s297
    $region4: #{tpu_custom_call.1} parent=1 // loop_header_branch
      %24 = sbr.rel (%p22) target = $region8
    $region5: #{tpu_custom_call.1} parent=1 // loop_body
      %s26 = ssub.s32 %s21, 1
      %s27 = ssub.s32 %s21, 2
      %s28 = sadd.s32 %s21, 1
      %s29 = ssub.s32 %s21, %s28
      %p30 = scmp.eq.s32.totalorder %s29, 0
      %s32 = sadd.s32 %s31, 1
      %s33 = scalar_select %p30, %s31, %s32
      %p36 = pneg %p30
      %p37 = scmp.eq.s32.totalorder %s21, 1
      %p38 = por %p36, %p37
      %p39 = scmp.ne.s32.totalorder %s31, %s34
      %p40 = scmp.eq.s32.totalorder %s21, 0
      %p41 = por %p39, %p40
      %p42 = scmp.ne.s32.totalorder %s31, %s34
      %p43 = scmp.eq.s32.totalorder %s26, 1
      %p44 = por %p42, %p43
      %p45 = scmp.ne.s32.totalorder %s34, %s35
      %p46 = scmp.eq.s32.totalorder %s26, 0
      %p47 = por %p45, %p46
      %p48 = scmp.ne.s32.totalorder %s34, %s35
      %p49 = scmp.eq.s32.totalorder %s27, 1
      %p50 = por %p48, %p49
      %p52 = scmp.ne.s32.totalorder %s35, %s51
      %p53 = scmp.eq.s32.totalorder %s27, 0
      %p54 = por %p52, %p53
      %s55 = ssub.s32 %s21, %s28
      %p56 = scmp.eq.s32.totalorder %s55, 0
      %s58 = sadd.s32 %s57, 1
      %s59 = scalar_select %p56, %s57, %s58
      %p62 = pneg %p56
      %p63 = scmp.eq.s32.totalorder %s21, 1
      %p64 = por %p62, %p63
      %p65 = scmp.ne.s32.totalorder %s57, %s60
      %p66 = scmp.eq.s32.totalorder %s21, 0
      %p67 = por %p65, %p66
      %p68 = scmp.ne.s32.totalorder %s57, %s60
      %p69 = scmp.eq.s32.totalorder %s26, 1
      %p70 = por %p68, %p69
      %p71 = scmp.ne.s32.totalorder %s60, %s61
      %p72 = scmp.eq.s32.totalorder %s26, 0
      %p73 = por %p71, %p72
      %p74 = scmp.ne.s32.totalorder %s60, %s61
      %p75 = scmp.eq.s32.totalorder %s27, 1
      %p76 = por %p74, %p75
      %p78 = scmp.ne.s32.totalorder %s61, %s77
      %p79 = scmp.eq.s32.totalorder %s27, 0
      %p80 = por %p78, %p79
      %s82 = sadd.s32 %s81, 1
      %p85 = scmp.eq.s32.totalorder %s21, 1
      %p86 = scmp.ne.s32.totalorder %s81, %s83
      %p87 = scmp.eq.s32.totalorder %s21, 0
      %p88 = por %p86, %p87
      %p89 = scmp.ne.s32.totalorder %s81, %s83
      %p90 = scmp.eq.s32.totalorder %s26, 1
      %p91 = por %p89, %p90
      %p92 = scmp.ne.s32.totalorder %s83, %s84
      %p93 = scmp.eq.s32.totalorder %s26, 0
      %p94 = por %p92, %p93
      %p95 = scmp.ne.s32.totalorder %s83, %s84
      %p96 = scmp.eq.s32.totalorder %s27, 1
      %p97 = por %p95, %p96
      %p99 = scmp.ne.s32.totalorder %s84, %s98
      %p100 = scmp.eq.s32.totalorder %s27, 0
      %p101 = por %p99, %p100
      %s103 = sadd.s32 %s102, 1
      %p106 = scmp.eq.s32.totalorder %s21, 1
      %p107 = scmp.ne.s32.totalorder %s102, %s104
      %p108 = scmp.eq.s32.totalorder %s21, 0
      %p109 = por %p107, %p108
      %p110 = scmp.ne.s32.totalorder %s102, %s104
      %p111 = scmp.eq.s32.totalorder %s26, 1
      %p112 = por %p110, %p111
      %p113 = scmp.ne.s32.totalorder %s104, %s105
      %p114 = scmp.eq.s32.totalorder %s26, 0
      %p115 = por %p113, %p114
      %p116 = scmp.ne.s32.totalorder %s104, %s105
      %p117 = scmp.eq.s32.totalorder %s27, 1
      %p118 = por %p116, %p117
      %p120 = scmp.ne.s32.totalorder %s105, %s119
      %p121 = scmp.eq.s32.totalorder %s27, 0
      %p122 = por %p120, %p121
      %s124 = sadd.s32 %s123, 1
      %p127 = scmp.eq.s32.totalorder %s21, 1
      %p128 = scmp.ne.s32.totalorder %s123, %s125
      %p129 = scmp.eq.s32.totalorder %s21, 0
      %p130 = por %p128, %p129
      %p131 = scmp.ne.s32.totalorder %s123, %s125
      %p132 = scmp.eq.s32.totalorder %s26, 1
      %p133 = por %p131, %p132
      %p134 = scmp.ne.s32.totalorder %s125, %s126
      %p135 = scmp.eq.s32.totalorder %s26, 0
      %p136 = por %p134, %p135
      %p137 = scmp.ne.s32.totalorder %s125, %s126
      %p138 = scmp.eq.s32.totalorder %s27, 1
      %p139 = por %p137, %p138
      %p141 = scmp.ne.s32.totalorder %s126, %s140
      %p142 = scmp.eq.s32.totalorder %s27, 0
      %p143 = por %p141, %p142
      %s145 = sadd.s32 %s144, 1
      %p148 = scmp.eq.s32.totalorder %s21, 1
      %p149 = scmp.ne.s32.totalorder %s144, %s146
      %p150 = scmp.eq.s32.totalorder %s21, 0
      %p151 = por %p149, %p150
      %p152 = scmp.ne.s32.totalorder %s144, %s146
      %p153 = scmp.eq.s32.totalorder %s26, 1
      %p154 = por %p152, %p153
      %p155 = scmp.ne.s32.totalorder %s146, %s147
      %p156 = scmp.eq.s32.totalorder %s26, 0
      %p157 = por %p155, %p156
      %p158 = scmp.ne.s32.totalorder %s146, %s147
      %p159 = scmp.eq.s32.totalorder %s27, 1
      %p160 = por %p158, %p159
      %p162 = scmp.ne.s32.totalorder %s147, %s161
      %p163 = scmp.eq.s32.totalorder %s27, 0
      %p164 = por %p162, %p163
      %s166 = sadd.s32 %s165, 1
      %p169 = scmp.eq.s32.totalorder %s21, 1
      %p170 = scmp.ne.s32.totalorder %s165, %s167
      %p171 = scmp.eq.s32.totalorder %s21, 0
      %p172 = por %p170, %p171
      %p173 = scmp.ne.s32.totalorder %s165, %s167
      %p174 = scmp.eq.s32.totalorder %s26, 1
      %p175 = por %p173, %p174
      %p176 = scmp.ne.s32.totalorder %s167, %s168
      %p177 = scmp.eq.s32.totalorder %s26, 0
      %p178 = por %p176, %p177
      %p179 = scmp.ne.s32.totalorder %s167, %s168
      %p180 = scmp.eq.s32.totalorder %s27, 1
      %p181 = por %p179, %p180
      %p183 = scmp.ne.s32.totalorder %s168, %s182
      %p184 = scmp.eq.s32.totalorder %s27, 0
      %p185 = por %p183, %p184
      %s187 = sadd.s32 %s186, 1
      %p190 = scmp.eq.s32.totalorder %s21, 1
      %p191 = scmp.ne.s32.totalorder %s186, %s188
      %p192 = scmp.eq.s32.totalorder %s21, 0
      %p193 = por %p191, %p192
      %p194 = scmp.ne.s32.totalorder %s186, %s188
      %p195 = scmp.eq.s32.totalorder %s26, 1
      %p196 = por %p194, %p195
      %p197 = scmp.ne.s32.totalorder %s188, %s189
      %p198 = scmp.eq.s32.totalorder %s26, 0
      %p199 = por %p197, %p198
      %p200 = scmp.ne.s32.totalorder %s188, %s189
      %p201 = scmp.eq.s32.totalorder %s27, 1
      %p202 = por %p200, %p201
      %p204 = scmp.ne.s32.totalorder %s189, %s203
      %p205 = scmp.eq.s32.totalorder %s27, 0
      %p206 = por %p204, %p205
      %s208 = sadd.s32 %s207, 1
      %p211 = scmp.eq.s32.totalorder %s21, 1
      %p212 = scmp.ne.s32.totalorder %s207, %s209
      %p213 = scmp.eq.s32.totalorder %s21, 0
      %p214 = por %p212, %p213
      %p215 = scmp.ne.s32.totalorder %s207, %s209
      %p216 = scmp.eq.s32.totalorder %s26, 1
      %p217 = por %p215, %p216
      %p218 = scmp.ne.s32.totalorder %s209, %s210
      %p219 = scmp.eq.s32.totalorder %s26, 0
      %p220 = por %p218, %p219
      %p221 = scmp.ne.s32.totalorder %s209, %s210
      %p222 = scmp.eq.s32.totalorder %s27, 1
      %p223 = por %p221, %p222
      %p225 = scmp.ne.s32.totalorder %s210, %s224
      %p226 = scmp.eq.s32.totalorder %s27, 0
      %p227 = por %p225, %p226
      %s229 = sadd.s32 %s228, 1
      %p232 = scmp.eq.s32.totalorder %s21, 1
      %p233 = scmp.ne.s32.totalorder %s228, %s230
      %p234 = scmp.eq.s32.totalorder %s21, 0
      %p235 = por %p233, %p234
      %p236 = scmp.ne.s32.totalorder %s228, %s230
      %p237 = scmp.eq.s32.totalorder %s26, 1
      %p238 = por %p236, %p237
      %p239 = scmp.ne.s32.totalorder %s230, %s231
      %p240 = scmp.eq.s32.totalorder %s26, 0
      %p241 = por %p239, %p240
      %p242 = scmp.ne.s32.totalorder %s230, %s231
      %p243 = scmp.eq.s32.totalorder %s27, 1
      %p244 = por %p242, %p243
      %p246 = scmp.ne.s32.totalorder %s231, %s245
      %p247 = scmp.eq.s32.totalorder %s27, 0
      %p248 = por %p246, %p247
      %s250 = sadd.s32 %s249, 1
      %p253 = scmp.eq.s32.totalorder %s21, 1
      %p254 = scmp.ne.s32.totalorder %s249, %s251
      %p255 = scmp.eq.s32.totalorder %s21, 0
      %p256 = por %p254, %p255
      %p257 = scmp.ne.s32.totalorder %s249, %s251
      %p258 = scmp.eq.s32.totalorder %s26, 1
      %p259 = por %p257, %p258
      %p260 = scmp.ne.s32.totalorder %s251, %s252
      %p261 = scmp.eq.s32.totalorder %s26, 0
      %p262 = por %p260, %p261
      %p263 = scmp.ne.s32.totalorder %s251, %s252
      %p264 = scmp.eq.s32.totalorder %s27, 1
      %p265 = por %p263, %p264
      %p267 = scmp.ne.s32.totalorder %s252, %s266
      %p268 = scmp.eq.s32.totalorder %s27, 0
      %p269 = por %p267, %p268
      %s271 = sadd.s32 %s270, 1
      %p274 = scmp.eq.s32.totalorder %s21, 1
      %p275 = scmp.ne.s32.totalorder %s270, %s272
      %p276 = scmp.eq.s32.totalorder %s21, 0
      %p277 = por %p275, %p276
      %p278 = scmp.ne.s32.totalorder %s270, %s272
      %p279 = scmp.eq.s32.totalorder %s26, 1
      %p280 = por %p278, %p279
      %p281 = scmp.ne.s32.totalorder %s272, %s273
      %p282 = scmp.eq.s32.totalorder %s26, 0
      %p283 = por %p281, %p282
      %p284 = scmp.ne.s32.totalorder %s272, %s273
      %p285 = scmp.eq.s32.totalorder %s27, 1
      %p286 = por %p284, %p285
      %p288 = scmp.ne.s32.totalorder %s273, %s287
      %p289 = scmp.eq.s32.totalorder %s27, 0
      %p290 = por %p288, %p289
      %s291 = ssub.s32 %s21, %s28
      %p292 = scmp.eq.s32.totalorder %s291, 0
      %s294 = sadd.s32 %s293, 1
      %s295 = scalar_select %p292, %s293, %s294
      %p298 = pneg %p292
      %p299 = scmp.eq.s32.totalorder %s21, 1
      %p300 = por %p298, %p299
      %p301 = scmp.ne.s32.totalorder %s293, %s296
      %p302 = scmp.eq.s32.totalorder %s21, 0
      %p303 = por %p301, %p302
      %p304 = scmp.ne.s32.totalorder %s293, %s296
      %p305 = scmp.eq.s32.totalorder %s26, 1
      %p306 = por %p304, %p305
      %p307 = scmp.ne.s32.totalorder %s296, %s297
      %p308 = scmp.eq.s32.totalorder %s26, 0
      %p309 = por %p307, %p308
      %p310 = scmp.ne.s32.totalorder %s296, %s297
      %p311 = scmp.eq.s32.totalorder %s27, 1
      %p312 = por %p310, %p311
      %p314 = scmp.ne.s32.totalorder %s297, %s313
      %p315 = scmp.eq.s32.totalorder %s27, 0
      %p316 = por %p314, %p315
      %p317 = scmp.le.s32.totalorder 1, %s21
      %p318 = scmp.lt.s32.totalorder %s21, 3
      %p319 = pnand %p317, %p318
      %p320 = pneg %p319
      // Predicated region
      $region9: #{tpu_custom_call.1} parent=5 // pred_check
        _
      $region10: #{tpu_custom_call.1} parent=5 // pred_check_branch
        %322 = sbr.rel (%p319) target = $region12
      $region11: #{tpu_custom_call.1} parent=5 // pred_region
        %s323 = ssub.s32 %s21, 1
        // Predicated region
        $region13: #{tpu_custom_call.1} parent=11 // pred_check
          %p324 = pneg %p94
        $region14: #{tpu_custom_call.1} parent=11 // pred_check_branch
          %326 = sbr.rel (%p324) target = $region16
        $region15: #{tpu_custom_call.1} parent=11 // pred_region
          _
        $region16: #{tpu_custom_call.1} parent=11 // pred_fallthru
          _
        // Predicated region
        $region17: #{tpu_custom_call.1} parent=11 // pred_check
          %p327 = pneg %p115
        $region18: #{tpu_custom_call.1} parent=11 // pred_check_branch
          %329 = sbr.rel (%p327) target = $region20
        $region19: #{tpu_custom_call.1} parent=11 // pred_region
          _
        $region20: #{tpu_custom_call.1} parent=11 // pred_fallthru
          _
        // Predicated region
        $region21: #{tpu_custom_call.1} parent=11 // pred_check
          %p330 = pneg %p136
        $region22: #{tpu_custom_call.1} parent=11 // pred_check_branch
          %332 = sbr.rel (%p330) target = $region24
        $region23: #{tpu_custom_call.1} parent=11 // pred_region
          _
        $region24: #{tpu_custom_call.1} parent=11 // pred_fallthru
          _
        // Predicated region
        $region25: #{tpu_custom_call.1} parent=11 // pred_check
          %p333 = pneg %p157
        $region26: #{tpu_custom_call.1} parent=11 // pred_check_branch
          %335 = sbr.rel (%p333) target = $region28
        $region27: #{tpu_custom_call.1} parent=11 // pred_region
          _
        $region28: #{tpu_custom_call.1} parent=11 // pred_fallthru
          _
        // Predicated region
        $region29: #{tpu_custom_call.1} parent=11 // pred_check
          %p336 = pneg %p178
        $region30: #{tpu_custom_call.1} parent=11 // pred_check_branch
          %338 = sbr.rel (%p336) target = $region32
        $region31: #{tpu_custom_call.1} parent=11 // pred_region
          _
        $region32: #{tpu_custom_call.1} parent=11 // pred_fallthru
          _
        // Predicated region
        $region33: #{tpu_custom_call.1} parent=11 // pred_check
          %p339 = pneg %p199
        $region34: #{tpu_custom_call.1} parent=11 // pred_check_branch
          %341 = sbr.rel (%p339) target = $region36
        $region35: #{tpu_custom_call.1} parent=11 // pred_region
          _
        $region36: #{tpu_custom_call.1} parent=11 // pred_fallthru
          _
        // Predicated region
        $region37: #{tpu_custom_call.1} parent=11 // pred_check
          %p342 = pneg %p220
        $region38: #{tpu_custom_call.1} parent=11 // pred_check_branch
          %344 = sbr.rel (%p342) target = $region40
        $region39: #{tpu_custom_call.1} parent=11 // pred_region
          _
        $region40: #{tpu_custom_call.1} parent=11 // pred_fallthru
          _
        // Predicated region
        $region41: #{tpu_custom_call.1} parent=11 // pred_check
          %p345 = pneg %p241
        $region42: #{tpu_custom_call.1} parent=11 // pred_check_branch
          %347 = sbr.rel (%p345) target = $region44
        $region43: #{tpu_custom_call.1} parent=11 // pred_region
          _
        $region44: #{tpu_custom_call.1} parent=11 // pred_fallthru
          _
        // Predicated region
        $region45: #{tpu_custom_call.1} parent=11 // pred_check
          %p348 = pneg %p262
        $region46: #{tpu_custom_call.1} parent=11 // pred_check_branch
          %350 = sbr.rel (%p348) target = $region48
        $region47: #{tpu_custom_call.1} parent=11 // pred_region
          _
        $region48: #{tpu_custom_call.1} parent=11 // pred_fallthru
          _
        // Predicated region
        $region49: #{tpu_custom_call.1} parent=11 // pred_check
          %p351 = pneg %p283
        $region50: #{tpu_custom_call.1} parent=11 // pred_check_branch
          %353 = sbr.rel (%p351) target = $region52
        $region51: #{tpu_custom_call.1} parent=11 // pred_region
          _
        $region52: #{tpu_custom_call.1} parent=11 // pred_fallthru
          _
      $region12: #{tpu_custom_call.1} parent=5 // pred_fallthru
        _
      %p354 = scmp.lt.s32.totalorder %s21, 2
      // Predicated region
      $region53: #{tpu_custom_call.1} parent=5 // pred_check
        %p355 = pneg %p354
      $region54: #{tpu_custom_call.1} parent=5 // pred_check_branch
        %357 = sbr.rel (%p355) target = $region56
      $region55: #{tpu_custom_call.1} parent=5 // pred_region
        // Predicated region
        $region57: #{tpu_custom_call.1} parent=55 // pred_check
          %p358 = pneg %p41
        $region58: #{tpu_custom_call.1} parent=55 // pred_check_branch
          %360 = sbr.rel (%p358) target = $region60
        $region59: #{tpu_custom_call.1} parent=55 // pred_region
          %s361 = smul.u32 2, %s21
          %p362 = scmp.lt.s32.totalorder %s361, 3
          %s363 = scalar_select %p362, %s361, 3
          %s364 = smul.addr %s363, 8
          %s365 = scalar_lea.vmem %s0, %s364
          %s366 = smul.u32 2, %s21
        $region60: #{tpu_custom_call.1} parent=55 // pred_fallthru
          _
        // Predicated region
        $region61: #{tpu_custom_call.1} parent=55 // pred_check
          %p367 = pneg %p67
        $region62: #{tpu_custom_call.1} parent=55 // pred_check_branch
          %369 = sbr.rel (%p367) target = $region64
        $region63: #{tpu_custom_call.1} parent=55 // pred_region
          %s370 = smul.u32 16, %s21
          %p371 = scmp.lt.s32.totalorder %s370, 31
          %s372 = scalar_select %p371, %s370, 31
          %s373 = smul.addr %s372, 4
          %s374 = scalar_lea.vmem %s1, %s373
          %s375 = smul.u32 16, %s21
        $region64: #{tpu_custom_call.1} parent=55 // pred_fallthru
          _
      $region56: #{tpu_custom_call.1} parent=5 // pred_fallthru
        _
      %p376 = scmp.le.s32.totalorder 1, %s21
      %p377 = scmp.lt.s32.totalorder %s21, 3
      %p378 = pnand %p376, %p377
      %p379 = pneg %p378
      // Predicated region
      $region65: #{tpu_custom_call.1} parent=5 // pred_check
        _
      $region66: #{tpu_custom_call.1} parent=5 // pred_check_branch
        %381 = sbr.rel (%p378) target = $region68
      $region67: #{tpu_custom_call.1} parent=5 // pred_region
        %s382 = ssub.s32 %s21, 1
        %s383 = smul.u32 2, %s26
        %p384 = scmp.lt.s32.totalorder %s383, 3
        %s385 = scalar_select %p384, %s383, 3
        %s386 = smul.addr %s385, 8
        %s387 = scalar_lea.vmem %s0, %s386
        %p388 = pneg %p47
        %p389 = pneg %p44
        %s390 = smul.u32 16, %s26
        %p391 = scmp.lt.s32.totalorder %s390, 31
        %s392 = scalar_select %p391, %s390, 31
        %s393 = smul.addr %s392, 4
        %s394 = scalar_lea.vmem %s1, %s393
        %p395 = pneg %p73
        %p396 = pneg %p70
        %p397 = pneg %p94
        %p398 = pneg %p91
        %p399 = pneg %p115
        %p400 = pneg %p112
        %p401 = pneg %p136
        %p402 = pneg %p133
        %p403 = pneg %p157
        %p404 = pneg %p154
        %p405 = pneg %p178
        %p406 = pneg %p175
        %p407 = pneg %p199
        %p408 = pneg %p196
        %p409 = pneg %p220
        %p410 = pneg %p217
        %p411 = pneg %p241
        %p412 = pneg %p238
        %p413 = pneg %p262
        %p414 = pneg %p259
        %p415 = pneg %p283
        %p416 = pneg %p280
        %p417 = pneg %p309
        %p418 = pneg %p306
        %s419 = sand.u32 %s296, 1
        %s420 = scalar_lea.sflag [#allocation3], %s419
        %s421 = sand.u32 %s296, 1
        %s422 = smul.addr %s421, 16
        %s423 = scalar_lea.vmem [#allocation2], %s422
        %s424 = smul.u32 2, %s26
        %p425 = scmp.lt.s32.totalorder %s424, 3
        %s426 = scalar_select %p425, %s424, 3
        %s427 = smul.addr %s426, 8
        %s428 = scalar_lea.vmem %s0, %s427
        %s429 = smul.u32 2, %s26
        %s430 = smul.u32 16, %s26
        %p431 = scmp.lt.s32.totalorder %s430, 31
        %s432 = scalar_select %p431, %s430, 31
        %s433 = smul.addr %s432, 4
        %s434 = scalar_lea.vmem %s1, %s433
        %s435 = smul.u32 16, %s26
        %s436 = smul.u32 2, %s26
        %v438 = vld [vmem:[%s428] sm:$0xff]
        %v439 = vld [vmem:[%s428 + $0x8] sm:$0xff]
        %v440 = vpack.c.bf16 %v439, %v438
        %v441 = vld [vmem:[%s2] sm:$0xf]
        %v442 = vld [vmem:[%s2 + $0x4] sm:$0xf]
        %v443 = vld [vmem:[%s2 + $0x8] sm:$0xf]
        %v444 = vld [vmem:[%s2 + $0xc] sm:$0xf]
        %v449 = vunpack.c.l.b16 %v441
        %v450 = vunpack.c.l.b16 %v442
        %v451 = vunpack.c.l.b16 %v443
        %v452 = vunpack.c.l.b16 %v444
        %v453 = vpack.c.b16 %v450, %v449
        %v454 = vpack.c.b16 %v452, %v451
        %vm457 = vcmask 261120
        %v459 = vsel %vm457, %v440, 0
        %461 = vmatprep.subr.bf16.mxu0 0
        %462 = vmatpush1.bf16.msra.mxu0 %v453
        %463 = vmatprep.subr.bf16.mxu0 0
        %464 = vmatpush1.bf16.msra.mxu0 %v454
        %465 = vmatprep.subr.bf16.mxu0 0
        %466 = vmatpush1.bf16.msra.mxu0 0
        %467 = vmatprep.subr.bf16.mxu0 0
        %468 = vmatpush1.bf16.msra.mxu0 0
        %469 = vmatprep.subr.bf16.mxu0 0
        %470 = vmatpush1.bf16.msra.mxu0 0
        %471 = vmatprep.subr.bf16.mxu0 0
        %472 = vmatpush1.bf16.msra.mxu0 0
        %473 = vmatprep.subr.bf16.mxu0 0
        %474 = vmatpush1.bf16.msra.mxu0 0
        %475 = vmatprep.subr.bf16.mxu0 0
        %476 = vmatpush1.bf16.msra.mxu0 0
        %477 = vmatprep.subr.bf16.mxu0 0
        %478 = vmatpush1.bf16.msra.mxu0 0
        %479 = vmatprep.subr.bf16.mxu0 0
        %480 = vmatpush1.bf16.msra.mxu0 0
        %481 = vmatprep.subr.bf16.mxu0 0
        %482 = vmatpush1.bf16.msra.mxu0 0
        %483 = vmatprep.subr.bf16.mxu0 0
        %484 = vmatpush1.bf16.msra.mxu0 0
        %485 = vmatprep.subr.bf16.mxu0 0
        %486 = vmatpush1.bf16.msra.mxu0 0
        %487 = vmatprep.subr.bf16.mxu0 0
        %488 = vmatpush1.bf16.msra.mxu0 0
        %489 = vmatprep.subr.bf16.mxu0 0
        %490 = vmatpush1.bf16.msra.mxu0 0
        %491 = vmatprep.subr.bf16.mxu0 0
        %492 = vmatpush1.bf16.msra.mxu0 0
        %493 = vmatprep.mubr.bf16.mxu0 0
        %494 = vmatmul.mubr.bf16.gmra.mrb[0].mxu0 %v459
        %v495 = vpop.f32.mrb[0].mxu0
        %v496 = vadd.f32 0.0, %v495
        %v497 = vpop.f32.mrb[0].mxu0
        %v498 = vpop.f32.mrb[0].mxu0
        %v499 = vadd.f32 0.0, %v498
        %v500 = vpop.f32.mrb[0].mxu0
        %501 = vdwg.mxu0
        %v502 = vld [vmem:[%s434] sm:$0xf]
        %v503 = vld [vmem:[%s434 + $0x4] sm:$0xf]
        %v504 = vld [vmem:[%s434 + $0x8] sm:$0xf]
        %v505 = vld [vmem:[%s434 + $0xc] sm:$0xf]
        %v506 = vld [vmem:[%s434 + $0x10] sm:$0xf]
        %v507 = vld [vmem:[%s434 + $0x14] sm:$0xf]
        %v508 = vld [vmem:[%s434 + $0x18] sm:$0xf]
        %v509 = vld [vmem:[%s434 + $0x1c] sm:$0xf]
        %v510 = vld [vmem:[%s434 + $0x20] sm:$0xf]
        %v511 = vld [vmem:[%s434 + $0x24] sm:$0xf]
        %v512 = vld [vmem:[%s434 + $0x28] sm:$0xf]
        %v513 = vld [vmem:[%s434 + $0x2c] sm:$0xf]
        %v514 = vld [vmem:[%s434 + $0x30] sm:$0xf]
        %v515 = vld [vmem:[%s434 + $0x34] sm:$0xf]
        %v516 = vld [vmem:[%s434 + $0x38] sm:$0xf]
        %v517 = vld [vmem:[%s434 + $0x3c] sm:$0xf]
        %v518 = vld [vmem:[%s3] sm:$0xf]
        %v519 = vld [vmem:[%s3 + $0x4] sm:$0xf]
        %v520 = vld [vmem:[%s3 + $0x8] sm:$0xf]
        %v521 = vld [vmem:[%s3 + $0xc] sm:$0xf]
        %v538 = vunpack.c.l.b16 %v502
        %v539 = vunpack.c.l.b16 %v503
        %v540 = vunpack.c.l.b16 %v504
        %v541 = vunpack.c.l.b16 %v505
        %v542 = vunpack.c.l.b16 %v506
        %v543 = vunpack.c.l.b16 %v507
        %v544 = vunpack.c.l.b16 %v508
        %v545 = vunpack.c.l.b16 %v509
        %v546 = vunpack.c.l.b16 %v510
        %v547 = vunpack.c.l.b16 %v511
        %v548 = vunpack.c.l.b16 %v512
        %v549 = vunpack.c.l.b16 %v513
        %v550 = vunpack.c.l.b16 %v514
        %v551 = vunpack.c.l.b16 %v515
        %v552 = vunpack.c.l.b16 %v516
        %v553 = vunpack.c.l.b16 %v517
        %v554 = vpack.c.b16 %v539, %v538
        %v555 = vpack.c.b16 %v541, %v540
        %v556 = vpack.c.b16 %v543, %v542
        %v557 = vpack.c.b16 %v545, %v544
        %v558 = vpack.c.b16 %v547, %v546
        %v559 = vpack.c.b16 %v549, %v548
        %v560 = vpack.c.b16 %v551, %v550
        %v561 = vpack.c.b16 %v553, %v552
        %v566 = vunpack.c.l.b16 %v518
        %v567 = vunpack.c.l.b16 %v519
        %v568 = vunpack.c.l.b16 %v520
        %v569 = vunpack.c.l.b16 %v521
        %v570 = vpack.c.b16 %v567, %v566
        %v571 = vpack.c.b16 %v569, %v568
        %v575 = vsel %vm457, %v554, 0
        %v578 = vsel %vm457, %v555, 0
        %v581 = vsel %vm457, %v556, 0
        %v584 = vsel %vm457, %v557, 0
        %v587 = vsel %vm457, %v558, 0
        %v590 = vsel %vm457, %v559, 0
        %v593 = vsel %vm457, %v560, 0
        %v596 = vsel %vm457, %v561, 0
        %598 = vmatprep.subr.bf16.mxu0 0
        %599 = vmatpush1.bf16.msra.mxu0 %v570
        %600 = vmatprep.subr.bf16.mxu0 0
        %601 = vmatpush1.bf16.msra.mxu0 %v571
        %602 = vmatprep.subr.bf16.mxu0 0
        %603 = vmatpush1.bf16.msra.mxu0 0
        %604 = vmatprep.subr.bf16.mxu0 0
        %605 = vmatpush1.bf16.msra.mxu0 0
        %606 = vmatprep.subr.bf16.mxu0 0
        %607 = vmatpush1.bf16.msra.mxu0 0
        %608 = vmatprep.subr.bf16.mxu0 0
        %609 = vmatpush1.bf16.msra.mxu0 0
        %610 = vmatprep.subr.bf16.mxu0 0
        %611 = vmatpush1.bf16.msra.mxu0 0
        %612 = vmatprep.subr.bf16.mxu0 0
        %613 = vmatpush1.bf16.msra.mxu0 0
        %614 = vmatprep.subr.bf16.mxu0 0
        %615 = vmatpush1.bf16.msra.mxu0 0
        %616 = vmatprep.subr.bf16.mxu0 0
        %617 = vmatpush1.bf16.msra.mxu0 0
        %618 = vmatprep.subr.bf16.mxu0 0
        %619 = vmatpush1.bf16.msra.mxu0 0
        %620 = vmatprep.subr.bf16.mxu0 0
        %621 = vmatpush1.bf16.msra.mxu0 0
        %622 = vmatprep.subr.bf16.mxu0 0
        %623 = vmatpush1.bf16.msra.mxu0 0
        %624 = vmatprep.subr.bf16.mxu0 0
        %625 = vmatpush1.bf16.msra.mxu0 0
        %626 = vmatprep.subr.bf16.mxu0 0
        %627 = vmatpush1.bf16.msra.mxu0 0
        %628 = vmatprep.subr.bf16.mxu0 0
        %629 = vmatpush1.bf16.msra.mxu0 0
        %630 = vmatprep.mubr.bf16.mxu0 0
        %631 = vmatmul.mubr.bf16.gmra.mrb[0].mxu0 %v575
        %v632 = vpop.f32.mrb[0].mxu0
        %v633 = vadd.f32 0.0, %v632
        %v634 = vpop.f32.mrb[0].mxu0
        %v635 = vpop.f32.mrb[0].mxu0
        %v636 = vadd.f32 0.0, %v635
        %v637 = vpop.f32.mrb[0].mxu0
        %638 = vmatprep.mubr.bf16.mxu0 0
        %639 = vmatmul.mubr.bf16.gmra.mrb[0].mxu0 %v578
        %v640 = vpop.f32.mrb[0].mxu0
        %v641 = vadd.f32 0.0, %v640
        %v642 = vpop.f32.mrb[0].mxu0
        %v643 = vpop.f32.mrb[0].mxu0
        %v644 = vadd.f32 0.0, %v643
        %v645 = vpop.f32.mrb[0].mxu0
        %646 = vmatprep.mubr.bf16.mxu0 0
        %647 = vmatmul.mubr.bf16.gmra.mrb[0].mxu0 %v581
        %v648 = vpop.f32.mrb[0].mxu0
        %v649 = vadd.f32 0.0, %v648
        %v650 = vpop.f32.mrb[0].mxu0
        %v651 = vpop.f32.mrb[0].mxu0
        %v652 = vadd.f32 0.0, %v651
        %v653 = vpop.f32.mrb[0].mxu0
        %654 = vmatprep.mubr.bf16.mxu0 0
        %655 = vmatmul.mubr.bf16.gmra.mrb[0].mxu0 %v584
        %v656 = vpop.f32.mrb[0].mxu0
        %v657 = vadd.f32 0.0, %v656
        %v658 = vpop.f32.mrb[0].mxu0
        %v659 = vpop.f32.mrb[0].mxu0
        %v660 = vadd.f32 0.0, %v659
        %v661 = vpop.f32.mrb[0].mxu0
        %662 = vmatprep.mubr.bf16.mxu0 0
        %663 = vmatmul.mubr.bf16.gmra.mrb[0].mxu0 %v587
        %v664 = vpop.f32.mrb[0].mxu0
        %v665 = vadd.f32 0.0, %v664
        %v666 = vpop.f32.mrb[0].mxu0
        %v667 = vpop.f32.mrb[0].mxu0
        %v668 = vadd.f32 0.0, %v667
        %v669 = vpop.f32.mrb[0].mxu0
        %670 = vmatprep.mubr.bf16.mxu0 0
        %671 = vmatmul.mubr.bf16.gmra.mrb[0].mxu0 %v590
        %v672 = vpop.f32.mrb[0].mxu0
        %v673 = vadd.f32 0.0, %v672
        %v674 = vpop.f32.mrb[0].mxu0
        %v675 = vpop.f32.mrb[0].mxu0
        %v676 = vadd.f32 0.0, %v675
        %v677 = vpop.f32.mrb[0].mxu0
        %678 = vmatprep.mubr.bf16.mxu0 0
        %679 = vmatmul.mubr.bf16.gmra.mrb[0].mxu0 %v593
        %v680 = vpop.f32.mrb[0].mxu0
        %v681 = vadd.f32 0.0, %v680
        %v682 = vpop.f32.mrb[0].mxu0
        %v683 = vpop.f32.mrb[0].mxu0
        %v684 = vadd.f32 0.0, %v683
        %v685 = vpop.f32.mrb[0].mxu0
        %686 = vmatprep.mubr.bf16.mxu0 0
        %687 = vmatmul.mubr.bf16.gmra.mrb[0].mxu0 %v596
        %v688 = vpop.f32.mrb[0].mxu0
        %v689 = vadd.f32 0.0, %v688
        %v690 = vpop.f32.mrb[0].mxu0
        %v691 = vpop.f32.mrb[0].mxu0
        %v692 = vadd.f32 0.0, %v691
        %v693 = vpop.f32.mrb[0].mxu0
        %694 = vdwg.mxu0
        %v697 = vcombine.high %v496, %v496
        %v699 = vunpack.c.l.s4 1966171168
        %v700 = vunpack.c.0.s8 %v699
        %v701 = vlaneseq
        %v702 = vshrl.u32 %v701, 7
        %v703 = vsub.s32 %v700, %v702
        %v704 = vrot.slane %v496, %v703
        %v706 = vunpack.c.l.s4 1966171168
        %v707 = vunpack.c.0.s8 %v706
        %v708 = vlaneseq
        %v709 = vshrl.u32 %v708, 7
        %v710 = vsub.s32 %v707, %v709
        %v711 = vrot.slane %v697, %v710
        %v712 = vcombine.high %v704, %v704
        %v713 = vcombine.high %v711, %v711
        %v715 = vunpack.c.l.s4 1966171168
        %v716 = vunpack.c.0.s8 %v715
        %v717 = vlaneseq
        %v718 = vshrl.u32 %v717, 7
        %v719 = vsub.s32 %v716, %v718
        %v720 = vrot.slane %v704, %v719
        %v722 = vunpack.c.l.s4 1966171168
        %v723 = vunpack.c.0.s8 %v722
        %v724 = vlaneseq
        %v725 = vshrl.u32 %v724, 7
        %v726 = vsub.s32 %v723, %v725
        %v727 = vrot.slane %v711, %v726
        %v729 = vunpack.c.l.s4 1966171168
        %v730 = vunpack.c.0.s8 %v729
        %v731 = vlaneseq
        %v732 = vshrl.u32 %v731, 7
        %v733 = vsub.s32 %v730, %v732
        %v734 = vrot.slane %v712, %v733
        %v736 = vunpack.c.l.s4 1966171168
        %v737 = vunpack.c.0.s8 %v736
        %v738 = vlaneseq
        %v739 = vshrl.u32 %v738, 7
        %v740 = vsub.s32 %v737, %v739
        %v741 = vrot.slane %v713, %v740
        %v742 = vcombine.high %v720, %v720
        %v743 = vcombine.high %v727, %v727
        %v744 = vcombine.high %v734, %v734
        %v745 = vcombine.high %v741, %v741
        %v746 = vcombine.high %v499, %v499
        %v748 = vunpack.c.l.s4 1966171168
        %v749 = vunpack.c.0.s8 %v748
        %v750 = vlaneseq
        %v751 = vshrl.u32 %v750, 7
        %v752 = vsub.s32 %v749, %v751
        %v753 = vrot.slane %v499, %v752
        %v755 = vunpack.c.l.s4 1966171168
        %v756 = vunpack.c.0.s8 %v755
        %v757 = vlaneseq
        %v758 = vshrl.u32 %v757, 7
        %v759 = vsub.s32 %v756, %v758
        %v760 = vrot.slane %v746, %v759
        %v761 = vcombine.high %v753, %v753
        %v762 = vcombine.high %v760, %v760
        %v764 = vunpack.c.l.s4 1966171168
        %v765 = vunpack.c.0.s8 %v764
        %v766 = vlaneseq
        %v767 = vshrl.u32 %v766, 7
        %v768 = vsub.s32 %v765, %v767
        %v769 = vrot.slane %v753, %v768
        %v771 = vunpack.c.l.s4 1966171168
        %v772 = vunpack.c.0.s8 %v771
        %v773 = vlaneseq
        %v774 = vshrl.u32 %v773, 7
        %v775 = vsub.s32 %v772, %v774
        %v776 = vrot.slane %v760, %v775
        %v778 = vunpack.c.l.s4 1966171168
        %v779 = vunpack.c.0.s8 %v778
        %v780 = vlaneseq
        %v781 = vshrl.u32 %v780, 7
        %v782 = vsub.s32 %v779, %v781
        %v783 = vrot.slane %v761, %v782
        %v785 = vunpack.c.l.s4 1966171168
        %v786 = vunpack.c.0.s8 %v785
        %v787 = vlaneseq
        %v788 = vshrl.u32 %v787, 7
        %v789 = vsub.s32 %v786, %v788
        %v790 = vrot.slane %v762, %v789
        %v791 = vcombine.high %v769, %v769
        %v792 = vcombine.high %v776, %v776
        %v793 = vcombine.high %v783, %v783
        %v794 = vcombine.high %v790, %v790
        %v795 = vlaneseq
        %v796 = vshrl.u32 %v795, 7
        %v797 = vsub.s32 0, %v796
        %v798 = vrot.slane %v720, %v797
        %v799 = vlaneseq
        %v800 = vshrl.u32 %v799, 7
        %v801 = vsub.s32 0, %v800
        %v802 = vrot.slane %v734, %v801
        %v803 = vlaneseq
        %v804 = vshrl.u32 %v803, 7
        %v805 = vsub.s32 0, %v804
        %v806 = vrot.slane %v742, %v805
        %v807 = vlaneseq
        %v808 = vshrl.u32 %v807, 7
        %v809 = vsub.s32 0, %v808
        %v810 = vrot.slane %v744, %v809
        %v811 = vlaneseq
        %v812 = vshrl.u32 %v811, 7
        %v813 = vsub.s32 0, %v812
        %v814 = vrot.slane %v727, %v813
        %v815 = vlaneseq
        %v816 = vshrl.u32 %v815, 7
        %v817 = vsub.s32 0, %v816
        %v818 = vrot.slane %v741, %v817
        %v819 = vlaneseq
        %v820 = vshrl.u32 %v819, 7
        %v821 = vsub.s32 0, %v820
        %v822 = vrot.slane %v743, %v821
        %v823 = vlaneseq
        %v824 = vshrl.u32 %v823, 7
        %v825 = vsub.s32 0, %v824
        %v826 = vrot.slane %v745, %v825
        %v827 = vlaneseq
        %v828 = vshrl.u32 %v827, 7
        %v829 = vsub.s32 0, %v828
        %v830 = vrot.slane %v769, %v829
        %v831 = vlaneseq
        %v832 = vshrl.u32 %v831, 7
        %v833 = vsub.s32 0, %v832
        %v834 = vrot.slane %v783, %v833
        %v835 = vlaneseq
        %v836 = vshrl.u32 %v835, 7
        %v837 = vsub.s32 0, %v836
        %v838 = vrot.slane %v791, %v837
        %v839 = vlaneseq
        %v840 = vshrl.u32 %v839, 7
        %v841 = vsub.s32 0, %v840
        %v842 = vrot.slane %v793, %v841
        %v843 = vlaneseq
        %v844 = vshrl.u32 %v843, 7
        %v845 = vsub.s32 0, %v844
        %v846 = vrot.slane %v776, %v845
        %v847 = vlaneseq
        %v848 = vshrl.u32 %v847, 7
        %v849 = vsub.s32 0, %v848
        %v850 = vrot.slane %v790, %v849
        %v851 = vlaneseq
        %v852 = vshrl.u32 %v851, 7
        %v853 = vsub.s32 0, %v852
        %v854 = vrot.slane %v792, %v853
        %v855 = vlaneseq
        %v856 = vshrl.u32 %v855, 7
        %v857 = vsub.s32 0, %v856
        %v858 = vrot.slane %v794, %v857
        %v875 = vmul.f32 %v798, %v633
        %v876 = vmul.f32 %v802, %v636
        %v877 = vmul.f32 %v806, %v641
        %v878 = vmul.f32 %v810, %v644
        %v879 = vmul.f32 %v814, %v649
        %v880 = vmul.f32 %v818, %v652
        %v881 = vmul.f32 %v822, %v657
        %v882 = vmul.f32 %v826, %v660
        %v883 = vmul.f32 %v830, %v665
        %v884 = vmul.f32 %v834, %v668
        %v885 = vmul.f32 %v838, %v673
        %v886 = vmul.f32 %v842, %v676
        %v887 = vmul.f32 %v846, %v681
        %v888 = vmul.f32 %v850, %v684
        %v889 = vmul.f32 %v854, %v689
        %v890 = vmul.f32 %v858, %v692
        %v891 = vpack.c.bf16 %v876, %v875
        %v892 = vpack.c.bf16 %v878, %v877
        %v893 = vpack.c.bf16 %v880, %v879
        %v894 = vpack.c.bf16 %v882, %v881
        %v895 = vpack.c.bf16 %v884, %v883
        %v896 = vpack.c.bf16 %v886, %v885
        %v897 = vpack.c.bf16 %v888, %v887
        %v898 = vpack.c.bf16 %v890, %v889
        %v899 = vld [vmem:[%s4] sm:$0xf]
        %v900 = vld [vmem:[%s4 + $0x4] sm:$0xf]
        %v901 = vld [vmem:[%s4 + $0x8] sm:$0xf]
        %v902 = vld [vmem:[%s4 + $0xc] sm:$0xf]
        %v907 = vunpack.c.l.b16 %v899
        %v908 = vunpack.c.l.b16 %v900
        %v909 = vunpack.c.l.b16 %v901
        %v910 = vunpack.c.l.b16 %v902
        %v911 = vpack.c.b16 %v908, %v907
        %v912 = vpack.c.b16 %v910, %v909
        %v916 = vsel %vm457, %v891, 0
        %v919 = vsel %vm457, %v892, 0
        %v922 = vsel %vm457, %v893, 0
        %v925 = vsel %vm457, %v894, 0
        %v928 = vsel %vm457, %v895, 0
        %v931 = vsel %vm457, %v896, 0
        %v934 = vsel %vm457, %v897, 0
        %v937 = vsel %vm457, %v898, 0
        %939 = vmatprep.subr.bf16.mxu0 0
        %940 = vmatpush1.bf16.msra.mxu0 %v911
        %941 = vmatprep.subr.bf16.mxu0 0
        %942 = vmatpush1.bf16.msra.mxu0 %v912
        %943 = vmatprep.subr.bf16.mxu0 0
        %944 = vmatpush1.bf16.msra.mxu0 0
        %945 = vmatprep.subr.bf16.mxu0 0
        %946 = vmatpush1.bf16.msra.mxu0 0
        %947 = vmatprep.subr.bf16.mxu0 0
        %948 = vmatpush1.bf16.msra.mxu0 0
        %949 = vmatprep.subr.bf16.mxu0 0
        %950 = vmatpush1.bf16.msra.mxu0 0
        %951 = vmatprep.subr.bf16.mxu0 0
        %952 = vmatpush1.bf16.msra.mxu0 0
        %953 = vmatprep.subr.bf16.mxu0 0
        %954 = vmatpush1.bf16.msra.mxu0 0
        %955 = vmatprep.subr.bf16.mxu0 0
        %956 = vmatpush1.bf16.msra.mxu0 0
        %957 = vmatprep.subr.bf16.mxu0 0
        %958 = vmatpush1.bf16.msra.mxu0 0
        %959 = vmatprep.subr.bf16.mxu0 0
        %960 = vmatpush1.bf16.msra.mxu0 0
        %961 = vmatprep.subr.bf16.mxu0 0
        %962 = vmatpush1.bf16.msra.mxu0 0
        %963 = vmatprep.subr.bf16.mxu0 0
        %964 = vmatpush1.bf16.msra.mxu0 0
        %965 = vmatprep.subr.bf16.mxu0 0
        %966 = vmatpush1.bf16.msra.mxu0 0
        %967 = vmatprep.subr.bf16.mxu0 0
        %968 = vmatpush1.bf16.msra.mxu0 0
        %969 = vmatprep.subr.bf16.mxu0 0
        %970 = vmatpush1.bf16.msra.mxu0 0
        %971 = vmatprep.mubr.bf16.mxu0 0
        %972 = vmatmul.mubr.bf16.gmra.mrb[0].mxu0 %v916
        %v973 = vpop.f32.mrb[0].mxu0
        %v974 = vadd.f32 0.0, %v973
        %v975 = vpop.f32.mrb[0].mxu0
        %v976 = vpop.f32.mrb[0].mxu0
        %v977 = vadd.f32 0.0, %v976
        %v978 = vpop.f32.mrb[0].mxu0
        %979 = vmatprep.mubr.bf16.mxu0 0
        %980 = vmatmul.mubr.bf16.gmra.mrb[0].mxu0 %v919
        %v981 = vpop.f32.mrb[0].mxu0
        %v982 = vadd.f32 0.0, %v981
        %v983 = vpop.f32.mrb[0].mxu0
        %v984 = vpop.f32.mrb[0].mxu0
        %v985 = vadd.f32 0.0, %v984
        %v986 = vpop.f32.mrb[0].mxu0
        %987 = vmatprep.mubr.bf16.mxu0 0
        %988 = vmatmul.mubr.bf16.gmra.mrb[0].mxu0 %v922
        %v989 = vpop.f32.mrb[0].mxu0
        %v990 = vadd.f32 0.0, %v989
        %v991 = vpop.f32.mrb[0].mxu0
        %v992 = vpop.f32.mrb[0].mxu0
        %v993 = vadd.f32 0.0, %v992
        %v994 = vpop.f32.mrb[0].mxu0
        %995 = vmatprep.mubr.bf16.mxu0 0
        %996 = vmatmul.mubr.bf16.gmra.mrb[0].mxu0 %v925
        %v997 = vpop.f32.mrb[0].mxu0
        %v998 = vadd.f32 0.0, %v997
        %v999 = vpop.f32.mrb[0].mxu0
        %v1000 = vpop.f32.mrb[0].mxu0
        %v1001 = vadd.f32 0.0, %v1000
        %v1002 = vpop.f32.mrb[0].mxu0
        %1003 = vmatprep.mubr.bf16.mxu0 0
        %1004 = vmatmul.mubr.bf16.gmra.mrb[0].mxu0 %v928
        %v1005 = vpop.f32.mrb[0].mxu0
        %v1006 = vadd.f32 0.0, %v1005
        %v1007 = vpop.f32.mrb[0].mxu0
        %v1008 = vpop.f32.mrb[0].mxu0
        %v1009 = vadd.f32 0.0, %v1008
        %v1010 = vpop.f32.mrb[0].mxu0
        %1011 = vmatprep.mubr.bf16.mxu0 0
        %1012 = vmatmul.mubr.bf16.gmra.mrb[0].mxu0 %v931
        %v1013 = vpop.f32.mrb[0].mxu0
        %v1014 = vadd.f32 0.0, %v1013
        %v1015 = vpop.f32.mrb[0].mxu0
        %v1016 = vpop.f32.mrb[0].mxu0
        %v1017 = vadd.f32 0.0, %v1016
        %v1018 = vpop.f32.mrb[0].mxu0
        %1019 = vmatprep.mubr.bf16.mxu0 0
        %1020 = vmatmul.mubr.bf16.gmra.mrb[0].mxu0 %v934
        %v1021 = vpop.f32.mrb[0].mxu0
        %v1022 = vadd.f32 0.0, %v1021
        %v1023 = vpop.f32.mrb[0].mxu0
        %v1024 = vpop.f32.mrb[0].mxu0
        %v1025 = vadd.f32 0.0, %v1024
        %v1026 = vpop.f32.mrb[0].mxu0
        %1027 = vmatprep.mubr.bf16.mxu0 0
        %1028 = vmatmul.mubr.bf16.gmra.mrb[0].mxu0 %v937
        %v1029 = vpop.f32.mrb[0].mxu0
        %v1030 = vadd.f32 0.0, %v1029
        %v1031 = vpop.f32.mrb[0].mxu0
        %v1032 = vpop.f32.mrb[0].mxu0
        %v1033 = vadd.f32 0.0, %v1032
        %v1034 = vpop.f32.mrb[0].mxu0
        %1035 = vdwg.mxu0
        %vm1036 = vcmask 64512
        %v1037 = vsel %vm1036, %v974, -inf
        %v1038 = vrot.slane %v1037, 4
        %v1039 = vmax.f32 %v1037, %v1038
        %v1040 = vrot.slane %v1039, 2
        %v1041 = vmax.f32 %v1039, %v1040
        %v1042 = vrot.slane %v1041, 1
        %v1043 = vmax.f32 %v1041, %v1042
        %v1044 = vsel %vm1036, %v977, -inf
        %v1045 = vrot.slane %v1044, 4
        %v1046 = vmax.f32 %v1044, %v1045
        %v1047 = vrot.slane %v1046, 2
        %v1048 = vmax.f32 %v1046, %v1047
        %v1049 = vrot.slane %v1048, 1
        %v1050 = vmax.f32 %v1048, %v1049
        %v1051 = vsel %vm1036, %v982, -inf
        %v1052 = vrot.slane %v1051, 4
        %v1053 = vmax.f32 %v1051, %v1052
        %v1054 = vrot.slane %v1053, 2
        %v1055 = vmax.f32 %v1053, %v1054
        %v1056 = vrot.slane %v1055, 1
        %v1057 = vmax.f32 %v1055, %v1056
        %v1058 = vsel %vm1036, %v985, -inf
        %v1059 = vrot.slane %v1058, 4
        %v1060 = vmax.f32 %v1058, %v1059
        %v1061 = vrot.slane %v1060, 2
        %v1062 = vmax.f32 %v1060, %v1061
        %v1063 = vrot.slane %v1062, 1
        %v1064 = vmax.f32 %v1062, %v1063
        %v1065 = vsel %vm1036, %v990, -inf
        %v1066 = vrot.slane %v1065, 4
        %v1067 = vmax.f32 %v1065, %v1066
        %v1068 = vrot.slane %v1067, 2
        %v1069 = vmax.f32 %v1067, %v1068
        %v1070 = vrot.slane %v1069, 1
        %v1071 = vmax.f32 %v1069, %v1070
        %v1072 = vsel %vm1036, %v993, -inf
        %v1073 = vrot.slane %v1072, 4
        %v1074 = vmax.f32 %v1072, %v1073
        %v1075 = vrot.slane %v1074, 2
        %v1076 = vmax.f32 %v1074, %v1075
        %v1077 = vrot.slane %v1076, 1
        %v1078 = vmax.f32 %v1076, %v1077
        %v1079 = vsel %vm1036, %v998, -inf
        %v1080 = vrot.slane %v1079, 4
        %v1081 = vmax.f32 %v1079, %v1080
        %v1082 = vrot.slane %v1081, 2
        %v1083 = vmax.f32 %v1081, %v1082
        %v1084 = vrot.slane %v1083, 1
        %v1085 = vmax.f32 %v1083, %v1084
        %v1086 = vsel %vm1036, %v1001, -inf
        %v1087 = vrot.slane %v1086, 4
        %v1088 = vmax.f32 %v1086, %v1087
        %v1089 = vrot.slane %v1088, 2
        %v1090 = vmax.f32 %v1088, %v1089
        %v1091 = vrot.slane %v1090, 1
        %v1092 = vmax.f32 %v1090, %v1091
        %v1093 = vsel %vm1036, %v1006, -inf
        %v1094 = vrot.slane %v1093, 4
        %v1095 = vmax.f32 %v1093, %v1094
        %v1096 = vrot.slane %v1095, 2
        %v1097 = vmax.f32 %v1095, %v1096
        %v1098 = vrot.slane %v1097, 1
        %v1099 = vmax.f32 %v1097, %v1098
        %v1100 = vsel %vm1036, %v1009, -inf
        %v1101 = vrot.slane %v1100, 4
        %v1102 = vmax.f32 %v1100, %v1101
        %v1103 = vrot.slane %v1102, 2
        %v1104 = vmax.f32 %v1102, %v1103
        %v1105 = vrot.slane %v1104, 1
        %v1106 = vmax.f32 %v1104, %v1105
        %v1107 = vsel %vm1036, %v1014, -inf
        %v1108 = vrot.slane %v1107, 4
        %v1109 = vmax.f32 %v1107, %v1108
        %v1110 = vrot.slane %v1109, 2
        %v1111 = vmax.f32 %v1109, %v1110
        %v1112 = vrot.slane %v1111, 1
        %v1113 = vmax.f32 %v1111, %v1112
        %v1114 = vsel %vm1036, %v1017, -inf
        %v1115 = vrot.slane %v1114, 4
        %v1116 = vmax.f32 %v1114, %v1115
        %v1117 = vrot.slane %v1116, 2
        %v1118 = vmax.f32 %v1116, %v1117
        %v1119 = vrot.slane %v1118, 1
        %v1120 = vmax.f32 %v1118, %v1119
        %v1121 = vsel %vm1036, %v1022, -inf
        %v1122 = vrot.slane %v1121, 4
        %v1123 = vmax.f32 %v1121, %v1122
        %v1124 = vrot.slane %v1123, 2
        %v1125 = vmax.f32 %v1123, %v1124
        %v1126 = vrot.slane %v1125, 1
        %v1127 = vmax.f32 %v1125, %v1126
        %v1128 = vsel %vm1036, %v1025, -inf
        %v1129 = vrot.slane %v1128, 4
        %v1130 = vmax.f32 %v1128, %v1129
        %v1131 = vrot.slane %v1130, 2
        %v1132 = vmax.f32 %v1130, %v1131
        %v1133 = vrot.slane %v1132, 1
        %v1134 = vmax.f32 %v1132, %v1133
        %v1135 = vsel %vm1036, %v1030, -inf
        %v1136 = vrot.slane %v1135, 4
        %v1137 = vmax.f32 %v1135, %v1136
        %v1138 = vrot.slane %v1137, 2
        %v1139 = vmax.f32 %v1137, %v1138
        %v1140 = vrot.slane %v1139, 1
        %v1141 = vmax.f32 %v1139, %v1140
        %v1142 = vsel %vm1036, %v1033, -inf
        %v1143 = vrot.slane %v1142, 4
        %v1144 = vmax.f32 %v1142, %v1143
        %v1145 = vrot.slane %v1144, 2
        %v1146 = vmax.f32 %v1144, %v1145
        %v1147 = vrot.slane %v1146, 1
        %v1148 = vmax.f32 %v1146, %v1147
        %v1149 = vsub.f32 %v974, %v1043
        %v1150 = vsub.f32 %v977, %v1050
        %v1151 = vsub.f32 %v982, %v1057
        %v1152 = vsub.f32 %v985, %v1064
        %v1153 = vsub.f32 %v990, %v1071
        %v1154 = vsub.f32 %v993, %v1078
        %v1155 = vsub.f32 %v998, %v1085
        %v1156 = vsub.f32 %v1001, %v1092
        %v1157 = vsub.f32 %v1006, %v1099
        %v1158 = vsub.f32 %v1009, %v1106
        %v1159 = vsub.f32 %v1014, %v1113
        %v1160 = vsub.f32 %v1017, %v1120
        %v1161 = vsub.f32 %v1022, %v1127
        %v1162 = vsub.f32 %v1025, %v1134
        %v1163 = vsub.f32 %v1030, %v1141
        %v1164 = vsub.f32 %v1033, %v1148
        %v1165 = vmul.f32 %v1149, 1.442695
        %v1166 = vpow.pop %v1165
        %v1167 = vmul.f32 %v1150, 1.442695
        %v1168 = vpow.pop %v1167
        %v1169 = vmul.f32 %v1151, 1.442695
        %v1170 = vpow.pop %v1169
        %v1171 = vmul.f32 %v1152, 1.442695
        %v1172 = vpow.pop %v1171
        %v1173 = vmul.f32 %v1153, 1.442695
        %v1174 = vpow.pop %v1173
        %v1175 = vmul.f32 %v1154, 1.442695
        %v1176 = vpow.pop %v1175
        %v1177 = vmul.f32 %v1155, 1.442695
        %v1178 = vpow.pop %v1177
        %v1179 = vmul.f32 %v1156, 1.442695
        %v1180 = vpow.pop %v1179
        %v1181 = vmul.f32 %v1157, 1.442695
        %v1182 = vpow.pop %v1181
        %v1183 = vmul.f32 %v1158, 1.442695
        %v1184 = vpow.pop %v1183
        %v1185 = vmul.f32 %v1159, 1.442695
        %v1186 = vpow.pop %v1185
        %v1187 = vmul.f32 %v1160, 1.442695
        %v1188 = vpow.pop %v1187
        %v1189 = vmul.f32 %v1161, 1.442695
        %v1190 = vpow.pop %v1189
        %v1191 = vmul.f32 %v1162, 1.442695
        %v1192 = vpow.pop %v1191
        %v1193 = vmul.f32 %v1163, 1.442695
        %v1194 = vpow.pop %v1193
        %v1195 = vmul.f32 %v1164, 1.442695
        %v1196 = vpow.pop %v1195
        %v1197 = vsel %vm1036, %v1166, 0.0
        %v1198 = vrot.slane %v1197, 4
        %v1199 = vadd.f32 %v1197, %v1198
        %v1200 = vrot.slane %v1199, 2
        %v1201 = vadd.f32 %v1199, %v1200
        %v1202 = vrot.slane %v1201, 1
        %v1203 = vadd.f32 %v1201, %v1202
        %v1204 = vsel %vm1036, %v1168, 0.0
        %v1205 = vrot.slane %v1204, 4
        %v1206 = vadd.f32 %v1204, %v1205
        %v1207 = vrot.slane %v1206, 2
        %v1208 = vadd.f32 %v1206, %v1207
        %v1209 = vrot.slane %v1208, 1
        %v1210 = vadd.f32 %v1208, %v1209
        %v1211 = vsel %vm1036, %v1170, 0.0
        %v1212 = vrot.slane %v1211, 4
        %v1213 = vadd.f32 %v1211, %v1212
        %v1214 = vrot.slane %v1213, 2
        %v1215 = vadd.f32 %v1213, %v1214
        %v1216 = vrot.slane %v1215, 1
        %v1217 = vadd.f32 %v1215, %v1216
        %v1218 = vsel %vm1036, %v1172, 0.0
        %v1219 = vrot.slane %v1218, 4
        %v1220 = vadd.f32 %v1218, %v1219
        %v1221 = vrot.slane %v1220, 2
        %v1222 = vadd.f32 %v1220, %v1221
        %v1223 = vrot.slane %v1222, 1
        %v1224 = vadd.f32 %v1222, %v1223
        %v1225 = vsel %vm1036, %v1174, 0.0
        %v1226 = vrot.slane %v1225, 4
        %v1227 = vadd.f32 %v1225, %v1226
        %v1228 = vrot.slane %v1227, 2
        %v1229 = vadd.f32 %v1227, %v1228
        %v1230 = vrot.slane %v1229, 1
        %v1231 = vadd.f32 %v1229, %v1230
        %v1232 = vsel %vm1036, %v1176, 0.0
        %v1233 = vrot.slane %v1232, 4
        %v1234 = vadd.f32 %v1232, %v1233
        %v1235 = vrot.slane %v1234, 2
        %v1236 = vadd.f32 %v1234, %v1235
        %v1237 = vrot.slane %v1236, 1
        %v1238 = vadd.f32 %v1236, %v1237
        %v1239 = vsel %vm1036, %v1178, 0.0
        %v1240 = vrot.slane %v1239, 4
        %v1241 = vadd.f32 %v1239, %v1240
        %v1242 = vrot.slane %v1241, 2
        %v1243 = vadd.f32 %v1241, %v1242
        %v1244 = vrot.slane %v1243, 1
        %v1245 = vadd.f32 %v1243, %v1244
        %v1246 = vsel %vm1036, %v1180, 0.0
        %v1247 = vrot.slane %v1246, 4
        %v1248 = vadd.f32 %v1246, %v1247
        %v1249 = vrot.slane %v1248, 2
        %v1250 = vadd.f32 %v1248, %v1249
        %v1251 = vrot.slane %v1250, 1
        %v1252 = vadd.f32 %v1250, %v1251
        %v1253 = vsel %vm1036, %v1182, 0.0
        %v1254 = vrot.slane %v1253, 4
        %v1255 = vadd.f32 %v1253, %v1254
        %v1256 = vrot.slane %v1255, 2
        %v1257 = vadd.f32 %v1255, %v1256
        %v1258 = vrot.slane %v1257, 1
        %v1259 = vadd.f32 %v1257, %v1258
        %v1260 = vsel %vm1036, %v1184, 0.0
        %v1261 = vrot.slane %v1260, 4
        %v1262 = vadd.f32 %v1260, %v1261
        %v1263 = vrot.slane %v1262, 2
        %v1264 = vadd.f32 %v1262, %v1263
        %v1265 = vrot.slane %v1264, 1
        %v1266 = vadd.f32 %v1264, %v1265
        %v1267 = vsel %vm1036, %v1186, 0.0
        %v1268 = vrot.slane %v1267, 4
        %v1269 = vadd.f32 %v1267, %v1268
        %v1270 = vrot.slane %v1269, 2
        %v1271 = vadd.f32 %v1269, %v1270
        %v1272 = vrot.slane %v1271, 1
        %v1273 = vadd.f32 %v1271, %v1272
        %v1274 = vsel %vm1036, %v1188, 0.0
        %v1275 = vrot.slane %v1274, 4
        %v1276 = vadd.f32 %v1274, %v1275
        %v1277 = vrot.slane %v1276, 2
        %v1278 = vadd.f32 %v1276, %v1277
        %v1279 = vrot.slane %v1278, 1
        %v1280 = vadd.f32 %v1278, %v1279
        %v1281 = vsel %vm1036, %v1190, 0.0
        %v1282 = vrot.slane %v1281, 4
        %v1283 = vadd.f32 %v1281, %v1282
        %v1284 = vrot.slane %v1283, 2
        %v1285 = vadd.f32 %v1283, %v1284
        %v1286 = vrot.slane %v1285, 1
        %v1287 = vadd.f32 %v1285, %v1286
        %v1288 = vsel %vm1036, %v1192, 0.0
        %v1289 = vrot.slane %v1288, 4
        %v1290 = vadd.f32 %v1288, %v1289
        %v1291 = vrot.slane %v1290, 2
        %v1292 = vadd.f32 %v1290, %v1291
        %v1293 = vrot.slane %v1292, 1
        %v1294 = vadd.f32 %v1292, %v1293
        %v1295 = vsel %vm1036, %v1194, 0.0
        %v1296 = vrot.slane %v1295, 4
        %v1297 = vadd.f32 %v1295, %v1296
        %v1298 = vrot.slane %v1297, 2
        %v1299 = vadd.f32 %v1297, %v1298
        %v1300 = vrot.slane %v1299, 1
        %v1301 = vadd.f32 %v1299, %v1300
        %v1302 = vsel %vm1036, %v1196, 0.0
        %v1303 = vrot.slane %v1302, 4
        %v1304 = vadd.f32 %v1302, %v1303
        %v1305 = vrot.slane %v1304, 2
        %v1306 = vadd.f32 %v1304, %v1305
        %v1307 = vrot.slane %v1306, 1
        %v1308 = vadd.f32 %v1306, %v1307
        %v1309 = vrcp.pop %v1203
        %v1310 = vrcp.pop %v1210
        %v1311 = vrcp.pop %v1217
        %v1312 = vrcp.pop %v1224
        %v1313 = vrcp.pop %v1231
        %v1314 = vrcp.pop %v1238
        %v1315 = vrcp.pop %v1245
        %v1316 = vrcp.pop %v1252
        %v1317 = vrcp.pop %v1259
        %v1318 = vrcp.pop %v1266
        %v1319 = vrcp.pop %v1273
        %v1320 = vrcp.pop %v1280
        %v1321 = vrcp.pop %v1287
        %v1322 = vrcp.pop %v1294
        %v1323 = vrcp.pop %v1301
        %v1324 = vrcp.pop %v1308
        %v1325 = vmul.f32 %v1166, %v1309
        %v1326 = vmul.f32 %v1168, %v1310
        %v1327 = vmul.f32 %v1170, %v1311
        %v1328 = vmul.f32 %v1172, %v1312
        %v1329 = vmul.f32 %v1174, %v1313
        %v1330 = vmul.f32 %v1176, %v1314
        %v1331 = vmul.f32 %v1178, %v1315
        %v1332 = vmul.f32 %v1180, %v1316
        %v1333 = vmul.f32 %v1182, %v1317
        %v1334 = vmul.f32 %v1184, %v1318
        %v1335 = vmul.f32 %v1186, %v1319
        %v1336 = vmul.f32 %v1188, %v1320
        %v1337 = vmul.f32 %v1190, %v1321
        %v1338 = vmul.f32 %v1192, %v1322
        %v1339 = vmul.f32 %v1194, %v1323
        %v1340 = vmul.f32 %v1196, %v1324
        %v1341 = vpack.c.bf16 %v1326, %v1325
        %v1342 = vpack.c.bf16 %v1328, %v1327
        %v1343 = vpack.c.bf16 %v1330, %v1329
        %v1344 = vpack.c.bf16 %v1332, %v1331
        %v1345 = vpack.c.bf16 %v1334, %v1333
        %v1346 = vpack.c.bf16 %v1336, %v1335
        %v1347 = vpack.c.bf16 %v1338, %v1337
        %v1348 = vpack.c.bf16 %v1340, %v1339
        %v1349 = vld [vmem:[%s5] sm:$0xf]
        %v1351 = vsel %vm1036, %v1341, 0
        %v1354 = vsel %vm1036, %v1342, 0
        %v1357 = vsel %vm1036, %v1343, 0
        %v1360 = vsel %vm1036, %v1344, 0
        %v1363 = vsel %vm1036, %v1345, 0
        %v1366 = vsel %vm1036, %v1346, 0
        %v1369 = vsel %vm1036, %v1347, 0
        %v1372 = vsel %vm1036, %v1348, 0
        %vm1374 = vcmask 1043456
        %v1376 = vsel %vm1374, %v1349, 0
        %1378 = vmatprep.subr.bf16.mxu0 0
        %1379 = vmatpush1.bf16.msra.mxu0 %v1376
        %1380 = vmatprep.subr.bf16.mxu0 0
        %1381 = vmatpush1.bf16.msra.mxu0 0
        %1382 = vmatprep.subr.bf16.mxu0 0
        %1383 = vmatpush1.bf16.msra.mxu0 0
        %1384 = vmatprep.subr.bf16.mxu0 0
        %1385 = vmatpush1.bf16.msra.mxu0 0
        %1386 = vmatprep.subr.bf16.mxu0 0
        %1387 = vmatpush1.bf16.msra.mxu0 0
        %1388 = vmatprep.subr.bf16.mxu0 0
        %1389 = vmatpush1.bf16.msra.mxu0 0
        %1390 = vmatprep.subr.bf16.mxu0 0
        %1391 = vmatpush1.bf16.msra.mxu0 0
        %1392 = vmatprep.subr.bf16.mxu0 0
        %1393 = vmatpush1.bf16.msra.mxu0 0
        %1394 = vmatprep.subr.bf16.mxu0 0
        %1395 = vmatpush1.bf16.msra.mxu0 0
        %1396 = vmatprep.subr.bf16.mxu0 0
        %1397 = vmatpush1.bf16.msra.mxu0 0
        %1398 = vmatprep.subr.bf16.mxu0 0
        %1399 = vmatpush1.bf16.msra.mxu0 0
        %1400 = vmatprep.subr.bf16.mxu0 0
        %1401 = vmatpush1.bf16.msra.mxu0 0
        %1402 = vmatprep.subr.bf16.mxu0 0
        %1403 = vmatpush1.bf16.msra.mxu0 0
        %1404 = vmatprep.subr.bf16.mxu0 0
        %1405 = vmatpush1.bf16.msra.mxu0 0
        %1406 = vmatprep.subr.bf16.mxu0 0
        %1407 = vmatpush1.bf16.msra.mxu0 0
        %1408 = vmatprep.subr.bf16.mxu0 0
        %1409 = vmatpush1.bf16.msra.mxu0 0
        %1410 = vmatprep.mubr.bf16.mxu0 0
        %1411 = vmatmul.mubr.bf16.gmra.mrb[0].mxu0 %v1351
        %v1412 = vpop.f32.mrb[0].mxu0
        %v1413 = vadd.f32 0.0, %v1412
        %v1414 = vpop.f32.mrb[0].mxu0
        %v1415 = vpop.f32.mrb[0].mxu0
        %v1416 = vadd.f32 0.0, %v1415
        %v1417 = vpop.f32.mrb[0].mxu0
        %1418 = vmatprep.mubr.bf16.mxu0 0
        %1419 = vmatmul.mubr.bf16.gmra.mrb[0].mxu0 %v1354
        %v1420 = vpop.f32.mrb[0].mxu0
        %v1421 = vadd.f32 0.0, %v1420
        %v1422 = vpop.f32.mrb[0].mxu0
        %v1423 = vpop.f32.mrb[0].mxu0
        %v1424 = vadd.f32 0.0, %v1423
        %v1425 = vpop.f32.mrb[0].mxu0
        %1426 = vmatprep.mubr.bf16.mxu0 0
        %1427 = vmatmul.mubr.bf16.gmra.mrb[0].mxu0 %v1357
        %v1428 = vpop.f32.mrb[0].mxu0
        %v1429 = vadd.f32 0.0, %v1428
        %v1430 = vpop.f32.mrb[0].mxu0
        %v1431 = vpop.f32.mrb[0].mxu0
        %v1432 = vadd.f32 0.0, %v1431
        %v1433 = vpop.f32.mrb[0].mxu0
        %1434 = vmatprep.mubr.bf16.mxu0 0
        %1435 = vmatmul.mubr.bf16.gmra.mrb[0].mxu0 %v1360
        %v1436 = vpop.f32.mrb[0].mxu0
        %v1437 = vadd.f32 0.0, %v1436
        %v1438 = vpop.f32.mrb[0].mxu0
        %v1439 = vpop.f32.mrb[0].mxu0
        %v1440 = vadd.f32 0.0, %v1439
        %v1441 = vpop.f32.mrb[0].mxu0
        %1442 = vmatprep.mubr.bf16.mxu0 0
        %1443 = vmatmul.mubr.bf16.gmra.mrb[0].mxu0 %v1363
        %v1444 = vpop.f32.mrb[0].mxu0
        %v1445 = vadd.f32 0.0, %v1444
        %v1446 = vpop.f32.mrb[0].mxu0
        %v1447 = vpop.f32.mrb[0].mxu0
        %v1448 = vadd.f32 0.0, %v1447
        %v1449 = vpop.f32.mrb[0].mxu0
        %1450 = vmatprep.mubr.bf16.mxu0 0
        %1451 = vmatmul.mubr.bf16.gmra.mrb[0].mxu0 %v1366
        %v1452 = vpop.f32.mrb[0].mxu0
        %v1453 = vadd.f32 0.0, %v1452
        %v1454 = vpop.f32.mrb[0].mxu0
        %v1455 = vpop.f32.mrb[0].mxu0
        %v1456 = vadd.f32 0.0, %v1455
        %v1457 = vpop.f32.mrb[0].mxu0
        %1458 = vmatprep.mubr.bf16.mxu0 0
        %1459 = vmatmul.mubr.bf16.gmra.mrb[0].mxu0 %v1369
        %v1460 = vpop.f32.mrb[0].mxu0
        %v1461 = vadd.f32 0.0, %v1460
        %v1462 = vpop.f32.mrb[0].mxu0
        %v1463 = vpop.f32.mrb[0].mxu0
        %v1464 = vadd.f32 0.0, %v1463
        %v1465 = vpop.f32.mrb[0].mxu0
        %1466 = vmatprep.mubr.bf16.mxu0 0
        %1467 = vmatmul.mubr.bf16.gmra.mrb[0].mxu0 %v1372
        %v1468 = vpop.f32.mrb[0].mxu0
        %v1469 = vadd.f32 0.0, %v1468
        %v1470 = vpop.f32.mrb[0].mxu0
        %v1471 = vpop.f32.mrb[0].mxu0
        %v1472 = vadd.f32 0.0, %v1471
        %v1473 = vpop.f32.mrb[0].mxu0
        %1474 = vdwg.mxu0
        %1491 = vrot.lane.b32.xlu0 %v633, 96
        %v1492 = vpop.permute.xlu0 %1491
        %1493 = vrot.lane.b32.xlu0 %v636, 96
        %v1494 = vpop.permute.xlu0 %1493
        %1495 = vrot.lane.b32.xlu0 %v641, 96
        %v1496 = vpop.permute.xlu0 %1495
        %1497 = vrot.lane.b32.xlu0 %v644, 96
        %v1498 = vpop.permute.xlu0 %1497
        %1499 = vrot.lane.b32.xlu0 %v649, 96
        %v1500 = vpop.permute.xlu0 %1499
        %1501 = vrot.lane.b32.xlu0 %v652, 96
        %v1502 = vpop.permute.xlu0 %1501
        %1503 = vrot.lane.b32.xlu0 %v657, 96
        %v1504 = vpop.permute.xlu0 %1503
        %1505 = vrot.lane.b32.xlu0 %v660, 96
        %v1506 = vpop.permute.xlu0 %1505
        %1507 = vrot.lane.b32.xlu0 %v665, 96
        %v1508 = vpop.permute.xlu0 %1507
        %1509 = vrot.lane.b32.xlu0 %v668, 96
        %v1510 = vpop.permute.xlu0 %1509
        %1511 = vrot.lane.b32.xlu0 %v673, 96
        %v1512 = vpop.permute.xlu0 %1511
        %1513 = vrot.lane.b32.xlu0 %v676, 96
        %v1514 = vpop.permute.xlu0 %1513
        %1515 = vrot.lane.b32.xlu0 %v681, 96
        %v1516 = vpop.permute.xlu0 %1515
        %1517 = vrot.lane.b32.xlu0 %v684, 96
        %v1518 = vpop.permute.xlu0 %1517
        %1519 = vrot.lane.b32.xlu0 %v689, 96
        %v1520 = vpop.permute.xlu0 %1519
        %1521 = vrot.lane.b32.xlu0 %v692, 96
        %v1522 = vpop.permute.xlu0 %1521
        %v1539 = vmul.f32 %v1413, %v1492
        %v1540 = vmul.f32 %v1416, %v1494
        %v1541 = vmul.f32 %v1421, %v1496
        %v1542 = vmul.f32 %v1424, %v1498
        %v1543 = vmul.f32 %v1429, %v1500
        %v1544 = vmul.f32 %v1432, %v1502
        %v1545 = vmul.f32 %v1437, %v1504
        %v1546 = vmul.f32 %v1440, %v1506
        %v1547 = vmul.f32 %v1445, %v1508
        %v1548 = vmul.f32 %v1448, %v1510
        %v1549 = vmul.f32 %v1453, %v1512
        %v1550 = vmul.f32 %v1456, %v1514
        %v1551 = vmul.f32 %v1461, %v1516
        %v1552 = vmul.f32 %v1464, %v1518
        %v1553 = vmul.f32 %v1469, %v1520
        %v1554 = vmul.f32 %v1472, %v1522
        %v1555 = vsel %vm457, %v1539, 0.0
        %v1556 = vrot.slane %v1555, 4
        %v1557 = vadd.f32 %v1555, %v1556
        %v1558 = vrot.slane %v1557, 2
        %v1559 = vadd.f32 %v1557, %v1558
        %v1560 = vrot.slane %v1559, 1
        %v1561 = vadd.f32 %v1559, %v1560
        %v1562 = vsel %vm457, %v1540, 0.0
        %v1563 = vrot.slane %v1562, 4
        %v1564 = vadd.f32 %v1562, %v1563
        %v1565 = vrot.slane %v1564, 2
        %v1566 = vadd.f32 %v1564, %v1565
        %v1567 = vrot.slane %v1566, 1
        %v1568 = vadd.f32 %v1566, %v1567
        %v1569 = vsel %vm457, %v1541, 0.0
        %v1570 = vrot.slane %v1569, 4
        %v1571 = vadd.f32 %v1569, %v1570
        %v1572 = vrot.slane %v1571, 2
        %v1573 = vadd.f32 %v1571, %v1572
        %v1574 = vrot.slane %v1573, 1
        %v1575 = vadd.f32 %v1573, %v1574
        %v1576 = vsel %vm457, %v1542, 0.0
        %v1577 = vrot.slane %v1576, 4
        %v1578 = vadd.f32 %v1576, %v1577
        %v1579 = vrot.slane %v1578, 2
        %v1580 = vadd.f32 %v1578, %v1579
        %v1581 = vrot.slane %v1580, 1
        %v1582 = vadd.f32 %v1580, %v1581
        %v1583 = vsel %vm457, %v1543, 0.0
        %v1584 = vrot.slane %v1583, 4
        %v1585 = vadd.f32 %v1583, %v1584
        %v1586 = vrot.slane %v1585, 2
        %v1587 = vadd.f32 %v1585, %v1586
        %v1588 = vrot.slane %v1587, 1
        %v1589 = vadd.f32 %v1587, %v1588
        %v1590 = vsel %vm457, %v1544, 0.0
        %v1591 = vrot.slane %v1590, 4
        %v1592 = vadd.f32 %v1590, %v1591
        %v1593 = vrot.slane %v1592, 2
        %v1594 = vadd.f32 %v1592, %v1593
        %v1595 = vrot.slane %v1594, 1
        %v1596 = vadd.f32 %v1594, %v1595
        %v1597 = vsel %vm457, %v1545, 0.0
        %v1598 = vrot.slane %v1597, 4
        %v1599 = vadd.f32 %v1597, %v1598
        %v1600 = vrot.slane %v1599, 2
        %v1601 = vadd.f32 %v1599, %v1600
        %v1602 = vrot.slane %v1601, 1
        %v1603 = vadd.f32 %v1601, %v1602
        %v1604 = vsel %vm457, %v1546, 0.0
        %v1605 = vrot.slane %v1604, 4
        %v1606 = vadd.f32 %v1604, %v1605
        %v1607 = vrot.slane %v1606, 2
        %v1608 = vadd.f32 %v1606, %v1607
        %v1609 = vrot.slane %v1608, 1
        %v1610 = vadd.f32 %v1608, %v1609
        %v1611 = vsel %vm457, %v1547, 0.0
        %v1612 = vrot.slane %v1611, 4
        %v1613 = vadd.f32 %v1611, %v1612
        %v1614 = vrot.slane %v1613, 2
        %v1615 = vadd.f32 %v1613, %v1614
        %v1616 = vrot.slane %v1615, 1
        %v1617 = vadd.f32 %v1615, %v1616
        %v1618 = vsel %vm457, %v1548, 0.0
        %v1619 = vrot.slane %v1618, 4
        %v1620 = vadd.f32 %v1618, %v1619
        %v1621 = vrot.slane %v1620, 2
        %v1622 = vadd.f32 %v1620, %v1621
        %v1623 = vrot.slane %v1622, 1
        %v1624 = vadd.f32 %v1622, %v1623
        %v1625 = vsel %vm457, %v1549, 0.0
        %v1626 = vrot.slane %v1625, 4
        %v1627 = vadd.f32 %v1625, %v1626
        %v1628 = vrot.slane %v1627, 2
        %v1629 = vadd.f32 %v1627, %v1628
        %v1630 = vrot.slane %v1629, 1
        %v1631 = vadd.f32 %v1629, %v1630
        %v1632 = vsel %vm457, %v1550, 0.0
        %v1633 = vrot.slane %v1632, 4
        %v1634 = vadd.f32 %v1632, %v1633
        %v1635 = vrot.slane %v1634, 2
        %v1636 = vadd.f32 %v1634, %v1635
        %v1637 = vrot.slane %v1636, 1
        %v1638 = vadd.f32 %v1636, %v1637
        %v1639 = vsel %vm457, %v1551, 0.0
        %v1640 = vrot.slane %v1639, 4
        %v1641 = vadd.f32 %v1639, %v1640
        %v1642 = vrot.slane %v1641, 2
        %v1643 = vadd.f32 %v1641, %v1642
        %v1644 = vrot.slane %v1643, 1
        %v1645 = vadd.f32 %v1643, %v1644
        %v1646 = vsel %vm457, %v1552, 0.0
        %v1647 = vrot.slane %v1646, 4
        %v1648 = vadd.f32 %v1646, %v1647
        %v1649 = vrot.slane %v1648, 2
        %v1650 = vadd.f32 %v1648, %v1649
        %v1651 = vrot.slane %v1650, 1
        %v1652 = vadd.f32 %v1650, %v1651
        %v1653 = vsel %vm457, %v1553, 0.0
        %v1654 = vrot.slane %v1653, 4
        %v1655 = vadd.f32 %v1653, %v1654
        %v1656 = vrot.slane %v1655, 2
        %v1657 = vadd.f32 %v1655, %v1656
        %v1658 = vrot.slane %v1657, 1
        %v1659 = vadd.f32 %v1657, %v1658
        %v1660 = vsel %vm457, %v1554, 0.0
        %v1661 = vrot.slane %v1660, 4
        %v1662 = vadd.f32 %v1660, %v1661
        %v1663 = vrot.slane %v1662, 2
        %v1664 = vadd.f32 %v1662, %v1663
        %v1665 = vrot.slane %v1664, 1
        %v1666 = vadd.f32 %v1664, %v1665
        %vm1683 = vcmask 1041409
        %v1684 = vsel %vm1683, %v1568, %v1561
        %vm1685 = vcmask 1042434
        %v1686 = vsel %vm1685, %v1575, %v1684
        %vm1687 = vcmask 1043459
        %v1688 = vsel %vm1687, %v1582, %v1686
        %vm1689 = vcmask 1044484
        %v1690 = vsel %vm1689, %v1589, %v1688
        %vm1691 = vcmask 1045509
        %v1692 = vsel %vm1691, %v1596, %v1690
        %vm1693 = vcmask 1046534
        %v1694 = vsel %vm1693, %v1603, %v1692
        %vm1695 = vcmask 1047559
        %v1696 = vsel %vm1695, %v1610, %v1694
        %v1697 = vsel %vm1683, %v1624, %v1617
        %v1698 = vsel %vm1685, %v1631, %v1697
        %v1699 = vsel %vm1687, %v1638, %v1698
        %v1700 = vsel %vm1689, %v1645, %v1699
        %v1701 = vsel %vm1691, %v1652, %v1700
        %v1702 = vsel %vm1693, %v1659, %v1701
        %v1703 = vsel %vm1695, %v1666, %v1702
        %v1706 = vadd.f32 %v438, %v1696
        %v1707 = vadd.f32 %v439, %v1703
        %v1708 = vld [vmem:[%s8] sm:$0x1]
        %v1710 = vlaneseq
        %v1711 = vshrl.u32 %v1710, 7
        %v1712 = vsub.s32 0, %v1711
        %v1713 = vrot.slane %v1708, %v1712
        %v1715 = vmul.f32 %v1706, %v1713
        %v1716 = vmul.f32 %v1707, %v1713
        %v1717 = vld [vmem:[%s9] sm:$0x1]
        %v1719 = vlaneseq
        %v1720 = vshrl.u32 %v1719, 7
        %v1721 = vsub.s32 0, %v1720
        %v1722 = vrot.slane %v1717, %v1721
        %v1724 = vadd.f32 %v1715, %v1722
        %v1725 = vadd.f32 %v1716, %v1722
        %v1726 = vpack.c.bf16 %v1725, %v1724
        %v1727 = vld [vmem:[%s6] sm:$0xf]
        %v1728 = vld [vmem:[%s6 + $0x4] sm:$0xf]
        %v1729 = vld [vmem:[%s6 + $0x8] sm:$0xf]
        %v1730 = vld [vmem:[%s6 + $0xc] sm:$0xf]
        %v1735 = vunpack.c.l.b16 %v1727
        %v1736 = vunpack.c.l.b16 %v1728
        %v1737 = vunpack.c.l.b16 %v1729
        %v1738 = vunpack.c.l.b16 %v1730
        %v1739 = vpack.c.b16 %v1736, %v1735
        %v1740 = vpack.c.b16 %v1738, %v1737
        %v1744 = vsel %vm457, %v1726, 0
        %1746 = vmatprep.subr.bf16.mxu0 0
        %1747 = vmatpush1.bf16.msra.mxu0 %v1739
        %1748 = vmatprep.subr.bf16.mxu0 0
        %1749 = vmatpush1.bf16.msra.mxu0 %v1740
        %1750 = vmatprep.subr.bf16.mxu0 0
        %1751 = vmatpush1.bf16.msra.mxu0 0
        %1752 = vmatprep.subr.bf16.mxu0 0
        %1753 = vmatpush1.bf16.msra.mxu0 0
        %1754 = vmatprep.subr.bf16.mxu0 0
        %1755 = vmatpush1.bf16.msra.mxu0 0
        %1756 = vmatprep.subr.bf16.mxu0 0
        %1757 = vmatpush1.bf16.msra.mxu0 0
        %1758 = vmatprep.subr.bf16.mxu0 0
        %1759 = vmatpush1.bf16.msra.mxu0 0
        %1760 = vmatprep.subr.bf16.mxu0 0
        %1761 = vmatpush1.bf16.msra.mxu0 0
        %1762 = vmatprep.subr.bf16.mxu0 0
        %1763 = vmatpush1.bf16.msra.mxu0 0
        %1764 = vmatprep.subr.bf16.mxu0 0
        %1765 = vmatpush1.bf16.msra.mxu0 0
        %1766 = vmatprep.subr.bf16.mxu0 0
        %1767 = vmatpush1.bf16.msra.mxu0 0
        %1768 = vmatprep.subr.bf16.mxu0 0
        %1769 = vmatpush1.bf16.msra.mxu0 0
        %1770 = vmatprep.subr.bf16.mxu0 0
        %1771 = vmatpush1.bf16.msra.mxu0 0
        %1772 = vmatprep.subr.bf16.mxu0 0
        %1773 = vmatpush1.bf16.msra.mxu0 0
        %1774 = vmatprep.subr.bf16.mxu0 0
        %1775 = vmatpush1.bf16.msra.mxu0 0
        %1776 = vmatprep.subr.bf16.mxu0 0
        %1777 = vmatpush1.bf16.msra.mxu0 0
        %1778 = vmatprep.mubr.bf16.mxu0 0
        %1779 = vmatmul.mubr.bf16.gmra.mrb[0].mxu0 %v1744
        %v1780 = vpop.f32.mrb[0].mxu0
        %v1781 = vadd.f32 0.0, %v1780
        %v1782 = vpop.f32.mrb[0].mxu0
        %v1783 = vpop.f32.mrb[0].mxu0
        %v1784 = vadd.f32 0.0, %v1783
        %v1785 = vpop.f32.mrb[0].mxu0
        %1786 = vdwg.mxu0
        %vm1787 = vcmp.gt.f32.partialorder %v1781, 0.0
        %vm1788 = vcmp.gt.f32.partialorder %v1784, 0.0
        %v1789 = vmul.f32 %v1781, 0.2
        %v1790 = vmul.f32 %v1784, 0.2
        %v1791 = vsel %vm1787, %v1781, %v1789
        %v1792 = vsel %vm1788, %v1784, %v1790
        %v1793 = vpack.c.bf16 %v1792, %v1791
        %v1794 = vld [vmem:[%s7] sm:$0xf]
        %v1795 = vld [vmem:[%s7 + $0x4] sm:$0xf]
        %v1796 = vld [vmem:[%s7 + $0x8] sm:$0xf]
        %v1797 = vld [vmem:[%s7 + $0xc] sm:$0xf]
        %v1798 = vld [vmem:[%s7 + $0x10] sm:$0xf]
        %v1799 = vld [vmem:[%s7 + $0x14] sm:$0xf]
        %v1800 = vld [vmem:[%s7 + $0x18] sm:$0xf]
        %v1801 = vld [vmem:[%s7 + $0x1c] sm:$0xf]
        %v1810 = vunpack.c.l.b16 %v1794
        %v1811 = vunpack.c.l.b16 %v1795
        %v1812 = vunpack.c.l.b16 %v1796
        %v1813 = vunpack.c.l.b16 %v1797
        %v1814 = vunpack.c.l.b16 %v1798
        %v1815 = vunpack.c.l.b16 %v1799
        %v1816 = vunpack.c.l.b16 %v1800
        %v1817 = vunpack.c.l.b16 %v1801
        %v1818 = vpack.c.b16 %v1811, %v1810
        %v1819 = vpack.c.b16 %v1813, %v1812
        %v1820 = vpack.c.b16 %v1815, %v1814
        %v1821 = vpack.c.b16 %v1817, %v1816
        %vm1826 = vcmask 523264
        %v1828 = vsel %vm1826, %v1793, 0
        %1830 = vmatprep.subr.bf16.mxu0 0
        %1831 = vmatpush1.bf16.msra.mxu0 %v1818
        %1832 = vmatprep.subr.bf16.mxu0 0
        %1833 = vmatpush1.bf16.msra.mxu0 %v1819
        %1834 = vmatprep.subr.bf16.mxu0 0
        %1835 = vmatpush1.bf16.msra.mxu0 %v1820
        %1836 = vmatprep.subr.bf16.mxu0 0
        %1837 = vmatpush1.bf16.msra.mxu0 %v1821
        %1838 = vmatprep.subr.bf16.mxu0 0
        %1839 = vmatpush1.bf16.msra.mxu0 0
        %1840 = vmatprep.subr.bf16.mxu0 0
        %1841 = vmatpush1.bf16.msra.mxu0 0
        %1842 = vmatprep.subr.bf16.mxu0 0
        %1843 = vmatpush1.bf16.msra.mxu0 0
        %1844 = vmatprep.subr.bf16.mxu0 0
        %1845 = vmatpush1.bf16.msra.mxu0 0
        %1846 = vmatprep.subr.bf16.mxu0 0
        %1847 = vmatpush1.bf16.msra.mxu0 0
        %1848 = vmatprep.subr.bf16.mxu0 0
        %1849 = vmatpush1.bf16.msra.mxu0 0
        %1850 = vmatprep.subr.bf16.mxu0 0
        %1851 = vmatpush1.bf16.msra.mxu0 0
        %1852 = vmatprep.subr.bf16.mxu0 0
        %1853 = vmatpush1.bf16.msra.mxu0 0
        %1854 = vmatprep.subr.bf16.mxu0 0
        %1855 = vmatpush1.bf16.msra.mxu0 0
        %1856 = vmatprep.subr.bf16.mxu0 0
        %1857 = vmatpush1.bf16.msra.mxu0 0
        %1858 = vmatprep.subr.bf16.mxu0 0
        %1859 = vmatpush1.bf16.msra.mxu0 0
        %1860 = vmatprep.subr.bf16.mxu0 0
        %1861 = vmatpush1.bf16.msra.mxu0 0
        %1862 = vmatprep.mubr.bf16.mxu0 0
        %1863 = vmatmul.mubr.bf16.gmra.mrb[0].mxu0 %v1828
        %v1864 = vpop.f32.mrb[0].mxu0
        %v1865 = vadd.f32 0.0, %v1864
        %v1866 = vpop.f32.mrb[0].mxu0
        %v1867 = vpop.f32.mrb[0].mxu0
        %v1868 = vadd.f32 0.0, %v1867
        %v1869 = vpop.f32.mrb[0].mxu0
        %1870 = vdwg.mxu0
        %v1871 = vadd.f32 %v1724, %v1865
        %v1872 = vadd.f32 %v1725, %v1868
        %v1873 = vld [vmem:[%s10] sm:$0x1]
        %v1875 = vlaneseq
        %v1876 = vshrl.u32 %v1875, 7
        %v1877 = vsub.s32 0, %v1876
        %v1878 = vrot.slane %v1873, %v1877
        %v1880 = vmul.f32 %v1871, %v1878
        %v1881 = vmul.f32 %v1872, %v1878
        %v1882 = vld [vmem:[%s11] sm:$0x1]
        %v1884 = vlaneseq
        %v1885 = vshrl.u32 %v1884, 7
        %v1886 = vsub.s32 0, %v1885
        %v1887 = vrot.slane %v1882, %v1886
        %v1889 = vadd.f32 %v1880, %v1887
        %v1890 = vadd.f32 %v1881, %v1887
        %1891 = vst.msk [vmem:[%s423] sm:$0xff] %vm457, %v1889
        %1892 = vst.msk [vmem:[%s423 + $0x8] sm:$0xff] %vm457, %v1890
        %s1893 = sand.u32 %s296, 1
        %s1894 = scalar_lea.sflag [#allocation3], %s1893
        %s1895 = sand.u32 %s296, 1
        %s1896 = smul.addr %s1895, 16
        %s1897 = scalar_lea.vmem [#allocation2], %s1896
        // Predicated region
        $region69: #{tpu_custom_call.1} parent=67 // pred_check
          %p1898 = pneg %p306
        $region70: #{tpu_custom_call.1} parent=67 // pred_check_branch
          %1900 = sbr.rel (%p1898) target = $region72
        $region71: #{tpu_custom_call.1} parent=67 // pred_region
          %s1901 = smul.u32 2, %s26
          %s1903 = ssub.s32 256, 256
          %1904 = vsyncadd %s1894, %s1903
          %s1905 = smul.addr %s1901, 128
          %s1906 = scalar_lea.hbm %s12, %s1905
          %s1907 = sshll.u32 %s1897, 4
          %s1908 = int_to_ptr.vmem [resolvable:$true] %s1907
          %1913 = dma.vmem_to_hbm [thread:$0]  %s1908, 256, %s1906, %s1894, 128, 128, 8
        $region72: #{tpu_custom_call.1} parent=67 // pred_fallthru
          _
      $region68: #{tpu_custom_call.1} parent=5 // pred_fallthru
        _
      %p1914 = scmp.le.s32.totalorder 2, %s21
      // Predicated region
      $region73: #{tpu_custom_call.1} parent=5 // pred_check
        %p1915 = pneg %p1914
      $region74: #{tpu_custom_call.1} parent=5 // pred_check_branch
        %1917 = sbr.rel (%p1915) target = $region76
      $region75: #{tpu_custom_call.1} parent=5 // pred_region
        %s1918 = ssub.s32 %s21, 2
        // Predicated region
        $region77: #{tpu_custom_call.1} parent=75 // pred_check
          %p1919 = pneg %p312
        $region78: #{tpu_custom_call.1} parent=75 // pred_check_branch
          %1921 = sbr.rel (%p1919) target = $region80
        $region79: #{tpu_custom_call.1} parent=75 // pred_region
          %s1922 = sand.u32 %s297, 1
          %s1923 = scalar_lea.sflag [#allocation3], %s1922
          %s1924 = sand.u32 %s297, 1
          %s1925 = smul.addr %s1924, 16
          %s1926 = scalar_lea.vmem [#allocation2], %s1925
          %1927 = dma.done %s1923, 256
        $region80: #{tpu_custom_call.1} parent=75 // pred_fallthru
          _
      $region76: #{tpu_custom_call.1} parent=5 // pred_fallthru
        _
    $region6: #{tpu_custom_call.1} parent=1 // loop_footer
      %s25 = sadd.s32 1, %s21
    $region7: #{tpu_custom_call.1} parent=1 // loop_footer_branch
      %20 = sbr.rel target = $region3
    $region8: #{tpu_custom_call.1} parent=1 // loop_exit
      _
    %1928 = vsyncpa [#allocation3], 1
    %s1929 = scalar_lea.sflag [#allocation3], 1
    %1930 = vsyncpa %s1929, 1

// kernel: tpu_custom_call.1
$region0: #{tpu_custom_call.1}
  #allocation0 [shape = 'u32[]', space=smem, size = 0x4, offset = 0x4, fixed_abs, tag = 'smem constant byte address 0x4 - core index']
  #allocation1 [shape = 'u32[144,128]{1,0:T(1,128)}', space=vmem, size = 0x12000, scoped, tag = 'internal scratch']
  %s0 = inlined_call_operand.vmem [shape: f32[32,32], index: 0, kind: input, shape index: {}]
  %s1 = inlined_call_operand.vmem [shape: bf16[256,32], index: 1, kind: input, shape index: {}]
  %s2 = inlined_call_operand.vmem [shape: bf16[32,32], index: 2, kind: input, shape index: {}]
  %s3 = inlined_call_operand.vmem [shape: bf16[32,64], index: 3, kind: input, shape index: {}]
  %s4 = inlined_call_operand.vmem [shape: bf16[32,8], index: 4, kind: input, shape index: {}]
  %s5 = inlined_call_operand.vmem [shape: bf16[8,32], index: 5, kind: input, shape index: {}]
  %s6 = inlined_call_operand.vmem [shape: bf16[32,64], index: 6, kind: input, shape index: {}]
  %s7 = inlined_call_operand.vmem [shape: bf16[64,32], index: 7, kind: input, shape index: {}]
  %s8 = inlined_call_operand.vmem [shape: f32[1,32], index: 8, kind: input, shape index: {}]
  %s9 = inlined_call_operand.vmem [shape: f32[1,32], index: 9, kind: input, shape index: {}]
  %s10 = inlined_call_operand.vmem [shape: f32[1,32], index: 10, kind: input, shape index: {}]
  %s11 = inlined_call_operand.vmem [shape: f32[1,32], index: 11, kind: input, shape index: {}]
  %s12 = inlined_call_operand.hbm [shape: f32[32,32], index: 12, kind: output, shape index: {}]
  %s13 = sld [smem:[#allocation0]]
  $region81: #{tpu_custom_call.1} parent=0
    _
  %s15 = ssub.s32 1, %s13
  %s16 = scalar_select 0, %s15, %s13
  $region1: #{tpu_custom_call.1} parent=0
    #allocation2 [shape = 'u8[16384]{0}', space=vmem, size = 0x4000, scoped, tag = 'output window, operand 0']
    #allocation3 [shape = 's32[2]{0}', space=sflag, size = 0x8, scoped, tag = 'scoped memory for tpu_custom_call.1']
    %17 = vsyncpa [#allocation3], 0
    %s18 = scalar_lea.sflag [#allocation3], 1
    %19 = vsyncpa %s18, 0
    loop: start=0, step=1, limit=4
    $region2: #{tpu_custom_call.1} parent=1 // loop_pre_header
      _
    $region3: #{tpu_custom_call.1} parent=1 // loop_header
      %s21 = sphi 0, %s25
      %p22 = scmp.ge.s32.totalorder %s21, 4
      %s31 = sphi 0, %s33
      %s34 = sphi 0, %s31
      %s35 = sphi 0, %s34
      %s51 = sphi 0, %s35
      %s57 = sphi 0, %s59
      %s60 = sphi 0, %s57
      %s61 = sphi 0, %s60
      %s77 = sphi 0, %s61
      %s81 = sphi 0, %s81
      %s83 = sphi 0, %s81
      %s84 = sphi 0, %s83
      %s98 = sphi 0, %s84
      %s102 = sphi 0, %s102
      %s104 = sphi 0, %s102
      %s105 = sphi 0, %s104
      %s119 = sphi 0, %s105
      %s123 = sphi 0, %s123
      %s125 = sphi 0, %s123
      %s126 = sphi 0, %s125
      %s140 = sphi 0, %s126
      %s144 = sphi 0, %s144
      %s146 = sphi 0, %s144
      %s147 = sphi 0, %s146
      %s161 = sphi 0, %s147
      %s165 = sphi 0, %s165
      %s167 = sphi 0, %s165
      %s168 = sphi 0, %s167
      %s182 = sphi 0, %s168
      %s186 = sphi 0, %s186
      %s188 = sphi 0, %s186
      %s189 = sphi 0, %s188
      %s203 = sphi 0, %s189
      %s207 = sphi 0, %s207
      %s209 = sphi 0, %s207
      %s210 = sphi 0, %s209
      %s224 = sphi 0, %s210
      %s228 = sphi 0, %s228
      %s230 = sphi 0, %s228
      %s231 = sphi 0, %s230
      %s245 = sphi 0, %s231
      %s249 = sphi 0, %s249
      %s251 = sphi 0, %s249
      %s252 = sphi 0, %s251
      %s266 = sphi 0, %s252
      %s270 = sphi 0, %s270
      %s272 = sphi 0, %s270
      %s273 = sphi 0, %s272
      %s287 = sphi 0, %s273
      %s293 = sphi 0, %s295
      %s296 = sphi 0, %s293
      %s297 = sphi 0, %s296
      %s313 = sphi 0, %s297
    $region4: #{tpu_custom_call.1} parent=1 // loop_header_branch
      %24 = sbr.rel (%p22) target = $region8
    $region5: #{tpu_custom_call.1} parent=1 // loop_body
      %s26 = ssub.s32 %s21, 1
      %s27 = ssub.s32 %s21, 2
      %s28 = sadd.s32 %s21, 1
      %s29 = ssub.s32 %s21, %s28
      %p30 = scmp.eq.s32.totalorder %s29, 0
      %s32 = sadd.s32 %s31, 1
      %s33 = scalar_select %p30, %s31, %s32
      %p36 = pneg %p30
      %p37 = scmp.eq.s32.totalorder %s21, 1
      %p38 = por %p36, %p37
      %p39 = scmp.ne.s32.totalorder %s31, %s34
      %p40 = scmp.eq.s32.totalorder %s21, 0
      %p41 = por %p39, %p40
      %p42 = scmp.ne.s32.totalorder %s31, %s34
      %p43 = scmp.eq.s32.totalorder %s26, 1
      %p44 = por %p42, %p43
      %p45 = scmp.ne.s32.totalorder %s34, %s35
      %p46 = scmp.eq.s32.totalorder %s26, 0
      %p47 = por %p45, %p46
      %p48 = scmp.ne.s32.totalorder %s34, %s35
      %p49 = scmp.eq.s32.totalorder %s27, 1
      %p50 = por %p48, %p49
      %p52 = scmp.ne.s32.totalorder %s35, %s51
      %p53 = scmp.eq.s32.totalorder %s27, 0
      %p54 = por %p52, %p53
      %s55 = ssub.s32 %s21, %s28
      %p56 = scmp.eq.s32.totalorder %s55, 0
      %s58 = sadd.s32 %s57, 1
      %s59 = scalar_select %p56, %s57, %s58
      %p62 = pneg %p56
      %p63 = scmp.eq.s32.totalorder %s21, 1
      %p64 = por %p62, %p63
      %p65 = scmp.ne.s32.totalorder %s57, %s60
      %p66 = scmp.eq.s32.totalorder %s21, 0
      %p67 = por %p65, %p66
      %p68 = scmp.ne.s32.totalorder %s57, %s60
      %p69 = scmp.eq.s32.totalorder %s26, 1
      %p70 = por %p68, %p69
      %p71 = scmp.ne.s32.totalorder %s60, %s61
      %p72 = scmp.eq.s32.totalorder %s26, 0
      %p73 = por %p71, %p72
      %p74 = scmp.ne.s32.totalorder %s60, %s61
      %p75 = scmp.eq.s32.totalorder %s27, 1
      %p76 = por %p74, %p75
      %p78 = scmp.ne.s32.totalorder %s61, %s77
      %p79 = scmp.eq.s32.totalorder %s27, 0
      %p80 = por %p78, %p79
      %s82 = sadd.s32 %s81, 1
      %p85 = scmp.eq.s32.totalorder %s21, 1
      %p86 = scmp.ne.s32.totalorder %s81, %s83
      %p87 = scmp.eq.s32.totalorder %s21, 0
      %p88 = por %p86, %p87
      %p89 = scmp.ne.s32.totalorder %s81, %s83
      %p90 = scmp.eq.s32.totalorder %s26, 1
      %p91 = por %p89, %p90
      %p92 = scmp.ne.s32.totalorder %s83, %s84
      %p93 = scmp.eq.s32.totalorder %s26, 0
      %p94 = por %p92, %p93
      %p95 = scmp.ne.s32.totalorder %s83, %s84
      %p96 = scmp.eq.s32.totalorder %s27, 1
      %p97 = por %p95, %p96
      %p99 = scmp.ne.s32.totalorder %s84, %s98
      %p100 = scmp.eq.s32.totalorder %s27, 0
      %p101 = por %p99, %p100
      %s103 = sadd.s32 %s102, 1
      %p106 = scmp.eq.s32.totalorder %s21, 1
      %p107 = scmp.ne.s32.totalorder %s102, %s104
      %p108 = scmp.eq.s32.totalorder %s21, 0
      %p109 = por %p107, %p108
      %p110 = scmp.ne.s32.totalorder %s102, %s104
      %p111 = scmp.eq.s32.totalorder %s26, 1
      %p112 = por %p110, %p111
      %p113 = scmp.ne.s32.totalorder %s104, %s105
      %p114 = scmp.eq.s32.totalorder %s26, 0
      %p115 = por %p113, %p114
      %p116 = scmp.ne.s32.totalorder %s104, %s105
      %p117 = scmp.eq.s32.totalorder %s27, 1
      %p118 = por %p116, %p117
      %p120 = scmp.ne.s32.totalorder %s105, %s119
      %p121 = scmp.eq.s32.totalorder %s27, 0
      %p122 = por %p120, %p121
      %s124 = sadd.s32 %s123, 1
      %p127 = scmp.eq.s32.totalorder %s21, 1
      %p128 = scmp.ne.s32.totalorder %s123, %s125
      %p129 = scmp.eq.s32.totalorder %s21, 0
      %p130 = por %p128, %p129
      %p131 = scmp.ne.s32.totalorder %s123, %s125
      %p132 = scmp.eq.s32.totalorder %s26, 1
      %p133 = por %p131, %p132
      %p134 = scmp.ne.s32.totalorder %s125, %s126
      %p135 = scmp.eq.s32.totalorder %s26, 0
      %p136 = por %p134, %p135
      %p137 = scmp.ne.s32.totalorder %s125, %s126
      %p138 = scmp.eq.s32.totalorder %s27, 1
      %p139 = por %p137, %p138
      %p141 = scmp.ne.s32.totalorder %s126, %s140
      %p142 = scmp.eq.s32.totalorder %s27, 0
      %p143 = por %p141, %p142
      %s145 = sadd.s32 %s144, 1
      %p148 = scmp.eq.s32.totalorder %s21, 1
      %p149 = scmp.ne.s32.totalorder %s144, %s146
      %p150 = scmp.eq.s32.totalorder %s21, 0
      %p151 = por %p149, %p150
      %p152 = scmp.ne.s32.totalorder %s144, %s146
      %p153 = scmp.eq.s32.totalorder %s26, 1
      %p154 = por %p152, %p153
      %p155 = scmp.ne.s32.totalorder %s146, %s147
      %p156 = scmp.eq.s32.totalorder %s26, 0
      %p157 = por %p155, %p156
      %p158 = scmp.ne.s32.totalorder %s146, %s147
      %p159 = scmp.eq.s32.totalorder %s27, 1
      %p160 = por %p158, %p159
      %p162 = scmp.ne.s32.totalorder %s147, %s161
      %p163 = scmp.eq.s32.totalorder %s27, 0
      %p164 = por %p162, %p163
      %s166 = sadd.s32 %s165, 1
      %p169 = scmp.eq.s32.totalorder %s21, 1
      %p170 = scmp.ne.s32.totalorder %s165, %s167
      %p171 = scmp.eq.s32.totalorder %s21, 0
      %p172 = por %p170, %p171
      %p173 = scmp.ne.s32.totalorder %s165, %s167
      %p174 = scmp.eq.s32.totalorder %s26, 1
      %p175 = por %p173, %p174
      %p176 = scmp.ne.s32.totalorder %s167, %s168
      %p177 = scmp.eq.s32.totalorder %s26, 0
      %p178 = por %p176, %p177
      %p179 = scmp.ne.s32.totalorder %s167, %s168
      %p180 = scmp.eq.s32.totalorder %s27, 1
      %p181 = por %p179, %p180
      %p183 = scmp.ne.s32.totalorder %s168, %s182
      %p184 = scmp.eq.s32.totalorder %s27, 0
      %p185 = por %p183, %p184
      %s187 = sadd.s32 %s186, 1
      %p190 = scmp.eq.s32.totalorder %s21, 1
      %p191 = scmp.ne.s32.totalorder %s186, %s188
      %p192 = scmp.eq.s32.totalorder %s21, 0
      %p193 = por %p191, %p192
      %p194 = scmp.ne.s32.totalorder %s186, %s188
      %p195 = scmp.eq.s32.totalorder %s26, 1
      %p196 = por %p194, %p195
      %p197 = scmp.ne.s32.totalorder %s188, %s189
      %p198 = scmp.eq.s32.totalorder %s26, 0
      %p199 = por %p197, %p198
      %p200 = scmp.ne.s32.totalorder %s188, %s189
      %p201 = scmp.eq.s32.totalorder %s27, 1
      %p202 = por %p200, %p201
      %p204 = scmp.ne.s32.totalorder %s189, %s203
      %p205 = scmp.eq.s32.totalorder %s27, 0
      %p206 = por %p204, %p205
      %s208 = sadd.s32 %s207, 1
      %p211 = scmp.eq.s32.totalorder %s21, 1
      %p212 = scmp.ne.s32.totalorder %s207, %s209
      %p213 = scmp.eq.s32.totalorder %s21, 0
      %p214 = por %p212, %p213
      %p215 = scmp.ne.s32.totalorder %s207, %s209
      %p216 = scmp.eq.s32.totalorder %s26, 1
      %p217 = por %p215, %p216
      %p218 = scmp.ne.s32.totalorder %s209, %s210
      %p219 = scmp.eq.s32.totalorder %s26, 0
      %p220 = por %p218, %p219
      %p221 = scmp.ne.s32.totalorder %s209, %s210
      %p222 = scmp.eq.s32.totalorder %s27, 1
      %p223 = por %p221, %p222
      %p225 = scmp.ne.s32.totalorder %s210, %s224
      %p226 = scmp.eq.s32.totalorder %s27, 0
      %p227 = por %p225, %p226
      %s229 = sadd.s32 %s228, 1
      %p232 = scmp.eq.s32.totalorder %s21, 1
      %p233 = scmp.ne.s32.totalorder %s228, %s230
      %p234 = scmp.eq.s32.totalorder %s21, 0
      %p235 = por %p233, %p234
      %p236 = scmp.ne.s32.totalorder %s228, %s230
      %p237 = scmp.eq.s32.totalorder %s26, 1
      %p238 = por %p236, %p237
      %p239 = scmp.ne.s32.totalorder %s230, %s231
      %p240 = scmp.eq.s32.totalorder %s26, 0
      %p241 = por %p239, %p240
      %p242 = scmp.ne.s32.totalorder %s230, %s231
      %p243 = scmp.eq.s32.totalorder %s27, 1
      %p244 = por %p242, %p243
      %p246 = scmp.ne.s32.totalorder %s231, %s245
      %p247 = scmp.eq.s32.totalorder %s27, 0
      %p248 = por %p246, %p247
      %s250 = sadd.s32 %s249, 1
      %p253 = scmp.eq.s32.totalorder %s21, 1
      %p254 = scmp.ne.s32.totalorder %s249, %s251
      %p255 = scmp.eq.s32.totalorder %s21, 0
      %p256 = por %p254, %p255
      %p257 = scmp.ne.s32.totalorder %s249, %s251
      %p258 = scmp.eq.s32.totalorder %s26, 1
      %p259 = por %p257, %p258
      %p260 = scmp.ne.s32.totalorder %s251, %s252
      %p261 = scmp.eq.s32.totalorder %s26, 0
      %p262 = por %p260, %p261
      %p263 = scmp.ne.s32.totalorder %s251, %s252
      %p264 = scmp.eq.s32.totalorder %s27, 1
      %p265 = por %p263, %p264
      %p267 = scmp.ne.s32.totalorder %s252, %s266
      %p268 = scmp.eq.s32.totalorder %s27, 0
      %p269 = por %p267, %p268
      %s271 = sadd.s32 %s270, 1
      %p274 = scmp.eq.s32.totalorder %s21, 1
      %p275 = scmp.ne.s32.totalorder %s270, %s272
      %p276 = scmp.eq.s32.totalorder %s21, 0
      %p277 = por %p275, %p276
      %p278 = scmp.ne.s32.totalorder %s270, %s272
      %p279 = scmp.eq.s32.totalorder %s26, 1
      %p280 = por %p278, %p279
      %p281 = scmp.ne.s32.totalorder %s272, %s273
      %p282 = scmp.eq.s32.totalorder %s26, 0
      %p283 = por %p281, %p282
      %p284 = scmp.ne.s32.totalorder %s272, %s273
      %p285 = scmp.eq.s32.totalorder %s27, 1
      %p286 = por %p284, %p285
      %p288 = scmp.ne.s32.totalorder %s273, %s287
      %p289 = scmp.eq.s32.totalorder %s27, 0
      %p290 = por %p288, %p289
      %s291 = ssub.s32 %s21, %s28
      %p292 = scmp.eq.s32.totalorder %s291, 0
      %s294 = sadd.s32 %s293, 1
      %s295 = scalar_select %p292, %s293, %s294
      %p298 = pneg %p292
      %p299 = scmp.eq.s32.totalorder %s21, 1
      %p300 = por %p298, %p299
      %p301 = scmp.ne.s32.totalorder %s293, %s296
      %p302 = scmp.eq.s32.totalorder %s21, 0
      %p303 = por %p301, %p302
      %p304 = scmp.ne.s32.totalorder %s293, %s296
      %p305 = scmp.eq.s32.totalorder %s26, 1
      %p306 = por %p304, %p305
      %p307 = scmp.ne.s32.totalorder %s296, %s297
      %p308 = scmp.eq.s32.totalorder %s26, 0
      %p309 = por %p307, %p308
      %p310 = scmp.ne.s32.totalorder %s296, %s297
      %p311 = scmp.eq.s32.totalorder %s27, 1
      %p312 = por %p310, %p311
      %p314 = scmp.ne.s32.totalorder %s297, %s313
      %p315 = scmp.eq.s32.totalorder %s27, 0
      %p316 = por %p314, %p315
      %p317 = scmp.le.s32.totalorder 1, %s21
      %p318 = scmp.lt.s32.totalorder %s21, 3
      %p319 = pnand %p317, %p318
      %p320 = pneg %p319
      // Predicated region
      $region9: #{tpu_custom_call.1} parent=5 // pred_check
        _
      $region10: #{tpu_custom_call.1} parent=5 // pred_check_branch
        %322 = sbr.rel (%p319) target = $region12
      $region11: #{tpu_custom_call.1} parent=5 // pred_region
        %s323 = ssub.s32 %s21, 1
        // Predicated region
        $region13: #{tpu_custom_call.1} parent=11 // pred_check
          %p324 = pneg %p94
        $region14: #{tpu_custom_call.1} parent=11 // pred_check_branch
          %326 = sbr.rel (%p324) target = $region16
        $region15: #{tpu_custom_call.1} parent=11 // pred_region
          _
        $region16: #{tpu_custom_call.1} parent=11 // pred_fallthru
          _
        // Predicated region
        $region17: #{tpu_custom_call.1} parent=11 // pred_check
          %p327 = pneg %p115
        $region18: #{tpu_custom_call.1} parent=11 // pred_check_branch
          %329 = sbr.rel (%p327) target = $region20
        $region19: #{tpu_custom_call.1} parent=11 // pred_region
          _
        $region20: #{tpu_custom_call.1} parent=11 // pred_fallthru
          _
        // Predicated region
        $region21: #{tpu_custom_call.1} parent=11 // pred_check
          %p330 = pneg %p136
        $region22: #{tpu_custom_call.1} parent=11 // pred_check_branch
          %332 = sbr.rel (%p330) target = $region24
        $region23: #{tpu_custom_call.1} parent=11 // pred_region
          _
        $region24: #{tpu_custom_call.1} parent=11 // pred_fallthru
          _
        // Predicated region
        $region25: #{tpu_custom_call.1} parent=11 // pred_check
          %p333 = pneg %p157
        $region26: #{tpu_custom_call.1} parent=11 // pred_check_branch
          %335 = sbr.rel (%p333) target = $region28
        $region27: #{tpu_custom_call.1} parent=11 // pred_region
          _
        $region28: #{tpu_custom_call.1} parent=11 // pred_fallthru
          _
        // Predicated region
        $region29: #{tpu_custom_call.1} parent=11 // pred_check
          %p336 = pneg %p178
        $region30: #{tpu_custom_call.1} parent=11 // pred_check_branch
          %338 = sbr.rel (%p336) target = $region32
        $region31: #{tpu_custom_call.1} parent=11 // pred_region
          _
        $region32: #{tpu_custom_call.1} parent=11 // pred_fallthru
          _
        // Predicated region
        $region33: #{tpu_custom_call.1} parent=11 // pred_check
          %p339 = pneg %p199
        $region34: #{tpu_custom_call.1} parent=11 // pred_check_branch
          %341 = sbr.rel (%p339) target = $region36
        $region35: #{tpu_custom_call.1} parent=11 // pred_region
          _
        $region36: #{tpu_custom_call.1} parent=11 // pred_fallthru
          _
        // Predicated region
        $region37: #{tpu_custom_call.1} parent=11 // pred_check
          %p342 = pneg %p220
        $region38: #{tpu_custom_call.1} parent=11 // pred_check_branch
          %344 = sbr.rel (%p342) target = $region40
        $region39: #{tpu_custom_call.1} parent=11 // pred_region
          _
        $region40: #{tpu_custom_call.1} parent=11 // pred_fallthru
          _
        // Predicated region
        $region41: #{tpu_custom_call.1} parent=11 // pred_check
          %p345 = pneg %p241
        $region42: #{tpu_custom_call.1} parent=11 // pred_check_branch
          %347 = sbr.rel (%p345) target = $region44
        $region43: #{tpu_custom_call.1} parent=11 // pred_region
          _
        $region44: #{tpu_custom_call.1} parent=11 // pred_fallthru
          _
        // Predicated region
        $region45: #{tpu_custom_call.1} parent=11 // pred_check
          %p348 = pneg %p262
        $region46: #{tpu_custom_call.1} parent=11 // pred_check_branch
          %350 = sbr.rel (%p348) target = $region48
        $region47: #{tpu_custom_call.1} parent=11 // pred_region
          _
        $region48: #{tpu_custom_call.1} parent=11 // pred_fallthru
          _
        // Predicated region
        $region49: #{tpu_custom_call.1} parent=11 // pred_check
          %p351 = pneg %p283
        $region50: #{tpu_custom_call.1} parent=11 // pred_check_branch
          %353 = sbr.rel (%p351) target = $region52
        $region51: #{tpu_custom_call.1} parent=11 // pred_region
          _
        $region52: #{tpu_custom_call.1} parent=11 // pred_fallthru
          _
      $region12: #{tpu_custom_call.1} parent=5 // pred_fallthru
        _
      %p354 = scmp.lt.s32.totalorder %s21, 2
      // Predicated region
      $region53: #{tpu_custom_call.1} parent=5 // pred_check
        %p355 = pneg %p354
      $region54: #{tpu_custom_call.1} parent=5 // pred_check_branch
        %357 = sbr.rel (%p355) target = $region56
      $region55: #{tpu_custom_call.1} parent=5 // pred_region
        // Predicated region
        $region57: #{tpu_custom_call.1} parent=55 // pred_check
          %p358 = pneg %p41
        $region58: #{tpu_custom_call.1} parent=55 // pred_check_branch
          %360 = sbr.rel (%p358) target = $region60
        $region59: #{tpu_custom_call.1} parent=55 // pred_region
          %s361 = smul.u32 2, %s21
          %p362 = scmp.lt.s32.totalorder %s361, 3
          %s363 = scalar_select %p362, %s361, 3
          %s364 = smul.addr %s363, 8
          %s365 = scalar_lea.vmem %s0, %s364
          %s366 = smul.u32 2, %s21
        $region60: #{tpu_custom_call.1} parent=55 // pred_fallthru
          _
        // Predicated region
        $region61: #{tpu_custom_call.1} parent=55 // pred_check
          %p367 = pneg %p67
        $region62: #{tpu_custom_call.1} parent=55 // pred_check_branch
          %369 = sbr.rel (%p367) target = $region64
        $region63: #{tpu_custom_call.1} parent=55 // pred_region
          %s370 = smul.u32 16, %s21
          %p371 = scmp.lt.s32.totalorder %s370, 31
          %s372 = scalar_select %p371, %s370, 31
          %s373 = smul.addr %s372, 4
          %s374 = scalar_lea.vmem %s1, %s373
          %s375 = smul.u32 16, %s21
        $region64: #{tpu_custom_call.1} parent=55 // pred_fallthru
          _
      $region56: #{tpu_custom_call.1} parent=5 // pred_fallthru
        _
      %p376 = scmp.le.s32.totalorder 1, %s21
      %p377 = scmp.lt.s32.totalorder %s21, 3
      %p378 = pnand %p376, %p377
      %p379 = pneg %p378
      // Predicated region
      $region65: #{tpu_custom_call.1} parent=5 // pred_check
        _
      $region66: #{tpu_custom_call.1} parent=5 // pred_check_branch
        %381 = sbr.rel (%p378) target = $region68
      $region67: #{tpu_custom_call.1} parent=5 // pred_region
        %s382 = ssub.s32 %s21, 1
        %s383 = smul.u32 2, %s26
        %p384 = scmp.lt.s32.totalorder %s383, 3
        %s385 = scalar_select %p384, %s383, 3
        %s386 = smul.addr %s385, 8
        %s387 = scalar_lea.vmem %s0, %s386
        %p388 = pneg %p47
        %p389 = pneg %p44
        %s390 = smul.u32 16, %s26
        %p391 = scmp.lt.s32.totalorder %s390, 31
        %s392 = scalar_select %p391, %s390, 31
        %s393 = smul.addr %s392, 4
        %s394 = scalar_lea.vmem %s1, %s393
        %p395 = pneg %p73
        %p396 = pneg %p70
        %p397 = pneg %p94
        %p398 = pneg %p91
        %p399 = pneg %p115
        %p400 = pneg %p112
        %p401 = pneg %p136
        %p402 = pneg %p133
        %p403 = pneg %p157
        %p404 = pneg %p154
        %p405 = pneg %p178
        %p406 = pneg %p175
        %p407 = pneg %p199
        %p408 = pneg %p196
        %p409 = pneg %p220
        %p410 = pneg %p217
        %p411 = pneg %p241
        %p412 = pneg %p238
        %p413 = pneg %p262
        %p414 = pneg %p259
        %p415 = pneg %p283
        %p416 = pneg %p280
        %p417 = pneg %p309
        %p418 = pneg %p306
        %s419 = sand.u32 %s296, 1
        %s420 = scalar_lea.sflag [#allocation3], %s419
        %s421 = sand.u32 %s296, 1
        %s422 = smul.addr %s421, 16
        %s423 = scalar_lea.vmem [#allocation2], %s422
        %s424 = smul.u32 2, %s26
        %p425 = scmp.lt.s32.totalorder %s424, 3
        %s426 = scalar_select %p425, %s424, 3
        %s427 = smul.addr %s426, 8
        %s428 = scalar_lea.vmem %s0, %s427
        %s429 = smul.u32 2, %s26
        %s430 = smul.u32 16, %s26
        %p431 = scmp.lt.s32.totalorder %s430, 31
        %s432 = scalar_select %p431, %s430, 31
        %s433 = smul.addr %s432, 4
        %s434 = scalar_lea.vmem %s1, %s433
        %s435 = smul.u32 16, %s26
        %s436 = smul.u32 2, %s26
        %v438 = vld [vmem:[%s428] sm:$0xff]
        %v439 = vld [vmem:[%s428 + $0x8] sm:$0xff]
        %v440 = vpack.c.bf16 %v439, %v438
        %v441 = vld [vmem:[%s2] sm:$0xf]
        %v442 = vld [vmem:[%s2 + $0x4] sm:$0xf]
        %v443 = vld [vmem:[%s2 + $0x8] sm:$0xf]
        %v444 = vld [vmem:[%s2 + $0xc] sm:$0xf]
        %v449 = vunpack.c.l.b16 %v441
        %v450 = vunpack.c.l.b16 %v442
        %v451 = vunpack.c.l.b16 %v443
        %v452 = vunpack.c.l.b16 %v444
        %v453 = vpack.c.b16 %v450, %v449
        %v454 = vpack.c.b16 %v452, %v451
        %vm457 = vcmask 261120
        %v459 = vsel %vm457, %v440, 0
        %461 = vmatprep.subr.bf16.mxu0 0
        %462 = vmatpush1.bf16.msra.mxu0 %v453
        %463 = vmatprep.subr.bf16.mxu0 0
        %464 = vmatpush1.bf16.msra.mxu0 %v454
        %465 = vmatprep.subr.bf16.mxu0 0
        %466 = vmatpush1.bf16.msra.mxu0 0
        %467 = vmatprep.subr.bf16.mxu0 0
        %468 = vmatpush1.bf16.msra.mxu0 0
        %469 = vmatprep.subr.bf16.mxu0 0
        %470 = vmatpush1.bf16.msra.mxu0 0
        %471 = vmatprep.subr.bf16.mxu0 0
        %472 = vmatpush1.bf16.msra.mxu0 0
        %473 = vmatprep.subr.bf16.mxu0 0
        %474 = vmatpush1.bf16.msra.mxu0 0
        %475 = vmatprep.subr.bf16.mxu0 0
        %476 = vmatpush1.bf16.msra.mxu0 0
        %477 = vmatprep.subr.bf16.mxu0 0
        %478 = vmatpush1.bf16.msra.mxu0 0
        %479 = vmatprep.subr.bf16.mxu0 0
        %480 = vmatpush1.bf16.msra.mxu0 0
        %481 = vmatprep.subr.bf16.mxu0 0
        %482 = vmatpush1.bf16.msra.mxu0 0
        %483 = vmatprep.subr.bf16.mxu0 0
        %484 = vmatpush1.bf16.msra.mxu0 0
        %485 = vmatprep.subr.bf16.mxu0 0
        %486 = vmatpush1.bf16.msra.mxu0 0
        %487 = vmatprep.subr.bf16.mxu0 0
        %488 = vmatpush1.bf16.msra.mxu0 0
        %489 = vmatprep.subr.bf16.mxu0 0
        %490 = vmatpush1.bf16.msra.mxu0 0
        %491 = vmatprep.subr.bf16.mxu0 0
        %492 = vmatpush1.bf16.msra.mxu0 0
        %493 = vmatprep.mubr.bf16.mxu0 0
        %494 = vmatmul.mubr.bf16.gmra.mrb[0].mxu0 %v459
        %v495 = vpop.f32.mrb[0].mxu0
        %v496 = vadd.f32 0.0, %v495
        %v497 = vpop.f32.mrb[0].mxu0
        %v498 = vpop.f32.mrb[0].mxu0
        %v499 = vadd.f32 0.0, %v498
        %v500 = vpop.f32.mrb[0].mxu0
        %501 = vdwg.mxu0
        %v502 = vld [vmem:[%s434] sm:$0xf]
        %v503 = vld [vmem:[%s434 + $0x4] sm:$0xf]
        %v504 = vld [vmem:[%s434 + $0x8] sm:$0xf]
        %v505 = vld [vmem:[%s434 + $0xc] sm:$0xf]
        %v506 = vld [vmem:[%s434 + $0x10] sm:$0xf]
        %v507 = vld [vmem:[%s434 + $0x14] sm:$0xf]
        %v508 = vld [vmem:[%s434 + $0x18] sm:$0xf]
        %v509 = vld [vmem:[%s434 + $0x1c] sm:$0xf]
        %v510 = vld [vmem:[%s434 + $0x20] sm:$0xf]
        %v511 = vld [vmem:[%s434 + $0x24] sm:$0xf]
        %v512 = vld [vmem:[%s434 + $0x28] sm:$0xf]
        %v513 = vld [vmem:[%s434 + $0x2c] sm:$0xf]
        %v514 = vld [vmem:[%s434 + $0x30] sm:$0xf]
        %v515 = vld [vmem:[%s434 + $0x34] sm:$0xf]
        %v516 = vld [vmem:[%s434 + $0x38] sm:$0xf]
        %v517 = vld [vmem:[%s434 + $0x3c] sm:$0xf]
        %v518 = vld [vmem:[%s3] sm:$0xf]
        %v519 = vld [vmem:[%s3 + $0x4] sm:$0xf]
        %v520 = vld [vmem:[%s3 + $0x8] sm:$0xf]
        %v521 = vld [vmem:[%s3 + $0xc] sm:$0xf]
        %v538 = vunpack.c.l.b16 %v502
        %v539 = vunpack.c.l.b16 %v503
        %v540 = vunpack.c.l.b16 %v504
        %v541 = vunpack.c.l.b16 %v505
        %v542 = vunpack.c.l.b16 %v506
        %v543 = vunpack.c.l.b16 %v507
        %v544 = vunpack.c.l.b16 %v508
        %v545 = vunpack.c.l.b16 %v509
        %v546 = vunpack.c.l.b16 %v510
        %v547 = vunpack.c.l.b16 %v511
        %v548 = vunpack.c.l.b16 %v512
        %v549 = vunpack.c.l.b16 %v513
        %v550 = vunpack.c.l.b16 %v514
        %v551 = vunpack.c.l.b16 %v515
        %v552 = vunpack.c.l.b16 %v516
        %v553 = vunpack.c.l.b16 %v517
        %v554 = vpack.c.b16 %v539, %v538
        %v555 = vpack.c.b16 %v541, %v540
        %v556 = vpack.c.b16 %v543, %v542
        %v557 = vpack.c.b16 %v545, %v544
        %v558 = vpack.c.b16 %v547, %v546
        %v559 = vpack.c.b16 %v549, %v548
        %v560 = vpack.c.b16 %v551, %v550
        %v561 = vpack.c.b16 %v553, %v552
        %v566 = vunpack.c.l.b16 %v518
        %v567 = vunpack.c.l.b16 %v519
        %v568 = vunpack.c.l.b16 %v520
        %v569 = vunpack.c.l.b16 %v521
        %v570 = vpack.c.b16 %v567, %v566
        %v571 = vpack.c.b16 %v569, %v568
        %v575 = vsel %vm457, %v554, 0
        %v578 = vsel %vm457, %v555, 0
        %v581 = vsel %vm457, %v556, 0
        %v584 = vsel %vm457, %v557, 0
        %v587 = vsel %vm457, %v558, 0
        %v590 = vsel %vm457, %v559, 0
        %v593 = vsel %vm457, %v560, 0
        %v596 = vsel %vm457, %v561, 0
        %598 = vmatprep.subr.bf16.mxu0 0
        %599 = vmatpush1.bf16.msra.mxu0 %v570
        %600 = vmatprep.subr.bf16.mxu0 0
        %601 = vmatpush1.bf16.msra.mxu0 %v571
        %602 = vmatprep.subr.bf16.mxu0 0
        %603 = vmatpush1.bf16.msra.mxu0 0
        %604 = vmatprep.subr.bf16.mxu0 0
        %605 = vmatpush1.bf16.msra.mxu0 0
        %606 = vmatprep.subr.bf16.mxu0 0
        %607 = vmatpush1.bf16.msra.mxu0 0
        %608 = vmatprep.subr.bf16.mxu0 0
        %609 = vmatpush1.bf16.msra.mxu0 0
        %610 = vmatprep.subr.bf16.mxu0 0
        %611 = vmatpush1.bf16.msra.mxu0 0
        %612 = vmatprep.subr.bf16.mxu0 0
        %613 = vmatpush1.bf16.msra.mxu0 0
        %614 = vmatprep.subr.bf16.mxu0 0
        %615 = vmatpush1.bf16.msra.mxu0 0
        %616 = vmatprep.subr.bf16.mxu0 0
        %617 = vmatpush1.bf16.msra.mxu0 0
        %618 = vmatprep.subr.bf16.mxu0 0
        %619 = vmatpush1.bf16.msra.mxu0 0
        %620 = vmatprep.subr.bf16.mxu0 0
        %621 = vmatpush1.bf16.msra.mxu0 0
        %622 = vmatprep.subr.bf16.mxu0 0
        %623 = vmatpush1.bf16.msra.mxu0 0
        %624 = vmatprep.subr.bf16.mxu0 0
        %625 = vmatpush1.bf16.msra.mxu0 0
        %626 = vmatprep.subr.bf16.mxu0 0
        %627 = vmatpush1.bf16.msra.mxu0 0
        %628 = vmatprep.subr.bf16.mxu0 0
        %629 = vmatpush1.bf16.msra.mxu0 0
        %630 = vmatprep.mubr.bf16.mxu0 0
        %631 = vmatmul.mubr.bf16.gmra.mrb[0].mxu0 %v575
        %v632 = vpop.f32.mrb[0].mxu0
        %v633 = vadd.f32 0.0, %v632
        %v634 = vpop.f32.mrb[0].mxu0
        %v635 = vpop.f32.mrb[0].mxu0
        %v636 = vadd.f32 0.0, %v635
        %v637 = vpop.f32.mrb[0].mxu0
        %638 = vmatprep.mubr.bf16.mxu0 0
        %639 = vmatmul.mubr.bf16.gmra.mrb[0].mxu0 %v578
        %v640 = vpop.f32.mrb[0].mxu0
        %v641 = vadd.f32 0.0, %v640
        %v642 = vpop.f32.mrb[0].mxu0
        %v643 = vpop.f32.mrb[0].mxu0
        %v644 = vadd.f32 0.0, %v643
        %v645 = vpop.f32.mrb[0].mxu0
        %646 = vmatprep.mubr.bf16.mxu0 0
        %647 = vmatmul.mubr.bf16.gmra.mrb[0].mxu0 %v581
        %v648 = vpop.f32.mrb[0].mxu0
        %v649 = vadd.f32 0.0, %v648
        %v650 = vpop.f32.mrb[0].mxu0
        %v651 = vpop.f32.mrb[0].mxu0
        %v652 = vadd.f32 0.0, %v651
        %v653 = vpop.f32.mrb[0].mxu0
        %654 = vmatprep.mubr.bf16.mxu0 0
        %655 = vmatmul.mubr.bf16.gmra.mrb[0].mxu0 %v584
        %v656 = vpop.f32.mrb[0].mxu0
        %v657 = vadd.f32 0.0, %v656
        %v658 = vpop.f32.mrb[0].mxu0
        %v659 = vpop.f32.mrb[0].mxu0
        %v660 = vadd.f32 0.0, %v659
        %v661 = vpop.f32.mrb[0].mxu0
        %662 = vmatprep.mubr.bf16.mxu0 0
        %663 = vmatmul.mubr.bf16.gmra.mrb[0].mxu0 %v587
        %v664 = vpop.f32.mrb[0].mxu0
        %v665 = vadd.f32 0.0, %v664
        %v666 = vpop.f32.mrb[0].mxu0
        %v667 = vpop.f32.mrb[0].mxu0
        %v668 = vadd.f32 0.0, %v667
        %v669 = vpop.f32.mrb[0].mxu0
        %670 = vmatprep.mubr.bf16.mxu0 0
        %671 = vmatmul.mubr.bf16.gmra.mrb[0].mxu0 %v590
        %v672 = vpop.f32.mrb[0].mxu0
        %v673 = vadd.f32 0.0, %v672
        %v674 = vpop.f32.mrb[0].mxu0
        %v675 = vpop.f32.mrb[0].mxu0
        %v676 = vadd.f32 0.0, %v675
        %v677 = vpop.f32.mrb[0].mxu0
        %678 = vmatprep.mubr.bf16.mxu0 0
        %679 = vmatmul.mubr.bf16.gmra.mrb[0].mxu0 %v593
        %v680 = vpop.f32.mrb[0].mxu0
        %v681 = vadd.f32 0.0, %v680
        %v682 = vpop.f32.mrb[0].mxu0
        %v683 = vpop.f32.mrb[0].mxu0
        %v684 = vadd.f32 0.0, %v683
        %v685 = vpop.f32.mrb[0].mxu0
        %686 = vmatprep.mubr.bf16.mxu0 0
        %687 = vmatmul.mubr.bf16.gmra.mrb[0].mxu0 %v596
        %v688 = vpop.f32.mrb[0].mxu0
        %v689 = vadd.f32 0.0, %v688
        %v690 = vpop.f32.mrb[0].mxu0
        %v691 = vpop.f32.mrb[0].mxu0
        %v692 = vadd.f32 0.0, %v691
        %v693 = vpop.f32.mrb[0].mxu0
        %694 = vdwg.mxu0
        %v697 = vcombine.high %v496, %v496
        %v699 = vunpack.c.l.s4 1966171168
        %v700 = vunpack.c.0.s8 %v699
        %v701 = vlaneseq
        %v702 = vshrl.u32 %v701, 7
        %v703 = vsub.s32 %v700, %v702
        %v704 = vrot.slane %v496, %v703
        %v706 = vunpack.c.l.s4 1966171168
        %v707 = vunpack.c.0.s8 %v706
        %v708 = vlaneseq
        %v709 = vshrl.u32 %v708, 7
        %v710 = vsub.s32 %v707, %v709
        %v711 = vrot.slane %v697, %v710
        %v712 = vcombine.high %v704, %v704
        %v713 = vcombine.high %v711, %v711
        %v715 = vunpack.c.l.s4 1966171168
        %v716 = vunpack.c.0.s8 %v715
        %v717 = vlaneseq
        %v718 = vshrl.u32 %v717, 7
        %v719 = vsub.s32 %v716, %v718
        %v720 = vrot.slane %v704, %v719
        %v722 = vunpack.c.l.s4 1966171168
        %v723 = vunpack.c.0.s8 %v722
        %v724 = vlaneseq
        %v725 = vshrl.u32 %v724, 7
        %v726 = vsub.s32 %v723, %v725
        %v727 = vrot.slane %v711, %v726
        %v729 = vunpack.c.l.s4 1966171168
        %v730 = vunpack.c.0.s8 %v729
        %v731 = vlaneseq
        %v732 = vshrl.u32 %v731, 7
        %v733 = vsub.s32 %v730, %v732
        %v734 = vrot.slane %v712, %v733
        %v736 = vunpack.c.l.s4 1966171168
        %v737 = vunpack.c.0.s8 %v736
        %v738 = vlaneseq
        %v739 = vshrl.u32 %v738, 7
        %v740 = vsub.s32 %v737, %v739
        %v741 = vrot.slane %v713, %v740
        %v742 = vcombine.high %v720, %v720
        %v743 = vcombine.high %v727, %v727
        %v744 = vcombine.high %v734, %v734
        %v745 = vcombine.high %v741, %v741
        %v746 = vcombine.high %v499, %v499
        %v748 = vunpack.c.l.s4 1966171168
        %v749 = vunpack.c.0.s8 %v748
        %v750 = vlaneseq
        %v751 = vshrl.u32 %v750, 7
        %v752 = vsub.s32 %v749, %v751
        %v753 = vrot.slane %v499, %v752
        %v755 = vunpack.c.l.s4 1966171168
        %v756 = vunpack.c.0.s8 %v755
        %v757 = vlaneseq
        %v758 = vshrl.u32 %v757, 7
        %v759 = vsub.s32 %v756, %v758
        %v760 = vrot.slane %v746, %v759
        %v761 = vcombine.high %v753, %v753
        %v762 = vcombine.high %v760, %v760
        %v764 = vunpack.c.l.s4 1966171168
        %v765 = vunpack.c.0.s8 %v764
        %v766 = vlaneseq
        %v767 = vshrl.u32 %v766, 7
        %v768 = vsub.s32 %v765, %v767
        %v769 = vrot.slane %v753, %v768
        %v771 = vunpack.c.l.s4 1966171168
        %v772 = vunpack.c.0.s8 %v771
        %v773 = vlaneseq
        %v774 = vshrl.u32 %v773, 7
        %v775 = vsub.s32 %v772, %v774
        %v776 = vrot.slane %v760, %v775
        %v778 = vunpack.c.l.s4 1966171168
        %v779 = vunpack.c.0.s8 %v778
        %v780 = vlaneseq
        %v781 = vshrl.u32 %v780, 7
        %v782 = vsub.s32 %v779, %v781
        %v783 = vrot.slane %v761, %v782
        %v785 = vunpack.c.l.s4 1966171168
        %v786 = vunpack.c.0.s8 %v785
        %v787 = vlaneseq
        %v788 = vshrl.u32 %v787, 7
        %v789 = vsub.s32 %v786, %v788
        %v790 = vrot.slane %v762, %v789
        %v791 = vcombine.high %v769, %v769
        %v792 = vcombine.high %v776, %v776
        %v793 = vcombine.high %v783, %v783
        %v794 = vcombine.high %v790, %v790
        %v795 = vlaneseq
        %v796 = vshrl.u32 %v795, 7
        %v797 = vsub.s32 0, %v796
        %v798 = vrot.slane %v720, %v797
        %v799 = vlaneseq
        %v800 = vshrl.u32 %v799, 7
        %v801 = vsub.s32 0, %v800
        %v802 = vrot.slane %v734, %v801
        %v803 = vlaneseq
        %v804 = vshrl.u32 %v803, 7
        %v805 = vsub.s32 0, %v804
        %v806 = vrot.slane %v742, %v805
        %v807 = vlaneseq
        %v808 = vshrl.u32 %v807, 7
        %v809 = vsub.s32 0, %v808
        %v810 = vrot.slane %v744, %v809
        %v811 = vlaneseq
        %v812 = vshrl.u32 %v811, 7
        %v813 = vsub.s32 0, %v812
        %v814 = vrot.slane %v727, %v813
        %v815 = vlaneseq
        %v816 = vshrl.u32 %v815, 7
        %v817 = vsub.s32 0, %v816
        %v818 = vrot.slane %v741, %v817
        %v819 = vlaneseq
        %v820 = vshrl.u32 %v819, 7
        %v821 = vsub.s32 0, %v820
        %v822 = vrot.slane %v743, %v821
        %v823 = vlaneseq
        %v824 = vshrl.u32 %v823, 7
        %v825 = vsub.s32 0, %v824
        %v826 = vrot.slane %v745, %v825
        %v827 = vlaneseq
        %v828 = vshrl.u32 %v827, 7
        %v829 = vsub.s32 0, %v828
        %v830 = vrot.slane %v769, %v829
        %v831 = vlaneseq
        %v832 = vshrl.u32 %v831, 7
        %v833 = vsub.s32 0, %v832
        %v834 = vrot.slane %v783, %v833
        %v835 = vlaneseq
        %v836 = vshrl.u32 %v835, 7
        %v837 = vsub.s32 0, %v836
        %v838 = vrot.slane %v791, %v837
        %v839 = vlaneseq
        %v840 = vshrl.u32 %v839, 7
        %v841 = vsub.s32 0, %v840
        %v842 = vrot.slane %v793, %v841
        %v843 = vlaneseq
        %v844 = vshrl.u32 %v843, 7
        %v845 = vsub.s32 0, %v844
        %v846 = vrot.slane %v776, %v845
        %v847 = vlaneseq
        %v848 = vshrl.u32 %v847, 7
        %v849 = vsub.s32 0, %v848
        %v850 = vrot.slane %v790, %v849
        %v851 = vlaneseq
        %v852 = vshrl.u32 %v851, 7
        %v853 = vsub.s32 0, %v852
        %v854 = vrot.slane %v792, %v853
        %v855 = vlaneseq
        %v856 = vshrl.u32 %v855, 7
        %v857 = vsub.s32 0, %v856
        %v858 = vrot.slane %v794, %v857
        %v875 = vmul.f32 %v798, %v633
        %v876 = vmul.f32 %v802, %v636
        %v877 = vmul.f32 %v806, %v641
        %v878 = vmul.f32 %v810, %v644
        %v879 = vmul.f32 %v814, %v649
        %v880 = vmul.f32 %v818, %v652
        %v881 = vmul.f32 %v822, %v657
        %v882 = vmul.f32 %v826, %v660
        %v883 = vmul.f32 %v830, %v665
        %v884 = vmul.f32 %v834, %v668
        %v885 = vmul.f32 %v838, %v673
        %v886 = vmul.f32 %v842, %v676
        %v887 = vmul.f32 %v846, %v681
        %v888 = vmul.f32 %v850, %v684
        %v889 = vmul.f32 %v854, %v689
        %v890 = vmul.f32 %v858, %v692
        %v891 = vpack.c.bf16 %v876, %v875
        %v892 = vpack.c.bf16 %v878, %v877
        %v893 = vpack.c.bf16 %v880, %v879
        %v894 = vpack.c.bf16 %v882, %v881
        %v895 = vpack.c.bf16 %v884, %v883
        %v896 = vpack.c.bf16 %v886, %v885
        %v897 = vpack.c.bf16 %v888, %v887
        %v898 = vpack.c.bf16 %v890, %v889
        %v899 = vld [vmem:[%s4] sm:$0xf]
        %v900 = vld [vmem:[%s4 + $0x4] sm:$0xf]
        %v901 = vld [vmem:[%s4 + $0x8] sm:$0xf]
        %v902 = vld [vmem:[%s4 + $0xc] sm:$0xf]
        %v907 = vunpack.c.l.b16 %v899
        %v908 = vunpack.c.l.b16 %v900
        %v909 = vunpack.c.l.b16 %v901
        %v910 = vunpack.c.l.b16 %v902
        %v911 = vpack.c.b16 %v908, %v907
        %v912 = vpack.c.b16 %v910, %v909
        %v916 = vsel %vm457, %v891, 0
        %v919 = vsel %vm457, %v892, 0
        %v922 = vsel %vm457, %v893, 0
        %v925 = vsel %vm457, %v894, 0
        %v928 = vsel %vm457, %v895, 0
        %v931 = vsel %vm457, %v896, 0
        %v934 = vsel %vm457, %v897, 0
        %v937 = vsel %vm457, %v898, 0
        %939 = vmatprep.subr.bf16.mxu0 0
        %940 = vmatpush1.bf16.msra.mxu0 %v911
        %941 = vmatprep.subr.bf16.mxu0 0
        %942 = vmatpush1.bf16.msra.mxu0 %v912
        %943 = vmatprep.subr.bf16.mxu0 0
        %944 = vmatpush1.bf16.msra.mxu0 0
        %945 = vmatprep.subr.bf16.mxu0 0
        %946 = vmatpush1.bf16.msra.mxu0 0
        %947 = vmatprep.subr.bf16.mxu0 0
        %948 = vmatpush1.bf16.msra.mxu0 0
        %949 = vmatprep.subr.bf16.mxu0 0
        %950 = vmatpush1.bf16.msra.mxu0 0
        %951 = vmatprep.subr.bf16.mxu0 0
        %952 = vmatpush1.bf16.msra.mxu0 0
        %953 = vmatprep.subr.bf16.mxu0 0
        %954 = vmatpush1.bf16.msra.mxu0 0
        %955 = vmatprep.subr.bf16.mxu0 0
        %956 = vmatpush1.bf16.msra.mxu0 0
        %957 = vmatprep.subr.bf16.mxu0 0
        %958 = vmatpush1.bf16.msra.mxu0 0
        %959 = vmatprep.subr.bf16.mxu0 0
        %960 = vmatpush1.bf16.msra.mxu0 0
        %961 = vmatprep.subr.bf16.mxu0 0
        %962 = vmatpush1.bf16.msra.mxu0 0
        %963 = vmatprep.subr.bf16.mxu0 0
        %964 = vmatpush1.bf16.msra.mxu0 0
        %965 = vmatprep.subr.bf16.mxu0 0
        %966 = vmatpush1.bf16.msra.mxu0 0
        %967 = vmatprep.subr.bf16.mxu0 0
        %968 = vmatpush1.bf16.msra.mxu0 0
        %969 = vmatprep.subr.bf16.mxu0 0
        %970 = vmatpush1.bf16.msra.mxu0 0
        %971 = vmatprep.mubr.bf16.mxu0 0
        %972 = vmatmul.mubr.bf16.gmra.mrb[0].mxu0 %v916
        %v973 = vpop.f32.mrb[0].mxu0
        %v974 = vadd.f32 0.0, %v973
        %v975 = vpop.f32.mrb[0].mxu0
        %v976 = vpop.f32.mrb[0].mxu0
        %v977 = vadd.f32 0.0, %v976
        %v978 = vpop.f32.mrb[0].mxu0
        %979 = vmatprep.mubr.bf16.mxu0 0
        %980 = vmatmul.mubr.bf16.gmra.mrb[0].mxu0 %v919
        %v981 = vpop.f32.mrb[0].mxu0
        %v982 = vadd.f32 0.0, %v981
        %v983 = vpop.f32.mrb[0].mxu0
        %v984 = vpop.f32.mrb[0].mxu0
        %v985 = vadd.f32 0.0, %v984
        %v986 = vpop.f32.mrb[0].mxu0
        %987 = vmatprep.mubr.bf16.mxu0 0
        %988 = vmatmul.mubr.bf16.gmra.mrb[0].mxu0 %v922
        %v989 = vpop.f32.mrb[0].mxu0
        %v990 = vadd.f32 0.0, %v989
        %v991 = vpop.f32.mrb[0].mxu0
        %v992 = vpop.f32.mrb[0].mxu0
        %v993 = vadd.f32 0.0, %v992
        %v994 = vpop.f32.mrb[0].mxu0
        %995 = vmatprep.mubr.bf16.mxu0 0
        %996 = vmatmul.mubr.bf16.gmra.mrb[0].mxu0 %v925
        %v997 = vpop.f32.mrb[0].mxu0
        %v998 = vadd.f32 0.0, %v997
        %v999 = vpop.f32.mrb[0].mxu0
        %v1000 = vpop.f32.mrb[0].mxu0
        %v1001 = vadd.f32 0.0, %v1000
        %v1002 = vpop.f32.mrb[0].mxu0
        %1003 = vmatprep.mubr.bf16.mxu0 0
        %1004 = vmatmul.mubr.bf16.gmra.mrb[0].mxu0 %v928
        %v1005 = vpop.f32.mrb[0].mxu0
        %v1006 = vadd.f32 0.0, %v1005
        %v1007 = vpop.f32.mrb[0].mxu0
        %v1008 = vpop.f32.mrb[0].mxu0
        %v1009 = vadd.f32 0.0, %v1008
        %v1010 = vpop.f32.mrb[0].mxu0
        %1011 = vmatprep.mubr.bf16.mxu0 0
        %1012 = vmatmul.mubr.bf16.gmra.mrb[0].mxu0 %v931
        %v1013 = vpop.f32.mrb[0].mxu0
        %v1014 = vadd.f32 0.0, %v1013
        %v1015 = vpop.f32.mrb[0].mxu0
        %v1016 = vpop.f32.mrb[0].mxu0
        %v1017 = vadd.f32 0.0, %v1016
        %v1018 = vpop.f32.mrb[0].mxu0
        %1019 = vmatprep.mubr.bf16.mxu0 0
        %1020 = vmatmul.mubr.bf16.gmra.mrb[0].mxu0 %v934
        %v1021 = vpop.f32.mrb[0].mxu0
        %v1022 = vadd.f32 0.0, %v1021
        %v1023 = vpop.f32.mrb[0].mxu0
        %v1024 = vpop.f32.mrb[0].mxu0
        %v1025 = vadd.f32 0.0, %v1024
        %v1026 = vpop.f32.mrb[0].mxu0
        %1027 = vmatprep.mubr.bf16.mxu0 0
        %1028 = vmatmul.mubr.bf16.gmra.mrb[0].mxu0 %v937
        %v1029 = vpop.f32.mrb[0].mxu0
        %v1030 = vadd.f32 0.0, %v1029
        %v1031 = vpop.f32.mrb[0].mxu0
        %v1032 = vpop.f32.mrb[0].mxu0
        %v1033 = vadd.f32 0.0, %v1032
        %v1034 = vpop.f32.mrb[0].mxu0
        %1035 = vdwg.mxu0
        %vm1036 = vcmask 64512
        %v1037 = vsel %vm1036, %v974, -inf
        %v1038 = vrot.slane %v1037, 4
        %v1039 = vmax.f32 %v1037, %v1038
        %v1040 = vrot.slane %v1039, 2
        %v1041 = vmax.f32 %v1039, %v1040
        %v1042 = vrot.slane %v1041, 1
        %v1043 = vmax.f32 %v1041, %v1042
        %v1044 = vsel %vm1036, %v977, -inf
        %v1045 = vrot.slane %v1044, 4
        %v1046 = vmax.f32 %v1044, %v1045
        %v1047 = vrot.slane %v1046, 2
        %v1048 = vmax.f32 %v1046, %v1047
        %v1049 = vrot.slane %v1048, 1
        %v1050 = vmax.f32 %v1048, %v1049
        %v1051 = vsel %vm1036, %v982, -inf
        %v1052 = vrot.slane %v1051, 4
        %v1053 = vmax.f32 %v1051, %v1052
        %v1054 = vrot.slane %v1053, 2
        %v1055 = vmax.f32 %v1053, %v1054
        %v1056 = vrot.slane %v1055, 1
        %v1057 = vmax.f32 %v1055, %v1056
        %v1058 = vsel %vm1036, %v985, -inf
        %v1059 = vrot.slane %v1058, 4
        %v1060 = vmax.f32 %v1058, %v1059
        %v1061 = vrot.slane %v1060, 2
        %v1062 = vmax.f32 %v1060, %v1061
        %v1063 = vrot.slane %v1062, 1
        %v1064 = vmax.f32 %v1062, %v1063
        %v1065 = vsel %vm1036, %v990, -inf
        %v1066 = vrot.slane %v1065, 4
        %v1067 = vmax.f32 %v1065, %v1066
        %v1068 = vrot.slane %v1067, 2
        %v1069 = vmax.f32 %v1067, %v1068
        %v1070 = vrot.slane %v1069, 1
        %v1071 = vmax.f32 %v1069, %v1070
        %v1072 = vsel %vm1036, %v993, -inf
        %v1073 = vrot.slane %v1072, 4
        %v1074 = vmax.f32 %v1072, %v1073
        %v1075 = vrot.slane %v1074, 2
        %v1076 = vmax.f32 %v1074, %v1075
        %v1077 = vrot.slane %v1076, 1
        %v1078 = vmax.f32 %v1076, %v1077
        %v1079 = vsel %vm1036, %v998, -inf
        %v1080 = vrot.slane %v1079, 4
        %v1081 = vmax.f32 %v1079, %v1080
        %v1082 = vrot.slane %v1081, 2
        %v1083 = vmax.f32 %v1081, %v1082
        %v1084 = vrot.slane %v1083, 1
        %v1085 = vmax.f32 %v1083, %v1084
        %v1086 = vsel %vm1036, %v1001, -inf
        %v1087 = vrot.slane %v1086, 4
        %v1088 = vmax.f32 %v1086, %v1087
        %v1089 = vrot.slane %v1088, 2
        %v1090 = vmax.f32 %v1088, %v1089
        %v1091 = vrot.slane %v1090, 1
        %v1092 = vmax.f32 %v1090, %v1091
        %v1093 = vsel %vm1036, %v1006, -inf
        %v1094 = vrot.slane %v1093, 4
        %v1095 = vmax.f32 %v1093, %v1094
        %v1096 = vrot.slane %v1095, 2
        %v1097 = vmax.f32 %v1095, %v1096
        %v1098 = vrot.slane %v1097, 1
        %v1099 = vmax.f32 %v1097, %v1098
        %v1100 = vsel %vm1036, %v1009, -inf
        %v1101 = vrot.slane %v1100, 4
        %v1102 = vmax.f32 %v1100, %v1101
        %v1103 = vrot.slane %v1102, 2
        %v1104 = vmax.f32 %v1102, %v1103
        %v1105 = vrot.slane %v1104, 1
        %v1106 = vmax.f32 %v1104, %v1105
        %v1107 = vsel %vm1036, %v1014, -inf
        %v1108 = vrot.slane %v1107, 4
        %v1109 = vmax.f32 %v1107, %v1108
        %v1110 = vrot.slane %v1109, 2
        %v1111 = vmax.f32 %v1109, %v1110
        %v1112 = vrot.slane %v1111, 1
        %v1113 = vmax.f32 %v1111, %v1112
        %v1114 = vsel %vm1036, %v1017, -inf
        %v1115 = vrot.slane %v1114, 4
        %v1116 = vmax.f32 %v1114, %v1115
        %v1117 = vrot.slane %v1116, 2
        %v1118 = vmax.f32 %v1116, %v1117
        %v1119 = vrot.slane %v1118, 1
        %v1120 = vmax.f32 %v1118, %v1119
        %v1121 = vsel %vm1036, %v1022, -inf
        %v1122 = vrot.slane %v1121, 4
        %v1123 = vmax.f32 %v1121, %v1122
        %v1124 = vrot.slane %v1123, 2
        %v1125 = vmax.f32 %v1123, %v1124
        %v1126 = vrot.slane %v1125, 1
        %v1127 = vmax.f32 %v1125, %v1126
        %v1128 = vsel %vm1036, %v1025, -inf
        %v1129 = vrot.slane %v1128, 4
        %v1130 = vmax.f32 %v1128, %v1129
        %v1131 = vrot.slane %v1130, 2
        %v1132 = vmax.f32 %v1130, %v1131
        %v1133 = vrot.slane %v1132, 1
        %v1134 = vmax.f32 %v1132, %v1133
        %v1135 = vsel %vm1036, %v1030, -inf
        %v1136 = vrot.slane %v1135, 4
        %v1137 = vmax.f32 %v1135, %v1136
        %v1138 = vrot.slane %v1137, 2
        %v1139 = vmax.f32 %v1137, %v1138
        %v1140 = vrot.slane %v1139, 1
        %v1141 = vmax.f32 %v1139, %v1140
        %v1142 = vsel %vm1036, %v1033, -inf
        %v1143 = vrot.slane %v1142, 4
        %v1144 = vmax.f32 %v1142, %v1143
        %v1145 = vrot.slane %v1144, 2
        %v1146 = vmax.f32 %v1144, %v1145
        %v1147 = vrot.slane %v1146, 1
        %v1148 = vmax.f32 %v1146, %v1147
        %v1149 = vsub.f32 %v974, %v1043
        %v1150 = vsub.f32 %v977, %v1050
        %v1151 = vsub.f32 %v982, %v1057
        %v1152 = vsub.f32 %v985, %v1064
        %v1153 = vsub.f32 %v990, %v1071
        %v1154 = vsub.f32 %v993, %v1078
        %v1155 = vsub.f32 %v998, %v1085
        %v1156 = vsub.f32 %v1001, %v1092
        %v1157 = vsub.f32 %v1006, %v1099
        %v1158 = vsub.f32 %v1009, %v1106
        %v1159 = vsub.f32 %v1014, %v1113
        %v1160 = vsub.f32 %v1017, %v1120
        %v1161 = vsub.f32 %v1022, %v1127
        %v1162 = vsub.f32 %v1025, %v1134
        %v1163 = vsub.f32 %v1030, %v1141
        %v1164 = vsub.f32 %v1033, %v1148
        %v1165 = vmul.f32 %v1149, 1.442695
        %v1166 = vpow.pop %v1165
        %v1167 = vmul.f32 %v1150, 1.442695
        %v1168 = vpow.pop %v1167
        %v1169 = vmul.f32 %v1151, 1.442695
        %v1170 = vpow.pop %v1169
        %v1171 = vmul.f32 %v1152, 1.442695
        %v1172 = vpow.pop %v1171
        %v1173 = vmul.f32 %v1153, 1.442695
        %v1174 = vpow.pop %v1173
        %v1175 = vmul.f32 %v1154, 1.442695
        %v1176 = vpow.pop %v1175
        %v1177 = vmul.f32 %v1155, 1.442695
        %v1178 = vpow.pop %v1177
        %v1179 = vmul.f32 %v1156, 1.442695
        %v1180 = vpow.pop %v1179
        %v1181 = vmul.f32 %v1157, 1.442695
        %v1182 = vpow.pop %v1181
        %v1183 = vmul.f32 %v1158, 1.442695
        %v1184 = vpow.pop %v1183
        %v1185 = vmul.f32 %v1159, 1.442695
        %v1186 = vpow.pop %v1185
        %v1187 = vmul.f32 %v1160, 1.442695
        %v1188 = vpow.pop %v1187
        %v1189 = vmul.f32 %v1161, 1.442695
        %v1190 = vpow.pop %v1189
        %v1191 = vmul.f32 %v1162, 1.442695
        %v1192 = vpow.pop %v1191
        %v1193 = vmul.f32 %v1163, 1.442695
        %v1194 = vpow.pop %v1193
        %v1195 = vmul.f32 %v1164, 1.442695
        %v1196 = vpow.pop %v1195
        %v1197 = vsel %vm1036, %v1166, 0.0
        %v1198 = vrot.slane %v1197, 4
        %v1199 = vadd.f32 %v1197, %v1198
        %v1200 = vrot.slane %v1199, 2
        %v1201 = vadd.f32 %v1199, %v1200
        %v1202 = vrot.slane %v1201, 1
        %v1203 = vadd.f32 %v1201, %v1202
        %v1204 = vsel %vm1036, %v1168, 0.0
        %v1205 = vrot.slane %v1204, 4
        %v1206 = vadd.f32 %v1204, %v1205
        %v1207 = vrot.slane %v1206, 2
        %v1208 = vadd.f32 %v1206, %v1207
        %v1209 = vrot.slane %v1208, 1
        %v1210 = vadd.f32 %v1208, %v1209
        %v1211 = vsel %vm1036, %v1170, 0.0
        %v1212 = vrot.slane %v1211, 4
        %v1213 = vadd.f32 %v1211, %v1212
        %v1214 = vrot.slane %v1213, 2
        %v1215 = vadd.f32 %v1213, %v1214
        %v1216 = vrot.slane %v1215, 1
        %v1217 = vadd.f32 %v1215, %v1216
        %v1218 = vsel %vm1036, %v1172, 0.0
        %v1219 = vrot.slane %v1218, 4
        %v1220 = vadd.f32 %v1218, %v1219
        %v1221 = vrot.slane %v1220, 2
        %v1222 = vadd.f32 %v1220, %v1221
        %v1223 = vrot.slane %v1222, 1
        %v1224 = vadd.f32 %v1222, %v1223
        %v1225 = vsel %vm1036, %v1174, 0.0
        %v1226 = vrot.slane %v1225, 4
        %v1227 = vadd.f32 %v1225, %v1226
        %v1228 = vrot.slane %v1227, 2
        %v1229 = vadd.f32 %v1227, %v1228
        %v1230 = vrot.slane %v1229, 1
        %v1231 = vadd.f32 %v1229, %v1230
        %v1232 = vsel %vm1036, %v1176, 0.0
        %v1233 = vrot.slane %v1232, 4
        %v1234 = vadd.f32 %v1232, %v1233
        %v1235 = vrot.slane %v1234, 2
        %v1236 = vadd.f32 %v1234, %v1235
        %v1237 = vrot.slane %v1236, 1
        %v1238 = vadd.f32 %v1236, %v1237
        %v1239 = vsel %vm1036, %v1178, 0.0
        %v1240 = vrot.slane %v1239, 4
        %v1241 = vadd.f32 %v1239, %v1240
        %v1242 = vrot.slane %v1241, 2
        %v1243 = vadd.f32 %v1241, %v1242
        %v1244 = vrot.slane %v1243, 1
        %v1245 = vadd.f32 %v1243, %v1244
        %v1246 = vsel %vm1036, %v1180, 0.0
        %v1247 = vrot.slane %v1246, 4
        %v1248 = vadd.f32 %v1246, %v1247
        %v1249 = vrot.slane %v1248, 2
        %v1250 = vadd.f32 %v1248, %v1249
        %v1251 = vrot.slane %v1250, 1
        %v1252 = vadd.f32 %v1250, %v1251
        %v1253 = vsel %vm1036, %v1182, 0.0
        %v1254 = vrot.slane %v1253, 4
        %v1255 = vadd.f32 %v1253, %v1254
        %v1256 = vrot.slane %v1255, 2
        %v1257 = vadd.f32 %v1255, %v1256
        %v1258 = vrot.slane %v1257, 1
        %v1259 = vadd.f32 %v1257, %v1258
        %v1260 = vsel %vm1036, %v1184, 0.0
        %v1261 = vrot.slane %v1260, 4
        %v1262 = vadd.f32 %v1260, %v1261
        %v1263 = vrot.slane %v1262, 2
        %v1264 = vadd.f32 %v1262, %v1263
        %v1265 = vrot.slane %v1264, 1
        %v1266 = vadd.f32 %v1264, %v1265
        %v1267 = vsel %vm1036, %v1186, 0.0
        %v1268 = vrot.slane %v1267, 4
        %v1269 = vadd.f32 %v1267, %v1268
        %v1270 = vrot.slane %v1269, 2
        %v1271 = vadd.f32 %v1269, %v1270
        %v1272 = vrot.slane %v1271, 1
        %v1273 = vadd.f32 %v1271, %v1272
        %v1274 = vsel %vm1036, %v1188, 0.0
        %v1275 = vrot.slane %v1274, 4
        %v1276 = vadd.f32 %v1274, %v1275
        %v1277 = vrot.slane %v1276, 2
        %v1278 = vadd.f32 %v1276, %v1277
        %v1279 = vrot.slane %v1278, 1
        %v1280 = vadd.f32 %v1278, %v1279
        %v1281 = vsel %vm1036, %v1190, 0.0
        %v1282 = vrot.slane %v1281, 4
        %v1283 = vadd.f32 %v1281, %v1282
        %v1284 = vrot.slane %v1283, 2
        %v1285 = vadd.f32 %v1283, %v1284
        %v1286 = vrot.slane %v1285, 1
        %v1287 = vadd.f32 %v1285, %v1286
        %v1288 = vsel %vm1036, %v1192, 0.0
        %v1289 = vrot.slane %v1288, 4
        %v1290 = vadd.f32 %v1288, %v1289
        %v1291 = vrot.slane %v1290, 2
        %v1292 = vadd.f32 %v1290, %v1291
        %v1293 = vrot.slane %v1292, 1
        %v1294 = vadd.f32 %v1292, %v1293
        %v1295 = vsel %vm1036, %v1194, 0.0
        %v1296 = vrot.slane %v1295, 4
        %v1297 = vadd.f32 %v1295, %v1296
        %v1298 = vrot.slane %v1297, 2
        %v1299 = vadd.f32 %v1297, %v1298
        %v1300 = vrot.slane %v1299, 1
        %v1301 = vadd.f32 %v1299, %v1300
        %v1302 = vsel %vm1036, %v1196, 0.0
        %v1303 = vrot.slane %v1302, 4
        %v1304 = vadd.f32 %v1302, %v1303
        %v1305 = vrot.slane %v1304, 2
        %v1306 = vadd.f32 %v1304, %v1305
        %v1307 = vrot.slane %v1306, 1
        %v1308 = vadd.f32 %v1306, %v1307
        %v1309 = vrcp.pop %v1203
        %v1310 = vrcp.pop %v1210
        %v1311 = vrcp.pop %v1217
        %v1312 = vrcp.pop %v1224
        %v1313 = vrcp.pop %v1231
        %v1314 = vrcp.pop %v1238
        %v1315 = vrcp.pop %v1245
        %v1316 = vrcp.pop %v1252
        %v1317 = vrcp.pop %v1259
        %v1318 = vrcp.pop %v1266
        %v1319 = vrcp.pop %v1273
        %v1320 = vrcp.pop %v1280
        %v1321 = vrcp.pop %v1287
        %v1322 = vrcp.pop %v1294
        %v1323 = vrcp.pop %v1301
        %v1324 = vrcp.pop %v1308
        %v1325 = vmul.f32 %v1166, %v1309
        %v1326 = vmul.f32 %v1168, %v1310
        %v1327 = vmul.f32 %v1170, %v1311
        %v1328 = vmul.f32 %v1172, %v1312
        %v1329 = vmul.f32 %v1174, %v1313
        %v1330 = vmul.f32 %v1176, %v1314
        %v1331 = vmul.f32 %v1178, %v1315
        %v1332 = vmul.f32 %v1180, %v1316
        %v1333 = vmul.f32 %v1182, %v1317
        %v1334 = vmul.f32 %v1184, %v1318
        %v1335 = vmul.f32 %v1186, %v1319
        %v1336 = vmul.f32 %v1188, %v1320
        %v1337 = vmul.f32 %v1190, %v1321
        %v1338 = vmul.f32 %v1192, %v1322
        %v1339 = vmul.f32 %v1194, %v1323
        %v1340 = vmul.f32 %v1196, %v1324
        %v1341 = vpack.c.bf16 %v1326, %v1325
        %v1342 = vpack.c.bf16 %v1328, %v1327
        %v1343 = vpack.c.bf16 %v1330, %v1329
        %v1344 = vpack.c.bf16 %v1332, %v1331
        %v1345 = vpack.c.bf16 %v1334, %v1333
        %v1346 = vpack.c.bf16 %v1336, %v1335
        %v1347 = vpack.c.bf16 %v1338, %v1337
        %v1348 = vpack.c.bf16 %v1340, %v1339
        %v1349 = vld [vmem:[%s5] sm:$0xf]
        %v1351 = vsel %vm1036, %v1341, 0
        %v1354 = vsel %vm1036, %v1342, 0
        %v1357 = vsel %vm1036, %v1343, 0
        %v1360 = vsel %vm1036, %v1344, 0
        %v1363 = vsel %vm1036, %v1345, 0
        %v1366 = vsel %vm1036, %v1346, 0
        %v1369 = vsel %vm1036, %v1347, 0
        %v1372 = vsel %vm1036, %v1348, 0
        %vm1374 = vcmask 1043456
        %v1376 = vsel %vm1374, %v1349, 0
        %1378 = vmatprep.subr.bf16.mxu0 0
        %1379 = vmatpush1.bf16.msra.mxu0 %v1376
        %1380 = vmatprep.subr.bf16.mxu0 0
        %1381 = vmatpush1.bf16.msra.mxu0 0
        %1382 = vmatprep.subr.bf16.mxu0 0
        %1383 = vmatpush1.bf16.msra.mxu0 0
        %1384 = vmatprep.subr.bf16.mxu0 0
        %1385 = vmatpush1.bf16.msra.mxu0 0
        %1386 = vmatprep.subr.bf16.mxu0 0
        %1387 = vmatpush1.bf16.msra.mxu0 0
        %1388 = vmatprep.subr.bf16.mxu0 0
        %1389 = vmatpush1.bf16.msra.mxu0 0
        %1390 = vmatprep.subr.bf16.mxu0 0
        %1391 = vmatpush1.bf16.msra.mxu0 0
        %1392 = vmatprep.subr.bf16.mxu0 0
        %1393 = vmatpush1.bf16.msra.mxu0 0
        %1394 = vmatprep.subr.bf16.mxu0 0
        %1395 = vmatpush1.bf16.msra.mxu0 0
        %1396 = vmatprep.subr.bf16.mxu0 0
        %1397 = vmatpush1.bf16.msra.mxu0 0
        %1398 = vmatprep.subr.bf16.mxu0 0
        %1399 = vmatpush1.bf16.msra.mxu0 0
        %1400 = vmatprep.subr.bf16.mxu0 0
        %1401 = vmatpush1.bf16.msra.mxu0 0
        %1402 = vmatprep.subr.bf16.mxu0 0
        %1403 = vmatpush1.bf16.msra.mxu0 0
        %1404 = vmatprep.subr.bf16.mxu0 0
        %1405 = vmatpush1.bf16.msra.mxu0 0
        %1406 = vmatprep.subr.bf16.mxu0 0
        %1407 = vmatpush1.bf16.msra.mxu0 0
        %1408 = vmatprep.subr.bf16.mxu0 0
        %1409 = vmatpush1.bf16.msra.mxu0 0
        %1410 = vmatprep.mubr.bf16.mxu0 0
        %1411 = vmatmul.mubr.bf16.gmra.mrb[0].mxu0 %v1351
        %v1412 = vpop.f32.mrb[0].mxu0
        %v1413 = vadd.f32 0.0, %v1412
        %v1414 = vpop.f32.mrb[0].mxu0
        %v1415 = vpop.f32.mrb[0].mxu0
        %v1416 = vadd.f32 0.0, %v1415
        %v1417 = vpop.f32.mrb[0].mxu0
        %1418 = vmatprep.mubr.bf16.mxu0 0
        %1419 = vmatmul.mubr.bf16.gmra.mrb[0].mxu0 %v1354
        %v1420 = vpop.f32.mrb[0].mxu0
        %v1421 = vadd.f32 0.0, %v1420
        %v1422 = vpop.f32.mrb[0].mxu0
        %v1423 = vpop.f32.mrb[0].mxu0
        %v1424 = vadd.f32 0.0, %v1423
        %v1425 = vpop.f32.mrb[0].mxu0
        %1426 = vmatprep.mubr.bf16.mxu0 0
        %1427 = vmatmul.mubr.bf16.gmra.mrb[0].mxu0 %v1357
        %v1428 = vpop.f32.mrb[0].mxu0
        %v1429 = vadd.f32 0.0, %v1428
        %v1430 = vpop.f32.mrb[0].mxu0
        %v1431 = vpop.f32.mrb[0].mxu0
        %v1432 = vadd.f32 0.0, %v1431
        %v1433 = vpop.f32.mrb[0].mxu0
        %1434 = vmatprep.mubr.bf16.mxu0 0
        %1435 = vmatmul.mubr.bf16.gmra.mrb[0].mxu0 %v1360
        %v1436 = vpop.f32.mrb[0].mxu0
        %v1437 = vadd.f32 0.0, %v1436
        %v1438 = vpop.f32.mrb[0].mxu0
        %v1439 = vpop.f32.mrb[0].mxu0
        %v1440 = vadd.f32 0.0, %v1439
        %v1441 = vpop.f32.mrb[0].mxu0
        %1442 = vmatprep.mubr.bf16.mxu0 0
        %1443 = vmatmul.mubr.bf16.gmra.mrb[0].mxu0 %v1363
        %v1444 = vpop.f32.mrb[0].mxu0
        %v1445 = vadd.f32 0.0, %v1444
        %v1446 = vpop.f32.mrb[0].mxu0
        %v1447 = vpop.f32.mrb[0].mxu0
        %v1448 = vadd.f32 0.0, %v1447
        %v1449 = vpop.f32.mrb[0].mxu0
        %1450 = vmatprep.mubr.bf16.mxu0 0
        %1451 = vmatmul.mubr.bf16.gmra.mrb[0].mxu0 %v1366
        %v1452 = vpop.f32.mrb[0].mxu0
        %v1453 = vadd.f32 0.0, %v1452
        %v1454 = vpop.f32.mrb[0].mxu0
        %v1455 = vpop.f32.mrb[0].mxu0
        %v1456 = vadd.f32 0.0, %v1455
        %v1457 = vpop.f32.mrb[0].mxu0
        %1458 = vmatprep.mubr.bf16.mxu0 0
        %1459 = vmatmul.mubr.bf16.gmra.mrb[0].mxu0 %v1369
        %v1460 = vpop.f32.mrb[0].mxu0
        %v1461 = vadd.f32 0.0, %v1460
        %v1462 = vpop.f32.mrb[0].mxu0
        %v1463 = vpop.f32.mrb[0].mxu0
        %v1464 = vadd.f32 0.0, %v1463
        %v1465 = vpop.f32.mrb[0].mxu0
        %1466 = vmatprep.mubr.bf16.mxu0 0
        %1467 = vmatmul.mubr.bf16.gmra.mrb[0].mxu0 %v1372
        %v1468 = vpop.f32.mrb[0].mxu0
        %v1469 = vadd.f32 0.0, %v1468
        %v1470 = vpop.f32.mrb[0].mxu0
        %v1471 = vpop.f32.mrb[0].mxu0
        %v1472 = vadd.f32 0.0, %v1471
        %v1473 = vpop.f32.mrb[0].mxu0
        %1474 = vdwg.mxu0
        %1491 = vrot.lane.b32.xlu0 %v633, 96
        %v1492 = vpop.permute.xlu0 %1491
        %1493 = vrot.lane.b32.xlu0 %v636, 96
        %v1494 = vpop.permute.xlu0 %1493
        %1495 = vrot.lane.b32.xlu0 %v641, 96
        %v1496 = vpop.permute.xlu0 %1495
        %1497 = vrot.lane.b32.xlu0 %v644, 96
        %v1498 = vpop.permute.xlu0 %1497
        %1499 = vrot.lane.b32.xlu0 %v649, 96
        %v1500 = vpop.permute.xlu0 %1499
        %1501 = vrot.lane.b32.xlu0 %v652, 96
        %v1502 = vpop.permute.xlu0 %1501
        %1503 = vrot.lane.b32.xlu0 %v657, 96
        %v1504 = vpop.permute.xlu0 %1503
        %1505 = vrot.lane.b32.xlu0 %v660, 96
        %v1506 = vpop.permute.xlu0 %1505
        %1507 = vrot.lane.b32.xlu0 %v665, 96
        %v1508 = vpop.permute.xlu0 %1507
        %1509 = vrot.lane.b32.xlu0 %v668, 96
        %v1510 = vpop.permute.xlu0 %1509
        %1511 = vrot.lane.b32.xlu0 %v673, 96
        %v1512 = vpop.permute.xlu0 %1511
        %1513 = vrot.lane.b32.xlu0 %v676, 96
        %v1514 = vpop.permute.xlu0 %1513
        %1515 = vrot.lane.b32.xlu0 %v681, 96
        %v1516 = vpop.permute.xlu0 %1515
        %1517 = vrot.lane.b32.xlu0 %v684, 96
        %v1518 = vpop.permute.xlu0 %1517
        %1519 = vrot.lane.b32.xlu0 %v689, 96
        %v1520 = vpop.permute.xlu0 %1519
        %1521 = vrot.lane.b32.xlu0 %v692, 96
        %v1522 = vpop.permute.xlu0 %1521
        %v1539 = vmul.f32 %v1413, %v1492
        %v1540 = vmul.f32 %v1416, %v1494
        %v1541 = vmul.f32 %v1421, %v1496
        %v1542 = vmul.f32 %v1424, %v1498
        %v1543 = vmul.f32 %v1429, %v1500
        %v1544 = vmul.f32 %v1432, %v1502
        %v1545 = vmul.f32 %v1437, %v1504
        %v1546 = vmul.f32 %v1440, %v1506
        %v1547 = vmul.f32 %v1445, %v1508
        %v1548 = vmul.f32 %v1448, %v1510
        %v1549 = vmul.f32 %v1453, %v1512
        %v1550 = vmul.f32 %v1456, %v1514
        %v1551 = vmul.f32 %v1461, %v1516
        %v1552 = vmul.f32 %v1464, %v1518
        %v1553 = vmul.f32 %v1469, %v1520
        %v1554 = vmul.f32 %v1472, %v1522
        %v1555 = vsel %vm457, %v1539, 0.0
        %v1556 = vrot.slane %v1555, 4
        %v1557 = vadd.f32 %v1555, %v1556
        %v1558 = vrot.slane %v1557, 2
        %v1559 = vadd.f32 %v1557, %v1558
        %v1560 = vrot.slane %v1559, 1
        %v1561 = vadd.f32 %v1559, %v1560
        %v1562 = vsel %vm457, %v1540, 0.0
        %v1563 = vrot.slane %v1562, 4
        %v1564 = vadd.f32 %v1562, %v1563
        %v1565 = vrot.slane %v1564, 2
        %v1566 = vadd.f32 %v1564, %v1565
        %v1567 = vrot.slane %v1566, 1
        %v1568 = vadd.f32 %v1566, %v1567
        %v1569 = vsel %vm457, %v1541, 0.0
        %v1570 = vrot.slane %v1569, 4
        %v1571 = vadd.f32 %v1569, %v1570
        %v1572 = vrot.slane %v1571, 2
        %v1573 = vadd.f32 %v1571, %v1572
        %v1574 = vrot.slane %v1573, 1
        %v1575 = vadd.f32 %v1573, %v1574
        %v1576 = vsel %vm457, %v1542, 0.0
        %v1577 = vrot.slane %v1576, 4
        %v1578 = vadd.f32 %v1576, %v1577
        %v1579 = vrot.slane %v1578, 2
        %v1580 = vadd.f32 %v1578, %v1579
        %v1581 = vrot.slane %v1580, 1
        %v1582 = vadd.f32 %v1580, %v1581
        %v1583 = vsel %vm457, %v1543, 0.0
        %v1584 = vrot.slane %v1583, 4
        %v1585 = vadd.f32 %v1583, %v1584
        %v1586 = vrot.slane %v1585, 2
        %v1587 = vadd.f32 %v1585, %v1586
        %v1588 = vrot.slane %v1587, 1
        %v1589 = vadd.f32 %v1587, %v1588
        %v1590 = vsel %vm457, %v1544, 0.0
        %v1591 = vrot.slane %v1590, 4
        %v1592 = vadd.f32 %v1590, %v1591
        %v1593 = vrot.slane %v1592, 2
        %v1594 = vadd.f32 %v1592, %v1593
        %v1595 = vrot.slane %v1594, 1
        %v1596 = vadd.f32 %v1594, %v1595
        %v1597 = vsel %vm457, %v1545, 0.0
        %v1598 = vrot.slane %v1597, 4
        %v1599 = vadd.f32 %v1597, %v1598
        %v1600 = vrot.slane %v1599, 2
        %v1601 = vadd.f32 %v1599, %v1600
        %v1602 = vrot.slane %v1601, 1
        %v1603 = vadd.f32 %v1601, %v1602
        %v1604 = vsel %vm457, %v1546, 0.0
        %v1605 = vrot.slane %v1604, 4
        %v1606 = vadd.f32 %v1604, %v1605
        %v1607 = vrot.slane %v1606, 2
        %v1608 = vadd.f32 %v1606, %v1607
        %v1609 = vrot.slane %v1608, 1
        %v1610 = vadd.f32 %v1608, %v1609
        %v1611 = vsel %vm457, %v1547, 0.0
        %v1612 = vrot.slane %v1611, 4
        %v1613 = vadd.f32 %v1611, %v1612
        %v1614 = vrot.slane %v1613, 2
        %v1615 = vadd.f32 %v1613, %v1614
        %v1616 = vrot.slane %v1615, 1
        %v1617 = vadd.f32 %v1615, %v1616
        %v1618 = vsel %vm457, %v1548, 0.0
        %v1619 = vrot.slane %v1618, 4
        %v1620 = vadd.f32 %v1618, %v1619
        %v1621 = vrot.slane %v1620, 2
        %v1622 = vadd.f32 %v1620, %v1621
        %v1623 = vrot.slane %v1622, 1
        %v1624 = vadd.f32 %v1622, %v1623
        %v1625 = vsel %vm457, %v1549, 0.0
        %v1626 = vrot.slane %v1625, 4
        %v1627 = vadd.f32 %v1625, %v1626
        %v1628 = vrot.slane %v1627, 2
        %v1629 = vadd.f32 %v1627, %v1628
        %v1630 = vrot.slane %v1629, 1
        %v1631 = vadd.f32 %v1629, %v1630
        %v1632 = vsel %vm457, %v1550, 0.0
        %v1633 = vrot.slane %v1632, 4
        %v1634 = vadd.f32 %v1632, %v1633
        %v1635 = vrot.slane %v1634, 2
        %v1636 = vadd.f32 %v1634, %v1635
        %v1637 = vrot.slane %v1636, 1
        %v1638 = vadd.f32 %v1636, %v1637
        %v1639 = vsel %vm457, %v1551, 0.0
        %v1640 = vrot.slane %v1639, 4
        %v1641 = vadd.f32 %v1639, %v1640
        %v1642 = vrot.slane %v1641, 2
        %v1643 = vadd.f32 %v1641, %v1642
        %v1644 = vrot.slane %v1643, 1
        %v1645 = vadd.f32 %v1643, %v1644
        %v1646 = vsel %vm457, %v1552, 0.0
        %v1647 = vrot.slane %v1646, 4
        %v1648 = vadd.f32 %v1646, %v1647
        %v1649 = vrot.slane %v1648, 2
        %v1650 = vadd.f32 %v1648, %v1649
        %v1651 = vrot.slane %v1650, 1
        %v1652 = vadd.f32 %v1650, %v1651
        %v1653 = vsel %vm457, %v1553, 0.0
        %v1654 = vrot.slane %v1653, 4
        %v1655 = vadd.f32 %v1653, %v1654
        %v1656 = vrot.slane %v1655, 2
        %v1657 = vadd.f32 %v1655, %v1656
        %v1658 = vrot.slane %v1657, 1
        %v1659 = vadd.f32 %v1657, %v1658
        %v1660 = vsel %vm457, %v1554, 0.0
        %v1661 = vrot.slane %v1660, 4
        %v1662 = vadd.f32 %v1660, %v1661
        %v1663 = vrot.slane %v1662, 2
        %v1664 = vadd.f32 %v1662, %v1663
        %v1665 = vrot.slane %v1664, 1
        %v1666 = vadd.f32 %v1664, %v1665
        %vm1683 = vcmask 1041409
        %v1684 = vsel %vm1683, %v1568, %v1561
        %vm1685 = vcmask 1042434
        %v1686 = vsel %vm1685, %v1575, %v1684
        %vm1687 = vcmask 1043459
        %v1688 = vsel %vm1687, %v1582, %v1686
        %vm1689 = vcmask 1044484
        %v1690 = vsel %vm1689, %v1589, %v1688
        %vm1691 = vcmask 1045509
        %v1692 = vsel %vm1691, %v1596, %v1690
        %vm1693 = vcmask 1046534
        %v1694 = vsel %vm1693, %v1603, %v1692
        %vm1695 = vcmask 1047559
        %v1696 = vsel %vm1695, %v1610, %v1694
        %v1697 = vsel %vm1683, %v1624, %v1617
        %v1698 = vsel %vm1685, %v1631, %v1697
        %v1699 = vsel %vm1687, %v1638, %v1698
        %v1700 = vsel %vm1689, %v1645, %v1699
        %v1701 = vsel %vm1691, %v1652, %v1700
        %v1702 = vsel %vm1693, %v1659, %v1701
        %v1703 = vsel %vm1695, %v1666, %v1702
        %v1706 = vadd.f32 %v438, %v1696
        %v1707 = vadd.f32 %v439, %v1703
        %v1708 = vld [vmem:[%s8] sm:$0x1]
        %v1710 = vlaneseq
        %v1711 = vshrl.u32 %v1710, 7
        %v1712 = vsub.s32 0, %v1711
        %v1713 = vrot.slane %v1708, %v1712
        %v1715 = vmul.f32 %v1706, %v1713
        %v1716 = vmul.f32 %v1707, %v1713
        %v1717 = vld [vmem:[%s9] sm:$0x1]
        %v1719 = vlaneseq
        %v1720 = vshrl.u32 %v1719, 7
        %v1721 = vsub.s32 0, %v1720
        %v1722 = vrot.slane %v1717, %v1721
        %v1724 = vadd.f32 %v1715, %v1722
        %v1725 = vadd.f32 %v1716, %v1722
        %v1726 = vpack.c.bf16 %v1725, %v1724
        %v1727 = vld [vmem:[%s6] sm:$0xf]
        %v1728 = vld [vmem:[%s6 + $0x4] sm:$0xf]
        %v1729 = vld [vmem:[%s6 + $0x8] sm:$0xf]
        %v1730 = vld [vmem:[%s6 + $0xc] sm:$0xf]
        %v1735 = vunpack.c.l.b16 %v1727
        %v1736 = vunpack.c.l.b16 %v1728
        %v1737 = vunpack.c.l.b16 %v1729
        %v1738 = vunpack.c.l.b16 %v1730
        %v1739 = vpack.c.b16 %v1736, %v1735
        %v1740 = vpack.c.b16 %v1738, %v1737
        %v1744 = vsel %vm457, %v1726, 0
        %1746 = vmatprep.subr.bf16.mxu0 0
        %1747 = vmatpush1.bf16.msra.mxu0 %v1739
        %1748 = vmatprep.subr.bf16.mxu0 0
        %1749 = vmatpush1.bf16.msra.mxu0 %v1740
        %1750 = vmatprep.subr.bf16.mxu0 0
        %1751 = vmatpush1.bf16.msra.mxu0 0
        %1752 = vmatprep.subr.bf16.mxu0 0
        %1753 = vmatpush1.bf16.msra.mxu0 0
        %1754 = vmatprep.subr.bf16.mxu0 0
        %1755 = vmatpush1.bf16.msra.mxu0 0
        %1756 = vmatprep.subr.bf16.mxu0 0
        %1757 = vmatpush1.bf16.msra.mxu0 0
        %1758 = vmatprep.subr.bf16.mxu0 0
        %1759 = vmatpush1.bf16.msra.mxu0 0
        %1760 = vmatprep.subr.bf16.mxu0 0
        %1761 = vmatpush1.bf16.msra.mxu0 0
        %1762 = vmatprep.subr.bf16.mxu0 0
        %1763 = vmatpush1.bf16.msra.mxu0 0
        %1764 = vmatprep.subr.bf16.mxu0 0
        %1765 = vmatpush1.bf16.msra.mxu0 0
        %1766 = vmatprep.subr.bf16.mxu0 0
        %1767 = vmatpush1.bf16.msra.mxu0 0
        %1768 = vmatprep.subr.bf16.mxu0 0
        %1769 = vmatpush1.bf16.msra.mxu0 0
        %1770 = vmatprep.subr.bf16.mxu0 0
        %1771 = vmatpush1.bf16.msra.mxu0 0
        %1772 = vmatprep.subr.bf16.mxu0 0
        %1773 = vmatpush1.bf16.msra.mxu0 0
        %1774 = vmatprep.subr.bf16.mxu0 0
        %1775 = vmatpush1.bf16.msra.mxu0 0
        %1776 = vmatprep.subr.bf16.mxu0 0
        %1777 = vmatpush1.bf16.msra.mxu0 0
        %1778 = vmatprep.mubr.bf16.mxu0 0
        %1779 = vmatmul.mubr.bf16.gmra.mrb[0].mxu0 %v1744
        %v1780 = vpop.f32.mrb[0].mxu0
        %v1781 = vadd.f32 0.0, %v1780
        %v1782 = vpop.f32.mrb[0].mxu0
        %v1783 = vpop.f32.mrb[0].mxu0
        %v1784 = vadd.f32 0.0, %v1783
        %v1785 = vpop.f32.mrb[0].mxu0
        %1786 = vdwg.mxu0
        %vm1787 = vcmp.gt.f32.partialorder %v1781, 0.0
        %vm1788 = vcmp.gt.f32.partialorder %v1784, 0.0
        %v1789 = vmul.f32 %v1781, 0.2
        %v1790 = vmul.f32 %v1784, 0.2
        %v1791 = vsel %vm1787, %v1781, %v1789
        %v1792 = vsel %vm1788, %v1784, %v1790
        %v1793 = vpack.c.bf16 %v1792, %v1791
        %v1794 = vld [vmem:[%s7] sm:$0xf]
        %v1795 = vld [vmem:[%s7 + $0x4] sm:$0xf]
        %v1796 = vld [vmem:[%s7 + $0x8] sm:$0xf]
        %v1797 = vld [vmem:[%s7 + $0xc] sm:$0xf]
        %v1798 = vld [vmem:[%s7 + $0x10] sm:$0xf]
        %v1799 = vld [vmem:[%s7 + $0x14] sm:$0xf]
        %v1800 = vld [vmem:[%s7 + $0x18] sm:$0xf]
        %v1801 = vld [vmem:[%s7 + $0x1c] sm:$0xf]
        %v1810 = vunpack.c.l.b16 %v1794
        %v1811 = vunpack.c.l.b16 %v1795
        %v1812 = vunpack.c.l.b16 %v1796
        %v1813 = vunpack.c.l.b16 %v1797
        %v1814 = vunpack.c.l.b16 %v1798
        %v1815 = vunpack.c.l.b16 %v1799
        %v1816 = vunpack.c.l.b16 %v1800
        %v1817 = vunpack.c.l.b16 %v1801
        %v1818 = vpack.c.b16 %v1811, %v1810
        %v1819 = vpack.c.b16 %v1813, %v1812
        %v1820 = vpack.c.b16 %v1815, %v1814
        %v1821 = vpack.c.b16 %v1817, %v1816
        %vm1826 = vcmask 523264
        %v1828 = vsel %vm1826, %v1793, 0
        %1830 = vmatprep.subr.bf16.mxu0 0
        %1831 = vmatpush1.bf16.msra.mxu0 %v1818
        %1832 = vmatprep.subr.bf16.mxu0 0
        %1833 = vmatpush1.bf16.msra.mxu0 %v1819
        %1834 = vmatprep.subr.bf16.mxu0 0
        %1835 = vmatpush1.bf16.msra.mxu0 %v1820
        %1836 = vmatprep.subr.bf16.mxu0 0
        %1837 = vmatpush1.bf16.msra.mxu0 %v1821
        %1838 = vmatprep.subr.bf16.mxu0 0
        %1839 = vmatpush1.bf16.msra.mxu0 0
        %1840 = vmatprep.subr.bf16.mxu0 0
        %1841 = vmatpush1.bf16.msra.mxu0 0
        %1842 = vmatprep.subr.bf16.mxu0 0
        %1843 = vmatpush1.bf16.msra.mxu0 0
        %1844 = vmatprep.subr.bf16.mxu0 0
        %1845 = vmatpush1.bf16.msra.mxu0 0
        %1846 = vmatprep.subr.bf16.mxu0 0
        %1847 = vmatpush1.bf16.msra.mxu0 0
        %1848 = vmatprep.subr.bf16.mxu0 0
        %1849 = vmatpush1.bf16.msra.mxu0 0
        %1850 = vmatprep.subr.bf16.mxu0 0
        %1851 = vmatpush1.bf16.msra.mxu0 0
        %1852 = vmatprep.subr.bf16.mxu0 0
        %1853 = vmatpush1.bf16.msra.mxu0 0
        %1854 = vmatprep.subr.bf16.mxu0 0
        %1855 = vmatpush1.bf16.msra.mxu0 0
        %1856 = vmatprep.subr.bf16.mxu0 0
        %1857 = vmatpush1.bf16.msra.mxu0 0
        %1858 = vmatprep.subr.bf16.mxu0 0
        %1859 = vmatpush1.bf16.msra.mxu0 0
        %1860 = vmatprep.subr.bf16.mxu0 0
        %1861 = vmatpush1.bf16.msra.mxu0 0
        %1862 = vmatprep.mubr.bf16.mxu0 0
        %1863 = vmatmul.mubr.bf16.gmra.mrb[0].mxu0 %v1828
        %v1864 = vpop.f32.mrb[0].mxu0
        %v1865 = vadd.f32 0.0, %v1864
        %v1866 = vpop.f32.mrb[0].mxu0
        %v1867 = vpop.f32.mrb[0].mxu0
        %v1868 = vadd.f32 0.0, %v1867
        %v1869 = vpop.f32.mrb[0].mxu0
        %1870 = vdwg.mxu0
        %v1871 = vadd.f32 %v1724, %v1865
        %v1872 = vadd.f32 %v1725, %v1868
        %v1873 = vld [vmem:[%s10] sm:$0x1]
        %v1875 = vlaneseq
        %v1876 = vshrl.u32 %v1875, 7
        %v1877 = vsub.s32 0, %v1876
        %v1878 = vrot.slane %v1873, %v1877
        %v1880 = vmul.f32 %v1871, %v1878
        %v1881 = vmul.f32 %v1872, %v1878
        %v1882 = vld [vmem:[%s11] sm:$0x1]
        %v1884 = vlaneseq
        %v1885 = vshrl.u32 %v1884, 7
        %v1886 = vsub.s32 0, %v1885
        %v1887 = vrot.slane %v1882, %v1886
        %v1889 = vadd.f32 %v1880, %v1887
        %v1890 = vadd.f32 %v1881, %v1887
        %1891 = vst.msk [vmem:[%s423] sm:$0xff] %vm457, %v1889
        %1892 = vst.msk [vmem:[%s423 + $0x8] sm:$0xff] %vm457, %v1890
        %s1893 = sand.u32 %s296, 1
        %s1894 = scalar_lea.sflag [#allocation3], %s1893
        %s1895 = sand.u32 %s296, 1
        %s1896 = smul.addr %s1895, 16
        %s1897 = scalar_lea.vmem [#allocation2], %s1896
        // Predicated region
        $region69: #{tpu_custom_call.1} parent=67 // pred_check
          %p1898 = pneg %p306
        $region70: #{tpu_custom_call.1} parent=67 // pred_check_branch
          %1900 = sbr.rel (%p1898) target = $region72
        $region71: #{tpu_custom_call.1} parent=67 // pred_region
          %s1901 = smul.u32 2, %s26
          %s1903 = ssub.s32 256, 256
          %1904 = vsyncadd %s1894, %s1903
          %s1905 = smul.addr %s1901, 128
          %s1906 = scalar_lea.hbm %s12, %s1905
          %s1907 = sshll.u32 %s1897, 4
          %s1908 = int_to_ptr.vmem [resolvable:$true] %s1907
          %1913 = dma.vmem_to_hbm [thread:$0]  %s1908, 256, %s1906, %s1894, 128, 128, 8
        $region72: #{tpu_custom_call.1} parent=67 // pred_fallthru
          _
      $region68: #{tpu_custom_call.1} parent=5 // pred_fallthru
        _
      %p1914 = scmp.le.s32.totalorder 2, %s21
      // Predicated region
      $region73: #{tpu_custom_call.1} parent=5 // pred_check
        %p1915 = pneg %p1914
      $region74: #{tpu_custom_call.1} parent=5 // pred_check_branch
        %1917 = sbr.rel (%p1915) target = $region76
      $region75: #{tpu_custom_call.1} parent=5 // pred_region
        %s1918 = ssub.s32 %s21, 2
        // Predicated region
        $region77: #{tpu_custom_call.1} parent=75 // pred_check
          %p1919 = pneg %p312
        $region78: #{tpu_custom_call.1} parent=75 // pred_check_branch
          %1921 = sbr.rel (%p1919) target = $region80
        $region79: #{tpu_custom_call.1} parent=75 // pred_region
          %s1922 = sand.u32 %s297, 1
          %s1923 = scalar_lea.sflag [#allocation3], %s1922
          %s1924 = sand.u32 %s297, 1
          %s1925 = smul.addr %s1924, 16
          %s1926 = scalar_lea.vmem [#allocation2], %s1925
          %1927 = dma.done %s1923, 256
        $region80: #{tpu_custom_call.1} parent=75 // pred_fallthru
          _
      $region76: #{tpu_custom_call.1} parent=5 // pred_fallthru
        _
    $region6: #{tpu_custom_call.1} parent=1 // loop_footer
      %s25 = sadd.s32 1, %s21
    $region7: #{tpu_custom_call.1} parent=1 // loop_footer_branch
      %20 = sbr.rel target = $region3
    $region8: #{tpu_custom_call.1} parent=1 // loop_exit
      _
    %1928 = vsyncpa [#allocation3], 1
    %s1929 = scalar_lea.sflag [#allocation3], 1
    %1930 = vsyncpa %s1929, 1

</llo_original>
